<compile_context>
chip_gen: v7x
topology: tpu7x:2x2x1
jax: 0.10.0
libtpu: 0.0.40
codegen_flags: <defaults>
</compile_context>

<pallas_src>
from functools import partial

import jax
import jax.numpy as jnp
from jax import lax
from jax.experimental import pallas as pl
from jax.experimental.pallas import tpu as pltpu

BN_EPS = 1e-3  # matches nn.BatchNorm2d(eps=0.001)


# ----------------------------------------------------------------------------
# Pallas kernel
# ----------------------------------------------------------------------------
def gated_fusion_kernel(x1_ref, x2_ref, wg_ref, bg_ref, wf_ref, bf_ref,
                        o_ref, xp_ref, *im_scratch, fuse_taps, row_chunk):
    NB, H, W, C = x1_ref.shape
    C2 = 2 * C
    RH = row_chunk
    bf16 = jnp.bfloat16

    # --- zero-padded concat(x1, x2) built in VMEM ---------------------------
    # Zero only the four 1-wide border strips; the interior is fully
    # overwritten right below.  (Zeroed every step so it stays correct under
    # megacore 'parallel' sharding.)
    zrow = jnp.zeros((NB, 1, W + 2, C2), xp_ref.dtype)
    zcol = jnp.zeros((NB, H + 2, 1, C2), xp_ref.dtype)
    xp_ref[:, 0:1, :, :] = zrow
    xp_ref[:, H + 1:H + 2, :, :] = zrow
    xp_ref[:, :, 0:1, :] = zcol
    xp_ref[:, :, W + 1:W + 2, :] = zcol
    # x1 / x2 go straight into the two channel halves: no concat op, no copy.
    xp_ref[:, 1:H + 1, 1:W + 1, :C] = x1_ref[...].astype(xp_ref.dtype)
    xp_ref[:, 1:H + 1, 1:W + 1, C:] = x2_ref[...].astype(xp_ref.dtype)

    wg = wg_ref[...]           # (9*2C, 2C) bf16
    wf = wf_ref[...]           # (2C, C)    bf16
    bg = bg_ref[...]           # (1, 2C)    f32
    bfus = bf_ref[...]         # (1, C)     f32

    # --- row-chunked compute (bounds the (rows, 2C) intermediates) ----------
    for r0 in range(0, H, RH):
        rows = NB * RH * W

        if fuse_taps:
            # Tiny C: one fused matmul (K = 18C) keeps the MXU fed.
            im_ref, = im_scratch
            for ky in range(3):
                for kx in range(3):
                    t = ky * 3 + kx
                    tap = xp_ref[:, r0 + ky:r0 + ky + RH, kx:kx + W, :]
                    im_ref[:, t * C2:(t + 1) * C2] = tap.reshape(rows, C2)
            acc = jnp.dot(im_ref[...].astype(bf16), wg,
                          preferred_element_type=jnp.float32)      # (rows, 2C)
        else:
            # C >= 64: accumulate per-tap matmuls (K = 2C >= 128); no 9x
            # im2col replication in VMEM.
            acc = None
            for ky in range(3):
                for kx in range(3):
                    t = ky * 3 + kx
                    tap = xp_ref[:, r0 + ky:r0 + ky + RH, kx:kx + W, :]
                    part = jnp.dot(tap.reshape(rows, C2).astype(bf16),
                                   wg[t * C2:(t + 1) * C2, :],
                                   preferred_element_type=jnp.float32)
                    acc = part if acc is None else acc + part

        gate = jax.nn.sigmoid(acc + bg)                            # f32

        # Split gating: exact f32 inputs, no concat(x1, x2) materialization.
        x1c = x1_ref[:, r0:r0 + RH, :, :].reshape(rows, C)
        x2c = x2_ref[:, r0:r0 + RH, :, :].reshape(rows, C)
        f1 = gate[:, :C] * x1c
        f2 = gate[:, C:] * x2c

        # 1x1 fusion conv as two MXU matmuls (bf16 operands, f32 accumulate).
        y = (jnp.dot(f1.astype(bf16), wf[:C, :],
                     preferred_element_type=jnp.float32)
             + jnp.dot(f2.astype(bf16), wf[C:, :],
                       preferred_element_type=jnp.float32)
             + bfus)

        o_ref[:, r0:r0 + RH, :, :] = y.reshape(NB, RH, W, C).astype(o_ref.dtype)


# ----------------------------------------------------------------------------
# Wrapper
# ----------------------------------------------------------------------------
def gated_fusion_pallas(x1, x2, wg, bg, wf, bf, *,
                        batch_block=1, row_chunk=None):
    """x1, x2: (N, H, W, C) NHWC.
    wg: (9*2C, 2C) im2col-fused [conv_1 | conv_2] 3x3 weights (BN folded),
    bg: (1, 2C), wf: (2C, C), bf: (1, C)."""
    N, H, W, C = x1.shape
    C2 = 2 * C
    NB = batch_block
    RH = H if row_chunk is None else row_chunk
    assert N % NB == 0, "batch_block must divide the batch size"
    assert H % RH == 0, "row_chunk must divide H"

    # Tiny C: per-tap K (=2C) would starve the MXU -> keep the fused im2col
    # matmul.  Realistic C (>=64): per-tap accumulation, no im2col scratch.
    fuse_taps = C2 < 128

    # MXU operands in bf16 (also halves the weight DMA); biases stay f32.
    wg = wg.astype(jnp.bfloat16)
    wf = wf.astype(jnp.bfloat16)
    bg = bg.astype(jnp.float32)
    bf = bf.astype(jnp.float32)

    scratch = [pltpu.VMEM((NB, H + 2, W + 2, C2), jnp.float32)]    # padded concat
    if fuse_taps:
        scratch.append(pltpu.VMEM((NB * RH * W, 9 * C2), jnp.float32))

    # VMEM budget computed from shapes (instead of a hard-coded 32 MiB cap).
    itemsize = x1.dtype.itemsize
    io_bytes = 3 * NB * H * W * C * itemsize * 2          # x1, x2, out (dbl-buffered)
    xp_bytes = NB * (H + 2) * (W + 2) * C2 * 4
    im_bytes = NB * RH * W * 9 * C2 * 4 if fuse_taps else 0
    wt_bytes = ((9 * C2 * C2 + C2 * C) * 2 + (C2 + C) * 4) * 2
    tmp_bytes = 6 * NB * RH * W * C2 * 4                  # acc/gate/f/y headroom
    vmem_limit = max(32 * 2**20,
                     min(int(1.5 * (io_bytes + xp_bytes + im_bytes
                                    + wt_bytes + tmp_bytes)), 100 * 2**20))

    grid_spec = pltpu.PrefetchScalarGridSpec(
        num_scalar_prefetch=0,
        grid=(N // NB,),
        in_specs=[
            pl.BlockSpec((NB, H, W, C), lambda n: (n, 0, 0, 0)),
            pl.BlockSpec((NB, H, W, C), lambda n: (n, 0, 0, 0)),
            pl.BlockSpec((9 * C2, C2), lambda n: (0, 0)),
            pl.BlockSpec((1, C2), lambda n: (0, 0)),
            pl.BlockSpec((C2, C), lambda n: (0, 0)),
            pl.BlockSpec((1, C), lambda n: (0, 0)),
        ],
        out_specs=pl.BlockSpec((NB, H, W, C), lambda n: (n, 0, 0, 0)),
        scratch_shapes=scratch,
    )

    kernel = partial(gated_fusion_kernel, fuse_taps=fuse_taps, row_chunk=RH)

    return pl.pallas_call(
        kernel,
        out_shape=jax.ShapeDtypeStruct((N, H, W, C), x1.dtype),
        grid_spec=grid_spec,
        compiler_params=pltpu.CompilerParams(
            dimension_semantics=("parallel",),
            vmem_limit_bytes=vmem_limit,
        ),
    )(x1, x2, wg, bg, wf, bf)


# ----------------------------------------------------------------------------
# Deterministic parameter construction + BN folding + weight fusion
# ----------------------------------------------------------------------------
def make_raw_params(key, C):
    ks = jax.random.split(key, 15)

    def bn_params(k0, k1, k2, k3):
        gamma = jax.random.uniform(k0, (C,), minval=0.5, maxval=1.5)
        beta = 0.1 * jax.random.normal(k1, (C,))
        mean = 0.1 * jax.random.normal(k2, (C,))
        var = jax.random.uniform(k3, (C,), minval=0.5, maxval=1.5)
        return gamma, beta, mean, var

    w1 = 0.1 * jax.random.normal(ks[0], (3, 3, 2 * C, C), jnp.float32)
    w2 = 0.1 * jax.random.normal(ks[1], (3, 3, 2 * C, C), jnp.float32)
    wf = 0.1 * jax.random.normal(ks[2], (1, 1, 2 * C, C), jnp.float32)
    bn1 = bn_params(ks[3], ks[4], ks[5], ks[6])
    bn2 = bn_params(ks[7], ks[8], ks[9], ks[10])
    bnf = bn_params(ks[11], ks[12], ks[13], ks[14])
    return w1, bn1, w2, bn2, wf, bnf


def fold_bn(w_hwio, bn):
    gamma, beta, mean, var = bn
    scale = gamma / jnp.sqrt(var + BN_EPS)          # per output channel
    w_folded = w_hwio * scale                        # broadcast over cout (last)
    bias = (beta - mean * scale).reshape(1, -1)      # (1, C)
    return w_folded.astype(jnp.float32), bias.astype(jnp.float32)


def prepare_kernel_params(raw):
    w1_raw, bn1, w2_raw, bn2, wf_raw, bnf = raw
    w1, b1 = fold_bn(w1_raw, bn1)                    # (3, 3, 2C, C), (1, C)
    w2, b2 = fold_bn(w2_raw, bn2)
    C = w1.shape[-1]
    # Fuse the two 3x3 convs along cout, then flatten taps for im2col:
    # row layout = tap-major (ky*3+kx), cin-minor -> (9*2C, 2C).
    wg = jnp.concatenate([w1, w2], axis=-1).reshape(9 * 2 * C, 2 * C)
    bg = jnp.concatenate([b1, b2], axis=-1)          # (1, 2C)
    wf4, bf = fold_bn(wf_raw, bnf)
    wf = wf4.reshape(2 * C, C)                       # 1x1 conv -> plain matmul
    return wg, bg, wf, bf


# ----------------------------------------------------------------------------
# Pure-JAX reference (matches the PyTorch forward, BN in inference mode)
# ----------------------------------------------------------------------------
def reference(x1, x2, raw_params):
    w1, bn1, w2, bn2, wf, bnf = raw_params

    def conv(x, w):
        return lax.conv_general_dilated(
            x, w, window_strides=(1, 1), padding="SAME",
            dimension_numbers=("NHWC", "HWIO", "NHWC"),
            preferred_element_type=jnp.float32)

    def bn(y, p):
        gamma, beta, mean, var = p
        return (y - mean) / jnp.sqrt(var + BN_EPS) * gamma + beta

    x = jnp.concatenate([x1, x2], axis=-1)
    f1 = jax.nn.sigmoid(bn(conv(x, w1), bn1)) * x1
    f2 = jax.nn.sigmoid(bn(conv(x, w2), bn2)) * x2
    return bn(conv(jnp.concatenate([f1, f2], axis=-1), wf), bnf)


# ----------------------------------------------------------------------------
if __name__ == "__main__":
    N, C, H, W = 2, 4, 16, 16
    key = jax.random.PRNGKey(0)
    k1, k2, kp = jax.random.split(key, 3)

    # PyTorch-style NCHW inputs -> NHWC for the kernel.
    x1_nchw = jax.random.normal(k1, (N, C, H, W), jnp.float32)
    x2_nchw = jax.random.normal(k2, (N, C, H, W), jnp.float32)
    x1 = jnp.transpose(x1_nchw, (0, 2, 3, 1))
    x2 = jnp.transpose(x2_nchw, (0, 2, 3, 1))

    raw = make_raw_params(kp, C)
    wg, bg, wf, bf = prepare_kernel_params(raw)

    # batch_block=1 -> grid of N 'parallel' steps: input/output DMA pipelines
    # across steps and v7x can shard the batch over both TensorCores.
    # row_chunk=8 exercises the in-kernel row chunking (2 chunks per image).
    out = gated_fusion_pallas(x1, x2, wg, bg, wf, bf,
                              batch_block=1, row_chunk=8)
    out = jax.block_until_ready(out)

    ref = reference(x1, x2, raw)
    # Tolerance widened vs. the all-f32 version: MXU operands are bf16
    # (accumulation stays f32).
    max_err = float(jnp.max(jnp.abs(out - ref)))
    assert max_err < 5e-2, f"mismatch vs reference, max abs err {max_err}"

    print("KERNEL_OK")
</pallas_src>

<mosaic_0001>
module attributes {stable_mosaic.version = 11 : i64} {
  func.func @gated_fusion_kernel(%arg0: i32, %arg1: memref<1x16x16x4xf32, #tpu.memory_space<vmem>>, %arg2: memref<1x16x16x4xf32, #tpu.memory_space<vmem>>, %arg3: memref<72x8xbf16, #tpu.memory_space<vmem>>, %arg4: memref<1x8xf32, #tpu.memory_space<vmem>>, %arg5: memref<8x4xbf16, #tpu.memory_space<vmem>>, %arg6: memref<1x4xf32, #tpu.memory_space<vmem>>, %arg7: memref<1x16x16x4xf32, #tpu.memory_space<vmem>>, %arg8: memref<1x18x18x8xf32, #tpu.memory_space<vmem>>, %arg9: memref<128x72xf32, #tpu.memory_space<vmem>>) attributes {dimension_semantics = [#tpu.dimension_semantics<parallel>], iteration_bounds = array<i64: 2>, scalar_prefetch = 0 : i64, scratch_operands = 2 : i64, tpu.core_type = #tpu.core_type<tc>, window_params = [{transform_indices = @transform_0, window_bounds = array<i64: 1, 16, 16, 4>}, {transform_indices = @transform_1, window_bounds = array<i64: 1, 16, 16, 4>}, {pipeline_mode = #tpu.pipeline_mode<synchronous>, transform_indices = @transform_2, window_bounds = array<i64: 72, 8>}, {pipeline_mode = #tpu.pipeline_mode<synchronous>, transform_indices = @transform_3, window_bounds = array<i64: 1, 8>}, {pipeline_mode = #tpu.pipeline_mode<synchronous>, transform_indices = @transform_4, window_bounds = array<i64: 8, 4>}, {pipeline_mode = #tpu.pipeline_mode<synchronous>, transform_indices = @transform_5, window_bounds = array<i64: 1, 4>}, {transform_indices = @transform_6, window_bounds = array<i64: 1, 16, 16, 4>}]} {
    %cst = arith.constant 0.000000e+00 : f32
    %0 = vector.broadcast %cst : f32 to vector<1x1x18x8xf32>
    %cst_0 = arith.constant 0.000000e+00 : f32
    %1 = vector.broadcast %cst_0 : f32 to vector<1x18x1x8xf32>
    %c0 = arith.constant 0 : index
    %c0_1 = arith.constant 0 : index
    %c0_2 = arith.constant 0 : index
    %c0_3 = arith.constant 0 : index
    %2 = vector.load %arg8[%c0, %c0_1, %c0_2, %c0_3] : memref<1x18x18x8xf32, #tpu.memory_space<vmem>>, vector<1x1x18x8xf32>
    tpu.vector_store %arg8[%c0, %c0_1, %c0_2, %c0_3], %0 {strides = array<i32>} : memref<1x18x18x8xf32, #tpu.memory_space<vmem>>, vector<1x1x18x8xf32>,
    %c0_4 = arith.constant 0 : index
    %c17 = arith.constant 17 : index
    %c0_5 = arith.constant 0 : index
    %c0_6 = arith.constant 0 : index
    %3 = vector.load %arg8[%c0_4, %c17, %c0_5, %c0_6] : memref<1x18x18x8xf32, #tpu.memory_space<vmem>>, vector<1x1x18x8xf32>
    tpu.vector_store %arg8[%c0_4, %c17, %c0_5, %c0_6], %0 {strides = array<i32>} : memref<1x18x18x8xf32, #tpu.memory_space<vmem>>, vector<1x1x18x8xf32>,
    %c0_7 = arith.constant 0 : index
    %c0_8 = arith.constant 0 : index
    %c0_9 = arith.constant 0 : index
    %c0_10 = arith.constant 0 : index
    %4 = vector.load %arg8[%c0_7, %c0_8, %c0_9, %c0_10] : memref<1x18x18x8xf32, #tpu.memory_space<vmem>>, vector<1x18x1x8xf32>
    tpu.vector_store %arg8[%c0_7, %c0_8, %c0_9, %c0_10], %1 {strides = array<i32>} : memref<1x18x18x8xf32, #tpu.memory_space<vmem>>, vector<1x18x1x8xf32>,
    %c0_11 = arith.constant 0 : index
    %c0_12 = arith.constant 0 : index
    %c17_13 = arith.constant 17 : index
    %c0_14 = arith.constant 0 : index
    %5 = vector.load %arg8[%c0_11, %c0_12, %c17_13, %c0_14] : memref<1x18x18x8xf32, #tpu.memory_space<vmem>>, vector<1x18x1x8xf32>
    tpu.vector_store %arg8[%c0_11, %c0_12, %c17_13, %c0_14], %1 {strides = array<i32>} : memref<1x18x18x8xf32, #tpu.memory_space<vmem>>, vector<1x18x1x8xf32>,
    %c0_15 = arith.constant 0 : index
    %c0_16 = arith.constant 0 : index
    %c0_17 = arith.constant 0 : index
    %c0_18 = arith.constant 0 : index
    %6 = vector.load %arg1[%c0_15, %c0_16, %c0_17, %c0_18] : memref<1x16x16x4xf32, #tpu.memory_space<vmem>>, vector<1x16x16x4xf32>
    %c0_19 = arith.constant 0 : index
    %c1 = arith.constant 1 : index
    %c1_20 = arith.constant 1 : index
    %c0_21 = arith.constant 0 : index
    %7 = vector.load %arg8[%c0_19, %c1, %c1_20, %c0_21] : memref<1x18x18x8xf32, #tpu.memory_space<vmem>>, vector<1x16x16x4xf32>
    tpu.vector_store %arg8[%c0_19, %c1, %c1_20, %c0_21], %6 {strides = array<i32>} : memref<1x18x18x8xf32, #tpu.memory_space<vmem>>, vector<1x16x16x4xf32>,
    %c0_22 = arith.constant 0 : index
    %c0_23 = arith.constant 0 : index
    %c0_24 = arith.constant 0 : index
    %c0_25 = arith.constant 0 : index
    %8 = vector.load %arg2[%c0_22, %c0_23, %c0_24, %c0_25] : memref<1x16x16x4xf32, #tpu.memory_space<vmem>>, vector<1x16x16x4xf32>
    %c0_26 = arith.constant 0 : index
    %c1_27 = arith.constant 1 : index
    %c1_28 = arith.constant 1 : index
    %c4 = arith.constant 4 : index
    %9 = vector.load %arg8[%c0_26, %c1_27, %c1_28, %c4] : memref<1x18x18x8xf32, #tpu.memory_space<vmem>>, vector<1x16x16x4xf32>
    tpu.vector_store %arg8[%c0_26, %c1_27, %c1_28, %c4], %8 {strides = array<i32>} : memref<1x18x18x8xf32, #tpu.memory_space<vmem>>, vector<1x16x16x4xf32>,
    %c0_29 = arith.constant 0 : index
    %c0_30 = arith.constant 0 : index
    %10 = vector.load %arg3[%c0_29, %c0_30] : memref<72x8xbf16, #tpu.memory_space<vmem>>, vector<72x8xbf16>
    %c0_31 = arith.constant 0 : index
    %c0_32 = arith.constant 0 : index
    %11 = vector.load %arg5[%c0_31, %c0_32] : memref<8x4xbf16, #tpu.memory_space<vmem>>, vector<8x4xbf16>
    %c0_33 = arith.constant 0 : index
    %c0_34 = arith.constant 0 : index
    %12 = vector.load %arg4[%c0_33, %c0_34] : memref<1x8xf32, #tpu.memory_space<vmem>>, vector<1x8xf32>
    %c0_35 = arith.constant 0 : index
    %c0_36 = arith.constant 0 : index
    %13 = vector.load %arg6[%c0_35, %c0_36] : memref<1x4xf32, #tpu.memory_space<vmem>>, vector<1x4xf32>
    %c0_37 = arith.constant 0 : index
    %c0_38 = arith.constant 0 : index
    %c0_39 = arith.constant 0 : index
    %c0_40 = arith.constant 0 : index
    %14 = vector.load %arg8[%c0_37, %c0_38, %c0_39, %c0_40] : memref<1x18x18x8xf32, #tpu.memory_space<vmem>>, vector<1x8x16x8xf32>
    %15 = vector.shape_cast %14 : vector<1x8x16x8xf32> to vector<128x8xf32>
    %c0_41 = arith.constant 0 : index
    %c0_42 = arith.constant 0 : index
    %16 = vector.load %arg9[%c0_41, %c0_42] : memref<128x72xf32, #tpu.memory_space<vmem>>, vector<128x8xf32>
    tpu.vector_store %arg9[%c0_41, %c0_42], %15 {strides = array<i32>} : memref<128x72xf32, #tpu.memory_space<vmem>>, vector<128x8xf32>,
    %c0_43 = arith.constant 0 : index
    %c0_44 = arith.constant 0 : index
    %c1_45 = arith.constant 1 : index
    %c0_46 = arith.constant 0 : index
    %17 = vector.load %arg8[%c0_43, %c0_44, %c1_45, %c0_46] : memref<1x18x18x8xf32, #tpu.memory_space<vmem>>, vector<1x8x16x8xf32>
    %18 = vector.shape_cast %17 : vector<1x8x16x8xf32> to vector<128x8xf32>
    %c0_47 = arith.constant 0 : index
    %c8 = arith.constant 8 : index
    %19 = vector.load %arg9[%c0_47, %c8] : memref<128x72xf32, #tpu.memory_space<vmem>>, vector<128x8xf32>
    tpu.vector_store %arg9[%c0_47, %c8], %18 {strides = array<i32>} : memref<128x72xf32, #tpu.memory_space<vmem>>, vector<128x8xf32>,
    %c0_48 = arith.constant 0 : index
    %c0_49 = arith.constant 0 : index
    %c2 = arith.constant 2 : index
    %c0_50 = arith.constant 0 : index
    %20 = vector.load %arg8[%c0_48, %c0_49, %c2, %c0_50] : memref<1x18x18x8xf32, #tpu.memory_space<vmem>>, vector<1x8x16x8xf32>
    %21 = vector.shape_cast %20 : vector<1x8x16x8xf32> to vector<128x8xf32>
    %c0_51 = arith.constant 0 : index
    %c16 = arith.constant 16 : index
    %22 = vector.load %arg9[%c0_51, %c16] : memref<128x72xf32, #tpu.memory_space<vmem>>, vector<128x8xf32>
    tpu.vector_store %arg9[%c0_51, %c16], %21 {strides = array<i32>} : memref<128x72xf32, #tpu.memory_space<vmem>>, vector<128x8xf32>,
    %c0_52 = arith.constant 0 : index
    %c1_53 = arith.constant 1 : index
    %c0_54 = arith.constant 0 : index
    %c0_55 = arith.constant 0 : index
    %23 = vector.load %arg8[%c0_52, %c1_53, %c0_54, %c0_55] : memref<1x18x18x8xf32, #tpu.memory_space<vmem>>, vector<1x8x16x8xf32>
    %24 = vector.shape_cast %23 : vector<1x8x16x8xf32> to vector<128x8xf32>
    %c0_56 = arith.constant 0 : index
    %c24 = arith.constant 24 : index
    %25 = vector.load %arg9[%c0_56, %c24] : memref<128x72xf32, #tpu.memory_space<vmem>>, vector<128x8xf32>
    tpu.vector_store %arg9[%c0_56, %c24], %24 {strides = array<i32>} : memref<128x72xf32, #tpu.memory_space<vmem>>, vector<128x8xf32>,
    %c0_57 = arith.constant 0 : index
    %c1_58 = arith.constant 1 : index
    %c1_59 = arith.constant 1 : index
    %c0_60 = arith.constant 0 : index
    %26 = vector.load %arg8[%c0_57, %c1_58, %c1_59, %c0_60] : memref<1x18x18x8xf32, #tpu.memory_space<vmem>>, vector<1x8x16x8xf32>
    %27 = vector.shape_cast %26 : vector<1x8x16x8xf32> to vector<128x8xf32>
    %c0_61 = arith.constant 0 : index
    %c32 = arith.constant 32 : index
    %28 = vector.load %arg9[%c0_61, %c32] : memref<128x72xf32, #tpu.memory_space<vmem>>, vector<128x8xf32>
    tpu.vector_store %arg9[%c0_61, %c32], %27 {strides = array<i32>} : memref<128x72xf32, #tpu.memory_space<vmem>>, vector<128x8xf32>,
    %c0_62 = arith.constant 0 : index
    %c1_63 = arith.constant 1 : index
    %c2_64 = arith.constant 2 : index
    %c0_65 = arith.constant 0 : index
    %29 = vector.load %arg8[%c0_62, %c1_63, %c2_64, %c0_65] : memref<1x18x18x8xf32, #tpu.memory_space<vmem>>, vector<1x8x16x8xf32>
    %30 = vector.shape_cast %29 : vector<1x8x16x8xf32> to vector<128x8xf32>
    %c0_66 = arith.constant 0 : index
    %c40 = arith.constant 40 : index
    %31 = vector.load %arg9[%c0_66, %c40] : memref<128x72xf32, #tpu.memory_space<vmem>>, vector<128x8xf32>
    tpu.vector_store %arg9[%c0_66, %c40], %30 {strides = array<i32>} : memref<128x72xf32, #tpu.memory_space<vmem>>, vector<128x8xf32>,
    %c0_67 = arith.constant 0 : index
    %c2_68 = arith.constant 2 : index
    %c0_69 = arith.constant 0 : index
    %c0_70 = arith.constant 0 : index
    %32 = vector.load %arg8[%c0_67, %c2_68, %c0_69, %c0_70] : memref<1x18x18x8xf32, #tpu.memory_space<vmem>>, vector<1x8x16x8xf32>
    %33 = vector.shape_cast %32 : vector<1x8x16x8xf32> to vector<128x8xf32>
    %c0_71 = arith.constant 0 : index
    %c48 = arith.constant 48 : index
    %34 = vector.load %arg9[%c0_71, %c48] : memref<128x72xf32, #tpu.memory_space<vmem>>, vector<128x8xf32>
    tpu.vector_store %arg9[%c0_71, %c48], %33 {strides = array<i32>} : memref<128x72xf32, #tpu.memory_space<vmem>>, vector<128x8xf32>,
    %c0_72 = arith.constant 0 : index
    %c2_73 = arith.constant 2 : index
    %c1_74 = arith.constant 1 : index
    %c0_75 = arith.constant 0 : index
    %35 = vector.load %arg8[%c0_72, %c2_73, %c1_74, %c0_75] : memref<1x18x18x8xf32, #tpu.memory_space<vmem>>, vector<1x8x16x8xf32>
    %36 = vector.shape_cast %35 : vector<1x8x16x8xf32> to vector<128x8xf32>
    %c0_76 = arith.constant 0 : index
    %c56 = arith.constant 56 : index
    %37 = vector.load %arg9[%c0_76, %c56] : memref<128x72xf32, #tpu.memory_space<vmem>>, vector<128x8xf32>
    tpu.vector_store %arg9[%c0_76, %c56], %36 {strides = array<i32>} : memref<128x72xf32, #tpu.memory_space<vmem>>, vector<128x8xf32>,
    %c0_77 = arith.constant 0 : index
    %c2_78 = arith.constant 2 : index
    %c2_79 = arith.constant 2 : index
    %c0_80 = arith.constant 0 : index
    %38 = vector.load %arg8[%c0_77, %c2_78, %c2_79, %c0_80] : memref<1x18x18x8xf32, #tpu.memory_space<vmem>>, vector<1x8x16x8xf32>
    %39 = vector.shape_cast %38 : vector<1x8x16x8xf32> to vector<128x8xf32>
    %c0_81 = arith.constant 0 : index
    %c64 = arith.constant 64 : index
    %40 = vector.load %arg9[%c0_81, %c64] : memref<128x72xf32, #tpu.memory_space<vmem>>, vector<128x8xf32>
    tpu.vector_store %arg9[%c0_81, %c64], %39 {strides = array<i32>} : memref<128x72xf32, #tpu.memory_space<vmem>>, vector<128x8xf32>,
    %c0_82 = arith.constant 0 : index
    %c0_83 = arith.constant 0 : index
    %41 = vector.load %arg9[%c0_82, %c0_83] : memref<128x72xf32, #tpu.memory_space<vmem>>, vector<128x72xf32>
    %42 = arith.truncf %41 : vector<128x72xf32> to vector<128x72xbf16>
    %cst_84 = arith.constant dense<0.000000e+00> : vector<128x8xf32>
    %43 = tpu.matmul %42, %10, %cst_84 {dimension_numbers = #tpu.dot_dimension_numbers<[1], [0], [0], [1], [0, 0, 1, 1], [], []>} : vector<128x72xbf16>, vector<72x8xbf16>, vector<128x8xf32> -> vector<128x8xf32>
    %44 = vector.broadcast %12 : vector<1x8xf32> to vector<128x8xf32>
    %45 = arith.addf %43, %44 : vector<128x8xf32>
    %46 = arith.negf %45 : vector<128x8xf32>
    %47 = math.exp %46 : vector<128x8xf32>
    %cst_85 = arith.constant 1.000000e+00 : f32
    %48 = vector.broadcast %cst_85 : f32 to vector<128x8xf32>
    %49 = arith.addf %48, %47 : vector<128x8xf32>
    %50 = arith.divf %48, %49 : vector<128x8xf32>
    %c0_86 = arith.constant 0 : index
    %c0_87 = arith.constant 0 : index
    %c0_88 = arith.constant 0 : index
    %c0_89 = arith.constant 0 : index
    %51 = vector.load %arg1[%c0_86, %c0_87, %c0_88, %c0_89] : memref<1x16x16x4xf32, #tpu.memory_space<vmem>>, vector<1x8x16x4xf32>
    %52 = vector.shape_cast %51 : vector<1x8x16x4xf32> to vector<128x4xf32>
    %c0_90 = arith.constant 0 : index
    %c0_91 = arith.constant 0 : index
    %c0_92 = arith.constant 0 : index
    %c0_93 = arith.constant 0 : index
    %53 = vector.load %arg2[%c0_90, %c0_91, %c0_92, %c0_93] : memref<1x16x16x4xf32, #tpu.memory_space<vmem>>, vector<1x8x16x4xf32>
    %54 = vector.shape_cast %53 : vector<1x8x16x4xf32> to vector<128x4xf32>
    %55 = vector.extract_strided_slice %50 {offsets = [0, 0], sizes = [128, 4], strides = [1, 1]} : vector<128x8xf32> to vector<128x4xf32>
    %56 = arith.mulf %55, %52 : vector<128x4xf32>
    %57 = vector.extract_strided_slice %50 {offsets = [0, 4], sizes = [128, 4], strides = [1, 1]} : vector<128x8xf32> to vector<128x4xf32>
    %58 = arith.mulf %57, %54 : vector<128x4xf32>
    %59 = arith.truncf %56 : vector<128x4xf32> to vector<128x4xbf16>
    %60 = vector.extract_strided_slice %11 {offsets = [0, 0], sizes = [4, 4], strides = [1, 1]} : vector<8x4xbf16> to vector<4x4xbf16>
    %cst_94 = arith.constant dense<0.000000e+00> : vector<128x4xf32>
    %61 = tpu.matmul %59, %60, %cst_94 {dimension_numbers = #tpu.dot_dimension_numbers<[1], [0], [0], [1], [0, 0, 1, 1], [], []>} : vector<128x4xbf16>, vector<4x4xbf16>, vector<128x4xf32> -> vector<128x4xf32>
    %62 = arith.truncf %58 : vector<128x4xf32> to vector<128x4xbf16>
    %63 = vector.extract_strided_slice %11 {offsets = [4, 0], sizes = [4, 4], strides = [1, 1]} : vector<8x4xbf16> to vector<4x4xbf16>
    %cst_95 = arith.constant dense<0.000000e+00> : vector<128x4xf32>
    %64 = tpu.matmul %62, %63, %cst_95 {dimension_numbers = #tpu.dot_dimension_numbers<[1], [0], [0], [1], [0, 0, 1, 1], [], []>} : vector<128x4xbf16>, vector<4x4xbf16>, vector<128x4xf32> -> vector<128x4xf32>
    %65 = arith.addf %61, %64 : vector<128x4xf32>
    %66 = vector.broadcast %13 : vector<1x4xf32> to vector<128x4xf32>
    %67 = arith.addf %65, %66 : vector<128x4xf32>
    %68 = vector.shape_cast %67 : vector<128x4xf32> to vector<1x8x16x4xf32>
    %c0_96 = arith.constant 0 : index
    %c0_97 = arith.constant 0 : index
    %c0_98 = arith.constant 0 : index
    %c0_99 = arith.constant 0 : index
    %69 = vector.load %arg7[%c0_96, %c0_97, %c0_98, %c0_99] : memref<1x16x16x4xf32, #tpu.memory_space<vmem>>, vector<1x8x16x4xf32>
    tpu.vector_store %arg7[%c0_96, %c0_97, %c0_98, %c0_99], %68 {strides = array<i32>} : memref<1x16x16x4xf32, #tpu.memory_space<vmem>>, vector<1x8x16x4xf32>,
    %c0_100 = arith.constant 0 : index
    %c8_101 = arith.constant 8 : index
    %c0_102 = arith.constant 0 : index
    %c0_103 = arith.constant 0 : index
    %70 = vector.load %arg8[%c0_100, %c8_101, %c0_102, %c0_103] : memref<1x18x18x8xf32, #tpu.memory_space<vmem>>, vector<1x8x16x8xf32>
    %71 = vector.shape_cast %70 : vector<1x8x16x8xf32> to vector<128x8xf32>
    %c0_104 = arith.constant 0 : index
    %c0_105 = arith.constant 0 : index
    %72 = vector.load %arg9[%c0_104, %c0_105] : memref<128x72xf32, #tpu.memory_space<vmem>>, vector<128x8xf32>
    tpu.vector_store %arg9[%c0_104, %c0_105], %71 {strides = array<i32>} : memref<128x72xf32, #tpu.memory_space<vmem>>, vector<128x8xf32>,
    %c0_106 = arith.constant 0 : index
    %c8_107 = arith.constant 8 : index
    %c1_108 = arith.constant 1 : index
    %c0_109 = arith.constant 0 : index
    %73 = vector.load %arg8[%c0_106, %c8_107, %c1_108, %c0_109] : memref<1x18x18x8xf32, #tpu.memory_space<vmem>>, vector<1x8x16x8xf32>
    %74 = vector.shape_cast %73 : vector<1x8x16x8xf32> to vector<128x8xf32>
    %c0_110 = arith.constant 0 : index
    %c8_111 = arith.constant 8 : index
    %75 = vector.load %arg9[%c0_110, %c8_111] : memref<128x72xf32, #tpu.memory_space<vmem>>, vector<128x8xf32>
    tpu.vector_store %arg9[%c0_110, %c8_111], %74 {strides = array<i32>} : memref<128x72xf32, #tpu.memory_space<vmem>>, vector<128x8xf32>,
    %c0_112 = arith.constant 0 : index
    %c8_113 = arith.constant 8 : index
    %c2_114 = arith.constant 2 : index
    %c0_115 = arith.constant 0 : index
    %76 = vector.load %arg8[%c0_112, %c8_113, %c2_114, %c0_115] : memref<1x18x18x8xf32, #tpu.memory_space<vmem>>, vector<1x8x16x8xf32>
    %77 = vector.shape_cast %76 : vector<1x8x16x8xf32> to vector<128x8xf32>
    %c0_116 = arith.constant 0 : index
    %c16_117 = arith.constant 16 : index
    %78 = vector.load %arg9[%c0_116, %c16_117] : memref<128x72xf32, #tpu.memory_space<vmem>>, vector<128x8xf32>
    tpu.vector_store %arg9[%c0_116, %c16_117], %77 {strides = array<i32>} : memref<128x72xf32, #tpu.memory_space<vmem>>, vector<128x8xf32>,
    %c0_118 = arith.constant 0 : index
    %c9 = arith.constant 9 : index
    %c0_119 = arith.constant 0 : index
    %c0_120 = arith.constant 0 : index
    %79 = vector.load %arg8[%c0_118, %c9, %c0_119, %c0_120] : memref<1x18x18x8xf32, #tpu.memory_space<vmem>>, vector<1x8x16x8xf32>
    %80 = vector.shape_cast %79 : vector<1x8x16x8xf32> to vector<128x8xf32>
    %c0_121 = arith.constant 0 : index
    %c24_122 = arith.constant 24 : index
    %81 = vector.load %arg9[%c0_121, %c24_122] : memref<128x72xf32, #tpu.memory_space<vmem>>, vector<128x8xf32>
    tpu.vector_store %arg9[%c0_121, %c24_122], %80 {strides = array<i32>} : memref<128x72xf32, #tpu.memory_space<vmem>>, vector<128x8xf32>,
    %c0_123 = arith.constant 0 : index
    %c9_124 = arith.constant 9 : index
    %c1_125 = arith.constant 1 : index
    %c0_126 = arith.constant 0 : index
    %82 = vector.load %arg8[%c0_123, %c9_124, %c1_125, %c0_126] : memref<1x18x18x8xf32, #tpu.memory_space<vmem>>, vector<1x8x16x8xf32>
    %83 = vector.shape_cast %82 : vector<1x8x16x8xf32> to vector<128x8xf32>
    %c0_127 = arith.constant 0 : index
    %c32_128 = arith.constant 32 : index
    %84 = vector.load %arg9[%c0_127, %c32_128] : memref<128x72xf32, #tpu.memory_space<vmem>>, vector<128x8xf32>
    tpu.vector_store %arg9[%c0_127, %c32_128], %83 {strides = array<i32>} : memref<128x72xf32, #tpu.memory_space<vmem>>, vector<128x8xf32>,
    %c0_129 = arith.constant 0 : index
    %c9_130 = arith.constant 9 : index
    %c2_131 = arith.constant 2 : index
    %c0_132 = arith.constant 0 : index
    %85 = vector.load %arg8[%c0_129, %c9_130, %c2_131, %c0_132] : memref<1x18x18x8xf32, #tpu.memory_space<vmem>>, vector<1x8x16x8xf32>
    %86 = vector.shape_cast %85 : vector<1x8x16x8xf32> to vector<128x8xf32>
    %c0_133 = arith.constant 0 : index
    %c40_134 = arith.constant 40 : index
    %87 = vector.load %arg9[%c0_133, %c40_134] : memref<128x72xf32, #tpu.memory_space<vmem>>, vector<128x8xf32>
    tpu.vector_store %arg9[%c0_133, %c40_134], %86 {strides = array<i32>} : memref<128x72xf32, #tpu.memory_space<vmem>>, vector<128x8xf32>,
    %c0_135 = arith.constant 0 : index
    %c10 = arith.constant 10 : index
    %c0_136 = arith.constant 0 : index
    %c0_137 = arith.constant 0 : index
    %88 = vector.load %arg8[%c0_135, %c10, %c0_136, %c0_137] : memref<1x18x18x8xf32, #tpu.memory_space<vmem>>, vector<1x8x16x8xf32>
    %89 = vector.shape_cast %88 : vector<1x8x16x8xf32> to vector<128x8xf32>
    %c0_138 = arith.constant 0 : index
    %c48_139 = arith.constant 48 : index
    %90 = vector.load %arg9[%c0_138, %c48_139] : memref<128x72xf32, #tpu.memory_space<vmem>>, vector<128x8xf32>
    tpu.vector_store %arg9[%c0_138, %c48_139], %89 {strides = array<i32>} : memref<128x72xf32, #tpu.memory_space<vmem>>, vector<128x8xf32>,
    %c0_140 = arith.constant 0 : index
    %c10_141 = arith.constant 10 : index
    %c1_142 = arith.constant 1 : index
    %c0_143 = arith.constant 0 : index
    %91 = vector.load %arg8[%c0_140, %c10_141, %c1_142, %c0_143] : memref<1x18x18x8xf32, #tpu.memory_space<vmem>>, vector<1x8x16x8xf32>
    %92 = vector.shape_cast %91 : vector<1x8x16x8xf32> to vector<128x8xf32>
    %c0_144 = arith.constant 0 : index
    %c56_145 = arith.constant 56 : index
    %93 = vector.load %arg9[%c0_144, %c56_145] : memref<128x72xf32, #tpu.memory_space<vmem>>, vector<128x8xf32>
    tpu.vector_store %arg9[%c0_144, %c56_145], %92 {strides = array<i32>} : memref<128x72xf32, #tpu.memory_space<vmem>>, vector<128x8xf32>,
    %c0_146 = arith.constant 0 : index
    %c10_147 = arith.constant 10 : index
    %c2_148 = arith.constant 2 : index
    %c0_149 = arith.constant 0 : index
    %94 = vector.load %arg8[%c0_146, %c10_147, %c2_148, %c0_149] : memref<1x18x18x8xf32, #tpu.memory_space<vmem>>, vector<1x8x16x8xf32>
    %95 = vector.shape_cast %94 : vector<1x8x16x8xf32> to vector<128x8xf32>
    %c0_150 = arith.constant 0 : index
    %c64_151 = arith.constant 64 : index
    %96 = vector.load %arg9[%c0_150, %c64_151] : memref<128x72xf32, #tpu.memory_space<vmem>>, vector<128x8xf32>
    tpu.vector_store %arg9[%c0_150, %c64_151], %95 {strides = array<i32>} : memref<128x72xf32, #tpu.memory_space<vmem>>, vector<128x8xf32>,
    %c0_152 = arith.constant 0 : index
    %c0_153 = arith.constant 0 : index
    %97 = vector.load %arg9[%c0_152, %c0_153] : memref<128x72xf32, #tpu.memory_space<vmem>>, vector<128x72xf32>
    %98 = arith.truncf %97 : vector<128x72xf32> to vector<128x72xbf16>
    %cst_154 = arith.constant dense<0.000000e+00> : vector<128x8xf32>
    %99 = tpu.matmul %98, %10, %cst_154 {dimension_numbers = #tpu.dot_dimension_numbers<[1], [0], [0], [1], [0, 0, 1, 1], [], []>} : vector<128x72xbf16>, vector<72x8xbf16>, vector<128x8xf32> -> vector<128x8xf32>
    %100 = vector.broadcast %12 : vector<1x8xf32> to vector<128x8xf32>
    %101 = arith.addf %99, %100 : vector<128x8xf32>
    %102 = arith.negf %101 : vector<128x8xf32>
    %103 = math.exp %102 : vector<128x8xf32>
    %cst_155 = arith.constant 1.000000e+00 : f32
    %104 = vector.broadcast %cst_155 : f32 to vector<128x8xf32>
    %105 = arith.addf %104, %103 : vector<128x8xf32>
    %106 = arith.divf %104, %105 : vector<128x8xf32>
    %c0_156 = arith.constant 0 : index
    %c8_157 = arith.constant 8 : index
    %c0_158 = arith.constant 0 : index
    %c0_159 = arith.constant 0 : index
    %107 = vector.load %arg1[%c0_156, %c8_157, %c0_158, %c0_159] : memref<1x16x16x4xf32, #tpu.memory_space<vmem>>, vector<1x8x16x4xf32>
    %108 = vector.shape_cast %107 : vector<1x8x16x4xf32> to vector<128x4xf32>
    %c0_160 = arith.constant 0 : index
    %c8_161 = arith.constant 8 : index
    %c0_162 = arith.constant 0 : index
    %c0_163 = arith.constant 0 : index
    %109 = vector.load %arg2[%c0_160, %c8_161, %c0_162, %c0_163] : memref<1x16x16x4xf32, #tpu.memory_space<vmem>>, vector<1x8x16x4xf32>
    %110 = vector.shape_cast %109 : vector<1x8x16x4xf32> to vector<128x4xf32>
    %111 = vector.extract_strided_slice %106 {offsets = [0, 0], sizes = [128, 4], strides = [1, 1]} : vector<128x8xf32> to vector<128x4xf32>
    %112 = arith.mulf %111, %108 : vector<128x4xf32>
    %113 = vector.extract_strided_slice %106 {offsets = [0, 4], sizes = [128, 4], strides = [1, 1]} : vector<128x8xf32> to vector<128x4xf32>
    %114 = arith.mulf %113, %110 : vector<128x4xf32>
    %115 = arith.truncf %112 : vector<128x4xf32> to vector<128x4xbf16>
    %116 = vector.extract_strided_slice %11 {offsets = [0, 0], sizes = [4, 4], strides = [1, 1]} : vector<8x4xbf16> to vector<4x4xbf16>
    %cst_164 = arith.constant dense<0.000000e+00> : vector<128x4xf32>
    %117 = tpu.matmul %115, %116, %cst_164 {dimension_numbers = #tpu.dot_dimension_numbers<[1], [0], [0], [1], [0, 0, 1, 1], [], []>} : vector<128x4xbf16>, vector<4x4xbf16>, vector<128x4xf32> -> vector<128x4xf32>
    %118 = arith.truncf %114 : vector<128x4xf32> to vector<128x4xbf16>
    %119 = vector.extract_strided_slice %11 {offsets = [4, 0], sizes = [4, 4], strides = [1, 1]} : vector<8x4xbf16> to vector<4x4xbf16>
    %cst_165 = arith.constant dense<0.000000e+00> : vector<128x4xf32>
    %120 = tpu.matmul %118, %119, %cst_165 {dimension_numbers = #tpu.dot_dimension_numbers<[1], [0], [0], [1], [0, 0, 1, 1], [], []>} : vector<128x4xbf16>, vector<4x4xbf16>, vector<128x4xf32> -> vector<128x4xf32>
    %121 = arith.addf %117, %120 : vector<128x4xf32>
    %122 = vector.broadcast %13 : vector<1x4xf32> to vector<128x4xf32>
    %123 = arith.addf %121, %122 : vector<128x4xf32>
    %124 = vector.shape_cast %123 : vector<128x4xf32> to vector<1x8x16x4xf32>
    %c0_166 = arith.constant 0 : index
    %c8_167 = arith.constant 8 : index
    %c0_168 = arith.constant 0 : index
    %c0_169 = arith.constant 0 : index
    %125 = vector.load %arg7[%c0_166, %c8_167, %c0_168, %c0_169] : memref<1x16x16x4xf32, #tpu.memory_space<vmem>>, vector<1x8x16x4xf32>
    tpu.vector_store %arg7[%c0_166, %c8_167, %c0_168, %c0_169], %124 {strides = array<i32>} : memref<1x16x16x4xf32, #tpu.memory_space<vmem>>, vector<1x8x16x4xf32>,
    return
  }
  func.func @transform_0(%arg0: i32) -> (i32, i32, i32, i32) {
    %c0_i32 = arith.constant 0 : i32
    %c0_i32_0 = arith.constant 0 : i32
    %c0_i32_1 = arith.constant 0 : i32
    %c0_i32_2 = arith.constant 0 : i32
    return %arg0, %c0_i32, %c0_i32_0, %c0_i32_1 : i32, i32, i32, i32
  }
  func.func @transform_1(%arg0: i32) -> (i32, i32, i32, i32) {
    %c0_i32 = arith.constant 0 : i32
    %c0_i32_0 = arith.constant 0 : i32
    %c0_i32_1 = arith.constant 0 : i32
    %c0_i32_2 = arith.constant 0 : i32
    return %arg0, %c0_i32, %c0_i32_0, %c0_i32_1 : i32, i32, i32, i32
  }
  func.func @transform_2(%arg0: i32) -> (i32, i32) {
    %c0_i32 = arith.constant 0 : i32
    %c0_i32_0 = arith.constant 0 : i32
    %c0_i32_1 = arith.constant 0 : i32
    return %c0_i32, %c0_i32_0 : i32, i32
  }
  func.func @transform_3(%arg0: i32) -> (i32, i32) {
    %c0_i32 = arith.constant 0 : i32
    %c0_i32_0 = arith.constant 0 : i32
    %c0_i32_1 = arith.constant 0 : i32
    return %c0_i32, %c0_i32_0 : i32, i32
  }
  func.func @transform_4(%arg0: i32) -> (i32, i32) {
    %c0_i32 = arith.constant 0 : i32
    %c0_i32_0 = arith.constant 0 : i32
    %c0_i32_1 = arith.constant 0 : i32
    return %c0_i32, %c0_i32_0 : i32, i32
  }
  func.func @transform_5(%arg0: i32) -> (i32, i32) {
    %c0_i32 = arith.constant 0 : i32
    %c0_i32_0 = arith.constant 0 : i32
    %c0_i32_1 = arith.constant 0 : i32
    return %c0_i32, %c0_i32_0 : i32, i32
  }
  func.func @transform_6(%arg0: i32) -> (i32, i32, i32, i32) {
    %c0_i32 = arith.constant 0 : i32
    %c0_i32_0 = arith.constant 0 : i32
    %c0_i32_1 = arith.constant 0 : i32
    %c0_i32_2 = arith.constant 0 : i32
    return %arg0, %c0_i32, %c0_i32_0, %c0_i32_1 : i32, i32, i32, i32
  }
}

</mosaic_0001>

<llo_original>
// kernel: tpu_custom_call.1
$region0: #{tpu_custom_call.1}
  #allocation0 [shape = 'u32[]', space=smem, size = 0x4, offset = 0x4, fixed_abs, tag = 'smem constant byte address 0x4 - core index']
  #allocation1 [shape = 'u32[144,128]{1,0:T(1,128)}', space=vmem, size = 0x12000, scoped, tag = 'internal scratch']
  #allocation2 [shape = 'f32[1,18,18,8]{3,2,1,0:T(8,128)}', space=vmem, size = 0x36000, scoped, tag = 'scratch operand']
  #allocation3 [shape = 'f32[128,72]{1,0:T(8,128)}', space=vmem, size = 0x10000, scoped, tag = 'scratch operand']
  %s0 = inlined_call_operand.vmem [shape: f32[2,16,16,4], index: 0, kind: input, shape index: {}]
  %s1 = inlined_call_operand.vmem [shape: f32[2,16,16,4], index: 1, kind: input, shape index: {}]
  %s2 = inlined_call_operand.vmem [shape: bf16[72,8], index: 2, kind: input, shape index: {}]
  %s3 = inlined_call_operand.vmem [shape: f32[1,8], index: 3, kind: input, shape index: {}]
  %s4 = inlined_call_operand.vmem [shape: bf16[8,4], index: 4, kind: input, shape index: {}]
  %s5 = inlined_call_operand.vmem [shape: f32[1,4], index: 5, kind: input, shape index: {}]
  %s6 = inlined_call_operand.vmem [shape: f32[2,16,16,4], index: 6, kind: output, shape index: {}]
  %s7 = sld [smem:[#allocation0]]
  $region57: #{tpu_custom_call.1} parent=0
    _
  %s9 = ssub.s32 1, %s7
  %s10 = scalar_select 0, %s9, %s7
  loop: start=0, step=1, limit=4
  $region2: #{tpu_custom_call.1} parent=0 // loop_pre_header
    _
  $region3: #{tpu_custom_call.1} parent=0 // loop_header
    %s12 = sphi 0, %s16
    %p13 = scmp.ge.s32.totalorder %s12, 4
    %s22 = sphi 0, %s24
    %s25 = sphi 0, %s22
    %s26 = sphi 0, %s25
    %s42 = sphi 0, %s26
    %s48 = sphi 0, %s50
    %s51 = sphi 0, %s48
    %s52 = sphi 0, %s51
    %s68 = sphi 0, %s52
    %s72 = sphi 0, %s72
    %s74 = sphi 0, %s72
    %s75 = sphi 0, %s74
    %s89 = sphi 0, %s75
    %s93 = sphi 0, %s93
    %s95 = sphi 0, %s93
    %s96 = sphi 0, %s95
    %s110 = sphi 0, %s96
    %s114 = sphi 0, %s114
    %s116 = sphi 0, %s114
    %s117 = sphi 0, %s116
    %s131 = sphi 0, %s117
    %s135 = sphi 0, %s135
    %s137 = sphi 0, %s135
    %s138 = sphi 0, %s137
    %s152 = sphi 0, %s138
    %s158 = sphi 0, %s160
    %s161 = sphi 0, %s158
    %s162 = sphi 0, %s161
    %s178 = sphi 0, %s162
  $region4: #{tpu_custom_call.1} parent=0 // loop_header_branch
    %15 = sbr.rel (%p13) target = $region8
  $region5: #{tpu_custom_call.1} parent=0 // loop_body
    %s17 = ssub.s32 %s12, 1
    %s18 = ssub.s32 %s12, 2
    %s19 = sadd.s32 %s12, 1
    %s20 = ssub.s32 %s12, %s19
    %p21 = scmp.eq.s32.totalorder %s20, 0
    %s23 = sadd.s32 %s22, 1
    %s24 = scalar_select %p21, %s22, %s23
    %p27 = pneg %p21
    %p28 = scmp.eq.s32.totalorder %s12, 1
    %p29 = por %p27, %p28
    %p30 = scmp.ne.s32.totalorder %s22, %s25
    %p31 = scmp.eq.s32.totalorder %s12, 0
    %p32 = por %p30, %p31
    %p33 = scmp.ne.s32.totalorder %s22, %s25
    %p34 = scmp.eq.s32.totalorder %s17, 1
    %p35 = por %p33, %p34
    %p36 = scmp.ne.s32.totalorder %s25, %s26
    %p37 = scmp.eq.s32.totalorder %s17, 0
    %p38 = por %p36, %p37
    %p39 = scmp.ne.s32.totalorder %s25, %s26
    %p40 = scmp.eq.s32.totalorder %s18, 1
    %p41 = por %p39, %p40
    %p43 = scmp.ne.s32.totalorder %s26, %s42
    %p44 = scmp.eq.s32.totalorder %s18, 0
    %p45 = por %p43, %p44
    %s46 = ssub.s32 %s12, %s19
    %p47 = scmp.eq.s32.totalorder %s46, 0
    %s49 = sadd.s32 %s48, 1
    %s50 = scalar_select %p47, %s48, %s49
    %p53 = pneg %p47
    %p54 = scmp.eq.s32.totalorder %s12, 1
    %p55 = por %p53, %p54
    %p56 = scmp.ne.s32.totalorder %s48, %s51
    %p57 = scmp.eq.s32.totalorder %s12, 0
    %p58 = por %p56, %p57
    %p59 = scmp.ne.s32.totalorder %s48, %s51
    %p60 = scmp.eq.s32.totalorder %s17, 1
    %p61 = por %p59, %p60
    %p62 = scmp.ne.s32.totalorder %s51, %s52
    %p63 = scmp.eq.s32.totalorder %s17, 0
    %p64 = por %p62, %p63
    %p65 = scmp.ne.s32.totalorder %s51, %s52
    %p66 = scmp.eq.s32.totalorder %s18, 1
    %p67 = por %p65, %p66
    %p69 = scmp.ne.s32.totalorder %s52, %s68
    %p70 = scmp.eq.s32.totalorder %s18, 0
    %p71 = por %p69, %p70
    %s73 = sadd.s32 %s72, 1
    %p76 = scmp.eq.s32.totalorder %s12, 1
    %p77 = scmp.ne.s32.totalorder %s72, %s74
    %p78 = scmp.eq.s32.totalorder %s12, 0
    %p79 = por %p77, %p78
    %p80 = scmp.ne.s32.totalorder %s72, %s74
    %p81 = scmp.eq.s32.totalorder %s17, 1
    %p82 = por %p80, %p81
    %p83 = scmp.ne.s32.totalorder %s74, %s75
    %p84 = scmp.eq.s32.totalorder %s17, 0
    %p85 = por %p83, %p84
    %p86 = scmp.ne.s32.totalorder %s74, %s75
    %p87 = scmp.eq.s32.totalorder %s18, 1
    %p88 = por %p86, %p87
    %p90 = scmp.ne.s32.totalorder %s75, %s89
    %p91 = scmp.eq.s32.totalorder %s18, 0
    %p92 = por %p90, %p91
    %s94 = sadd.s32 %s93, 1
    %p97 = scmp.eq.s32.totalorder %s12, 1
    %p98 = scmp.ne.s32.totalorder %s93, %s95
    %p99 = scmp.eq.s32.totalorder %s12, 0
    %p100 = por %p98, %p99
    %p101 = scmp.ne.s32.totalorder %s93, %s95
    %p102 = scmp.eq.s32.totalorder %s17, 1
    %p103 = por %p101, %p102
    %p104 = scmp.ne.s32.totalorder %s95, %s96
    %p105 = scmp.eq.s32.totalorder %s17, 0
    %p106 = por %p104, %p105
    %p107 = scmp.ne.s32.totalorder %s95, %s96
    %p108 = scmp.eq.s32.totalorder %s18, 1
    %p109 = por %p107, %p108
    %p111 = scmp.ne.s32.totalorder %s96, %s110
    %p112 = scmp.eq.s32.totalorder %s18, 0
    %p113 = por %p111, %p112
    %s115 = sadd.s32 %s114, 1
    %p118 = scmp.eq.s32.totalorder %s12, 1
    %p119 = scmp.ne.s32.totalorder %s114, %s116
    %p120 = scmp.eq.s32.totalorder %s12, 0
    %p121 = por %p119, %p120
    %p122 = scmp.ne.s32.totalorder %s114, %s116
    %p123 = scmp.eq.s32.totalorder %s17, 1
    %p124 = por %p122, %p123
    %p125 = scmp.ne.s32.totalorder %s116, %s117
    %p126 = scmp.eq.s32.totalorder %s17, 0
    %p127 = por %p125, %p126
    %p128 = scmp.ne.s32.totalorder %s116, %s117
    %p129 = scmp.eq.s32.totalorder %s18, 1
    %p130 = por %p128, %p129
    %p132 = scmp.ne.s32.totalorder %s117, %s131
    %p133 = scmp.eq.s32.totalorder %s18, 0
    %p134 = por %p132, %p133
    %s136 = sadd.s32 %s135, 1
    %p139 = scmp.eq.s32.totalorder %s12, 1
    %p140 = scmp.ne.s32.totalorder %s135, %s137
    %p141 = scmp.eq.s32.totalorder %s12, 0
    %p142 = por %p140, %p141
    %p143 = scmp.ne.s32.totalorder %s135, %s137
    %p144 = scmp.eq.s32.totalorder %s17, 1
    %p145 = por %p143, %p144
    %p146 = scmp.ne.s32.totalorder %s137, %s138
    %p147 = scmp.eq.s32.totalorder %s17, 0
    %p148 = por %p146, %p147
    %p149 = scmp.ne.s32.totalorder %s137, %s138
    %p150 = scmp.eq.s32.totalorder %s18, 1
    %p151 = por %p149, %p150
    %p153 = scmp.ne.s32.totalorder %s138, %s152
    %p154 = scmp.eq.s32.totalorder %s18, 0
    %p155 = por %p153, %p154
    %s156 = ssub.s32 %s12, %s19
    %p157 = scmp.eq.s32.totalorder %s156, 0
    %s159 = sadd.s32 %s158, 1
    %s160 = scalar_select %p157, %s158, %s159
    %p163 = pneg %p157
    %p164 = scmp.eq.s32.totalorder %s12, 1
    %p165 = por %p163, %p164
    %p166 = scmp.ne.s32.totalorder %s158, %s161
    %p167 = scmp.eq.s32.totalorder %s12, 0
    %p168 = por %p166, %p167
    %p169 = scmp.ne.s32.totalorder %s158, %s161
    %p170 = scmp.eq.s32.totalorder %s17, 1
    %p171 = por %p169, %p170
    %p172 = scmp.ne.s32.totalorder %s161, %s162
    %p173 = scmp.eq.s32.totalorder %s17, 0
    %p174 = por %p172, %p173
    %p175 = scmp.ne.s32.totalorder %s161, %s162
    %p176 = scmp.eq.s32.totalorder %s18, 1
    %p177 = por %p175, %p176
    %p179 = scmp.ne.s32.totalorder %s162, %s178
    %p180 = scmp.eq.s32.totalorder %s18, 0
    %p181 = por %p179, %p180
    %p182 = scmp.le.s32.totalorder 1, %s12
    %p183 = scmp.lt.s32.totalorder %s12, 3
    %p184 = pnand %p182, %p183
    %p185 = pneg %p184
    // Predicated region
    $region9: #{tpu_custom_call.1} parent=5 // pred_check
      _
    $region10: #{tpu_custom_call.1} parent=5 // pred_check_branch
      %187 = sbr.rel (%p184) target = $region12
    $region11: #{tpu_custom_call.1} parent=5 // pred_region
      %s188 = ssub.s32 %s12, 1
      // Predicated region
      $region13: #{tpu_custom_call.1} parent=11 // pred_check
        %p189 = pneg %p85
      $region14: #{tpu_custom_call.1} parent=11 // pred_check_branch
        %191 = sbr.rel (%p189) target = $region16
      $region15: #{tpu_custom_call.1} parent=11 // pred_region
        _
      $region16: #{tpu_custom_call.1} parent=11 // pred_fallthru
        _
      // Predicated region
      $region17: #{tpu_custom_call.1} parent=11 // pred_check
        %p192 = pneg %p106
      $region18: #{tpu_custom_call.1} parent=11 // pred_check_branch
        %194 = sbr.rel (%p192) target = $region20
      $region19: #{tpu_custom_call.1} parent=11 // pred_region
        _
      $region20: #{tpu_custom_call.1} parent=11 // pred_fallthru
        _
      // Predicated region
      $region21: #{tpu_custom_call.1} parent=11 // pred_check
        %p195 = pneg %p127
      $region22: #{tpu_custom_call.1} parent=11 // pred_check_branch
        %197 = sbr.rel (%p195) target = $region24
      $region23: #{tpu_custom_call.1} parent=11 // pred_region
        _
      $region24: #{tpu_custom_call.1} parent=11 // pred_fallthru
        _
      // Predicated region
      $region25: #{tpu_custom_call.1} parent=11 // pred_check
        %p198 = pneg %p148
      $region26: #{tpu_custom_call.1} parent=11 // pred_check_branch
        %200 = sbr.rel (%p198) target = $region28
      $region27: #{tpu_custom_call.1} parent=11 // pred_region
        _
      $region28: #{tpu_custom_call.1} parent=11 // pred_fallthru
        _
    $region12: #{tpu_custom_call.1} parent=5 // pred_fallthru
      _
    %p201 = scmp.lt.s32.totalorder %s12, 2
    // Predicated region
    $region29: #{tpu_custom_call.1} parent=5 // pred_check
      %p202 = pneg %p201
    $region30: #{tpu_custom_call.1} parent=5 // pred_check_branch
      %204 = sbr.rel (%p202) target = $region32
    $region31: #{tpu_custom_call.1} parent=5 // pred_region
      // Predicated region
      $region33: #{tpu_custom_call.1} parent=31 // pred_check
        %p205 = pneg %p32
      $region34: #{tpu_custom_call.1} parent=31 // pred_check_branch
        %207 = sbr.rel (%p205) target = $region36
      $region35: #{tpu_custom_call.1} parent=31 // pred_region
        %p208 = scmp.lt.s32.totalorder %s12, 1
        %s209 = scalar_select %p208, %s12, 1
        %s210 = smul.addr %s209, 32
        %s211 = smul.addr %s210, 8
        %s212 = scalar_lea.vmem %s0, %s211
      $region36: #{tpu_custom_call.1} parent=31 // pred_fallthru
        _
      // Predicated region
      $region37: #{tpu_custom_call.1} parent=31 // pred_check
        %p213 = pneg %p58
      $region38: #{tpu_custom_call.1} parent=31 // pred_check_branch
        %215 = sbr.rel (%p213) target = $region40
      $region39: #{tpu_custom_call.1} parent=31 // pred_region
        %p216 = scmp.lt.s32.totalorder %s12, 1
        %s217 = scalar_select %p216, %s12, 1
        %s218 = smul.addr %s217, 32
        %s219 = smul.addr %s218, 8
        %s220 = scalar_lea.vmem %s1, %s219
      $region40: #{tpu_custom_call.1} parent=31 // pred_fallthru
        _
    $region32: #{tpu_custom_call.1} parent=5 // pred_fallthru
      _
    %p221 = scmp.le.s32.totalorder 1, %s12
    %p222 = scmp.lt.s32.totalorder %s12, 3
    %p223 = pnand %p221, %p222
    %p224 = pneg %p223
    // Predicated region
    $region41: #{tpu_custom_call.1} parent=5 // pred_check
      _
    $region42: #{tpu_custom_call.1} parent=5 // pred_check_branch
      %226 = sbr.rel (%p223) target = $region44
    $region43: #{tpu_custom_call.1} parent=5 // pred_region
      %s227 = ssub.s32 %s12, 1
      %p228 = scmp.lt.s32.totalorder %s17, 1
      %s229 = scalar_select %p228, %s17, 1
      %s230 = smul.addr %s229, 32
      %s231 = smul.addr %s230, 8
      %s232 = scalar_lea.vmem %s0, %s231
      %p233 = pneg %p38
      %p234 = pneg %p35
      %p235 = scmp.lt.s32.totalorder %s17, 1
      %s236 = scalar_select %p235, %s17, 1
      %s237 = smul.addr %s236, 32
      %s238 = smul.addr %s237, 8
      %s239 = scalar_lea.vmem %s1, %s238
      %p240 = pneg %p64
      %p241 = pneg %p61
      %p242 = pneg %p85
      %p243 = pneg %p82
      %p244 = pneg %p106
      %p245 = pneg %p103
      %p246 = pneg %p127
      %p247 = pneg %p124
      %p248 = pneg %p148
      %p249 = pneg %p145
      %p250 = pneg %p174
      %p251 = pneg %p171
      %p252 = scmp.lt.s32.totalorder %s17, 1
      %s253 = scalar_select %p252, %s17, 1
      %s254 = smul.addr %s253, 32
      %s255 = smul.addr %s254, 8
      %s256 = scalar_lea.vmem %s6, %s255
      %p257 = scmp.lt.s32.totalorder %s17, 1
      %s258 = scalar_select %p257, %s17, 1
      %s259 = smul.addr %s258, 32
      %s260 = smul.addr %s259, 8
      %s261 = scalar_lea.vmem %s0, %s260
      %p262 = scmp.lt.s32.totalorder %s17, 1
      %s263 = scalar_select %p262, %s17, 1
      %s264 = smul.addr %s263, 32
      %s265 = smul.addr %s264, 8
      %s266 = scalar_lea.vmem %s1, %s265
      %p267 = scmp.lt.s32.totalorder %s17, 1
      %s268 = scalar_select %p267, %s17, 1
      %s269 = smul.addr %s268, 32
      %s270 = smul.addr %s269, 8
      %s271 = scalar_lea.vmem %s6, %s270
      %vm273 = vcmask 64512
      %274 = vst.msk [vmem:[#allocation2] sm:$0xff] %vm273, 0.0
      %275 = vst.msk [vmem:[#allocation2 + $0x8] sm:$0xff] %vm273, 0.0
      %vm276 = vcmask 58368
      %277 = vst.msk [vmem:[#allocation2 + $0x10] sm:$0x3] %vm276, 0.0
      %s278 = scalar_lea.vmem [#allocation2], 408
      %279 = vst.msk [vmem:[%s278] sm:$0xff] %vm273, 0.0
      %280 = vst.msk [vmem:[%s278 + $0x8] sm:$0xff] %vm273, 0.0
      %281 = vst.msk [vmem:[%s278 + $0x10] sm:$0x3] %vm276, 0.0
      %vm282 = vcmask 57344
      %283 = vst.msk [vmem:[#allocation2] sm:$0x1] %vm282, 0.0
      %284 = vst.msk [vmem:[#allocation2 + $0x18] sm:$0x1] %vm282, 0.0
      %285 = vst.msk [vmem:[#allocation2 + $0x30] sm:$0x1] %vm282, 0.0
      %286 = vst.msk [vmem:[#allocation2 + $0x48] sm:$0x1] %vm282, 0.0
      %287 = vst.msk [vmem:[#allocation2 + $0x60] sm:$0x1] %vm282, 0.0
      %288 = vst.msk [vmem:[#allocation2 + $0x78] sm:$0x1] %vm282, 0.0
      %289 = vst.msk [vmem:[#allocation2 + $0x90] sm:$0x1] %vm282, 0.0
      %290 = vst.msk [vmem:[#allocation2 + $0xa8] sm:$0x1] %vm282, 0.0
      %291 = vst.msk [vmem:[#allocation2 + $0xc0] sm:$0x1] %vm282, 0.0
      %292 = vst.msk [vmem:[#allocation2 + $0xd8] sm:$0x1] %vm282, 0.0
      %293 = vst.msk [vmem:[#allocation2 + $0xf0] sm:$0x1] %vm282, 0.0
      %294 = vst.msk [vmem:[#allocation2 + $0x108] sm:$0x1] %vm282, 0.0
      %295 = vst.msk [vmem:[#allocation2 + $0x120] sm:$0x1] %vm282, 0.0
      %296 = vst.msk [vmem:[#allocation2 + $0x138] sm:$0x1] %vm282, 0.0
      %297 = vst.msk [vmem:[#allocation2 + $0x150] sm:$0x1] %vm282, 0.0
      %298 = vst.msk [vmem:[#allocation2 + $0x168] sm:$0x1] %vm282, 0.0
      %299 = vst.msk [vmem:[#allocation2 + $0x180] sm:$0x1] %vm282, 0.0
      %300 = vst.msk [vmem:[#allocation2 + $0x198] sm:$0x1] %vm282, 0.0
      %301 = vst.msk [vmem:[#allocation2 + $0x11] sm:$0x1] %vm282, 0.0
      %302 = vst.msk [vmem:[#allocation2 + $0x29] sm:$0x1] %vm282, 0.0
      %303 = vst.msk [vmem:[#allocation2 + $0x41] sm:$0x1] %vm282, 0.0
      %304 = vst.msk [vmem:[#allocation2 + $0x59] sm:$0x1] %vm282, 0.0
      %305 = vst.msk [vmem:[#allocation2 + $0x71] sm:$0x1] %vm282, 0.0
      %306 = vst.msk [vmem:[#allocation2 + $0x89] sm:$0x1] %vm282, 0.0
      %307 = vst.msk [vmem:[#allocation2 + $0xa1] sm:$0x1] %vm282, 0.0
      %308 = vst.msk [vmem:[#allocation2 + $0xb9] sm:$0x1] %vm282, 0.0
      %309 = vst.msk [vmem:[#allocation2 + $0xd1] sm:$0x1] %vm282, 0.0
      %310 = vst.msk [vmem:[#allocation2 + $0xe9] sm:$0x1] %vm282, 0.0
      %311 = vst.msk [vmem:[#allocation2 + $0x101] sm:$0x1] %vm282, 0.0
      %312 = vst.msk [vmem:[#allocation2 + $0x119] sm:$0x1] %vm282, 0.0
      %313 = vst.msk [vmem:[#allocation2 + $0x131] sm:$0x1] %vm282, 0.0
      %314 = vst.msk [vmem:[#allocation2 + $0x149] sm:$0x1] %vm282, 0.0
      %315 = vst.msk [vmem:[#allocation2 + $0x161] sm:$0x1] %vm282, 0.0
      %316 = vst.msk [vmem:[#allocation2 + $0x179] sm:$0x1] %vm282, 0.0
      %317 = vst.msk [vmem:[#allocation2 + $0x191] sm:$0x1] %vm282, 0.0
      %318 = vst.msk [vmem:[#allocation2 + $0x1a9] sm:$0x1] %vm282, 0.0
      %v319 = vld [vmem:[%s261] sm:$0xff]
      %v320 = vld [vmem:[%s261 + $0x8] sm:$0xff]
      %v321 = vld [vmem:[%s261 + $0x10] sm:$0xff]
      %v322 = vld [vmem:[%s261 + $0x18] sm:$0xff]
      %v323 = vld [vmem:[%s261 + $0x20] sm:$0xff]
      %v324 = vld [vmem:[%s261 + $0x28] sm:$0xff]
      %v325 = vld [vmem:[%s261 + $0x30] sm:$0xff]
      %v326 = vld [vmem:[%s261 + $0x38] sm:$0xff]
      %v327 = vld [vmem:[%s261 + $0x40] sm:$0xff]
      %v328 = vld [vmem:[%s261 + $0x48] sm:$0xff]
      %v329 = vld [vmem:[%s261 + $0x50] sm:$0xff]
      %v330 = vld [vmem:[%s261 + $0x58] sm:$0xff]
      %v331 = vld [vmem:[%s261 + $0x60] sm:$0xff]
      %v332 = vld [vmem:[%s261 + $0x68] sm:$0xff]
      %v333 = vld [vmem:[%s261 + $0x70] sm:$0xff]
      %v334 = vld [vmem:[%s261 + $0x78] sm:$0xff]
      %v335 = vld [vmem:[%s261 + $0x80] sm:$0xff]
      %v336 = vld [vmem:[%s261 + $0x88] sm:$0xff]
      %v337 = vld [vmem:[%s261 + $0x90] sm:$0xff]
      %v338 = vld [vmem:[%s261 + $0x98] sm:$0xff]
      %v339 = vld [vmem:[%s261 + $0xa0] sm:$0xff]
      %v340 = vld [vmem:[%s261 + $0xa8] sm:$0xff]
      %v341 = vld [vmem:[%s261 + $0xb0] sm:$0xff]
      %v342 = vld [vmem:[%s261 + $0xb8] sm:$0xff]
      %v343 = vld [vmem:[%s261 + $0xc0] sm:$0xff]
      %v344 = vld [vmem:[%s261 + $0xc8] sm:$0xff]
      %v345 = vld [vmem:[%s261 + $0xd0] sm:$0xff]
      %v346 = vld [vmem:[%s261 + $0xd8] sm:$0xff]
      %v347 = vld [vmem:[%s261 + $0xe0] sm:$0xff]
      %v348 = vld [vmem:[%s261 + $0xe8] sm:$0xff]
      %v349 = vld [vmem:[%s261 + $0xf0] sm:$0xff]
      %v350 = vld [vmem:[%s261 + $0xf8] sm:$0xff]
      %s351 = scalar_lea.vmem [#allocation2], 24
      %vm352 = vcmask 31744
      %353 = vst.msk [vmem:[%s351 + $0x1] sm:$0xff] %vm352, %v319
      %354 = vst.msk [vmem:[%s351 + $0x9] sm:$0xff] %vm352, %v320
      %355 = vst.msk [vmem:[%s351 + $0x19] sm:$0xff] %vm352, %v321
      %356 = vst.msk [vmem:[%s351 + $0x21] sm:$0xff] %vm352, %v322
      %357 = vst.msk [vmem:[%s351 + $0x31] sm:$0xff] %vm352, %v323
      %358 = vst.msk [vmem:[%s351 + $0x39] sm:$0xff] %vm352, %v324
      %359 = vst.msk [vmem:[%s351 + $0x49] sm:$0xff] %vm352, %v325
      %360 = vst.msk [vmem:[%s351 + $0x51] sm:$0xff] %vm352, %v326
      %361 = vst.msk [vmem:[%s351 + $0x61] sm:$0xff] %vm352, %v327
      %362 = vst.msk [vmem:[%s351 + $0x69] sm:$0xff] %vm352, %v328
      %363 = vst.msk [vmem:[%s351 + $0x79] sm:$0xff] %vm352, %v329
      %364 = vst.msk [vmem:[%s351 + $0x81] sm:$0xff] %vm352, %v330
      %365 = vst.msk [vmem:[%s351 + $0x91] sm:$0xff] %vm352, %v331
      %366 = vst.msk [vmem:[%s351 + $0x99] sm:$0xff] %vm352, %v332
      %367 = vst.msk [vmem:[%s351 + $0xa9] sm:$0xff] %vm352, %v333
      %368 = vst.msk [vmem:[%s351 + $0xb1] sm:$0xff] %vm352, %v334
      %369 = vst.msk [vmem:[%s351 + $0xc1] sm:$0xff] %vm352, %v335
      %370 = vst.msk [vmem:[%s351 + $0xc9] sm:$0xff] %vm352, %v336
      %371 = vst.msk [vmem:[%s351 + $0xd9] sm:$0xff] %vm352, %v337
      %372 = vst.msk [vmem:[%s351 + $0xe1] sm:$0xff] %vm352, %v338
      %373 = vst.msk [vmem:[%s351 + $0xf1] sm:$0xff] %vm352, %v339
      %374 = vst.msk [vmem:[%s351 + $0xf9] sm:$0xff] %vm352, %v340
      %375 = vst.msk [vmem:[%s351 + $0x109] sm:$0xff] %vm352, %v341
      %376 = vst.msk [vmem:[%s351 + $0x111] sm:$0xff] %vm352, %v342
      %377 = vst.msk [vmem:[%s351 + $0x121] sm:$0xff] %vm352, %v343
      %378 = vst.msk [vmem:[%s351 + $0x129] sm:$0xff] %vm352, %v344
      %379 = vst.msk [vmem:[%s351 + $0x139] sm:$0xff] %vm352, %v345
      %380 = vst.msk [vmem:[%s351 + $0x141] sm:$0xff] %vm352, %v346
      %381 = vst.msk [vmem:[%s351 + $0x151] sm:$0xff] %vm352, %v347
      %382 = vst.msk [vmem:[%s351 + $0x159] sm:$0xff] %vm352, %v348
      %383 = vst.msk [vmem:[%s351 + $0x169] sm:$0xff] %vm352, %v349
      %384 = vst.msk [vmem:[%s351 + $0x171] sm:$0xff] %vm352, %v350
      %v385 = vld [vmem:[%s266] sm:$0xff]
      %v386 = vld [vmem:[%s266 + $0x8] sm:$0xff]
      %v387 = vld [vmem:[%s266 + $0x10] sm:$0xff]
      %v388 = vld [vmem:[%s266 + $0x18] sm:$0xff]
      %v389 = vld [vmem:[%s266 + $0x20] sm:$0xff]
      %v390 = vld [vmem:[%s266 + $0x28] sm:$0xff]
      %v391 = vld [vmem:[%s266 + $0x30] sm:$0xff]
      %v392 = vld [vmem:[%s266 + $0x38] sm:$0xff]
      %v393 = vld [vmem:[%s266 + $0x40] sm:$0xff]
      %v394 = vld [vmem:[%s266 + $0x48] sm:$0xff]
      %v395 = vld [vmem:[%s266 + $0x50] sm:$0xff]
      %v396 = vld [vmem:[%s266 + $0x58] sm:$0xff]
      %v397 = vld [vmem:[%s266 + $0x60] sm:$0xff]
      %v398 = vld [vmem:[%s266 + $0x68] sm:$0xff]
      %v399 = vld [vmem:[%s266 + $0x70] sm:$0xff]
      %v400 = vld [vmem:[%s266 + $0x78] sm:$0xff]
      %v401 = vld [vmem:[%s266 + $0x80] sm:$0xff]
      %v402 = vld [vmem:[%s266 + $0x88] sm:$0xff]
      %v403 = vld [vmem:[%s266 + $0x90] sm:$0xff]
      %v404 = vld [vmem:[%s266 + $0x98] sm:$0xff]
      %v405 = vld [vmem:[%s266 + $0xa0] sm:$0xff]
      %v406 = vld [vmem:[%s266 + $0xa8] sm:$0xff]
      %v407 = vld [vmem:[%s266 + $0xb0] sm:$0xff]
      %v408 = vld [vmem:[%s266 + $0xb8] sm:$0xff]
      %v409 = vld [vmem:[%s266 + $0xc0] sm:$0xff]
      %v410 = vld [vmem:[%s266 + $0xc8] sm:$0xff]
      %v411 = vld [vmem:[%s266 + $0xd0] sm:$0xff]
      %v412 = vld [vmem:[%s266 + $0xd8] sm:$0xff]
      %v413 = vld [vmem:[%s266 + $0xe0] sm:$0xff]
      %v414 = vld [vmem:[%s266 + $0xe8] sm:$0xff]
      %v415 = vld [vmem:[%s266 + $0xf0] sm:$0xff]
      %v416 = vld [vmem:[%s266 + $0xf8] sm:$0xff]
      %449 = vrot.lane.b32.xlu0 %v385, 4
      %v450 = vpop.permute.xlu0 %449
      %451 = vrot.lane.b32.xlu0 %v386, 4
      %v452 = vpop.permute.xlu0 %451
      %453 = vrot.lane.b32.xlu0 %v387, 4
      %v454 = vpop.permute.xlu0 %453
      %455 = vrot.lane.b32.xlu0 %v388, 4
      %v456 = vpop.permute.xlu0 %455
      %457 = vrot.lane.b32.xlu0 %v389, 4
      %v458 = vpop.permute.xlu0 %457
      %459 = vrot.lane.b32.xlu0 %v390, 4
      %v460 = vpop.permute.xlu0 %459
      %461 = vrot.lane.b32.xlu0 %v391, 4
      %v462 = vpop.permute.xlu0 %461
      %463 = vrot.lane.b32.xlu0 %v392, 4
      %v464 = vpop.permute.xlu0 %463
      %465 = vrot.lane.b32.xlu0 %v393, 4
      %v466 = vpop.permute.xlu0 %465
      %467 = vrot.lane.b32.xlu0 %v394, 4
      %v468 = vpop.permute.xlu0 %467
      %469 = vrot.lane.b32.xlu0 %v395, 4
      %v470 = vpop.permute.xlu0 %469
      %471 = vrot.lane.b32.xlu0 %v396, 4
      %v472 = vpop.permute.xlu0 %471
      %473 = vrot.lane.b32.xlu0 %v397, 4
      %v474 = vpop.permute.xlu0 %473
      %475 = vrot.lane.b32.xlu0 %v398, 4
      %v476 = vpop.permute.xlu0 %475
      %477 = vrot.lane.b32.xlu0 %v399, 4
      %v478 = vpop.permute.xlu0 %477
      %479 = vrot.lane.b32.xlu0 %v400, 4
      %v480 = vpop.permute.xlu0 %479
      %481 = vrot.lane.b32.xlu0 %v401, 4
      %v482 = vpop.permute.xlu0 %481
      %483 = vrot.lane.b32.xlu0 %v402, 4
      %v484 = vpop.permute.xlu0 %483
      %485 = vrot.lane.b32.xlu0 %v403, 4
      %v486 = vpop.permute.xlu0 %485
      %487 = vrot.lane.b32.xlu0 %v404, 4
      %v488 = vpop.permute.xlu0 %487
      %489 = vrot.lane.b32.xlu0 %v405, 4
      %v490 = vpop.permute.xlu0 %489
      %491 = vrot.lane.b32.xlu0 %v406, 4
      %v492 = vpop.permute.xlu0 %491
      %493 = vrot.lane.b32.xlu0 %v407, 4
      %v494 = vpop.permute.xlu0 %493
      %495 = vrot.lane.b32.xlu0 %v408, 4
      %v496 = vpop.permute.xlu0 %495
      %497 = vrot.lane.b32.xlu0 %v409, 4
      %v498 = vpop.permute.xlu0 %497
      %499 = vrot.lane.b32.xlu0 %v410, 4
      %v500 = vpop.permute.xlu0 %499
      %501 = vrot.lane.b32.xlu0 %v411, 4
      %v502 = vpop.permute.xlu0 %501
      %503 = vrot.lane.b32.xlu0 %v412, 4
      %v504 = vpop.permute.xlu0 %503
      %505 = vrot.lane.b32.xlu0 %v413, 4
      %v506 = vpop.permute.xlu0 %505
      %507 = vrot.lane.b32.xlu0 %v414, 4
      %v508 = vpop.permute.xlu0 %507
      %509 = vrot.lane.b32.xlu0 %v415, 4
      %v510 = vpop.permute.xlu0 %509
      %511 = vrot.lane.b32.xlu0 %v416, 4
      %v512 = vpop.permute.xlu0 %511
      %vm545 = vcmask 64544
      %546 = vst.msk [vmem:[%s351 + $0x1] sm:$0xff] %vm545, %v450
      %547 = vst.msk [vmem:[%s351 + $0x9] sm:$0xff] %vm545, %v452
      %548 = vst.msk [vmem:[%s351 + $0x19] sm:$0xff] %vm545, %v454
      %549 = vst.msk [vmem:[%s351 + $0x21] sm:$0xff] %vm545, %v456
      %550 = vst.msk [vmem:[%s351 + $0x31] sm:$0xff] %vm545, %v458
      %551 = vst.msk [vmem:[%s351 + $0x39] sm:$0xff] %vm545, %v460
      %552 = vst.msk [vmem:[%s351 + $0x49] sm:$0xff] %vm545, %v462
      %553 = vst.msk [vmem:[%s351 + $0x51] sm:$0xff] %vm545, %v464
      %554 = vst.msk [vmem:[%s351 + $0x61] sm:$0xff] %vm545, %v466
      %555 = vst.msk [vmem:[%s351 + $0x69] sm:$0xff] %vm545, %v468
      %556 = vst.msk [vmem:[%s351 + $0x79] sm:$0xff] %vm545, %v470
      %557 = vst.msk [vmem:[%s351 + $0x81] sm:$0xff] %vm545, %v472
      %558 = vst.msk [vmem:[%s351 + $0x91] sm:$0xff] %vm545, %v474
      %559 = vst.msk [vmem:[%s351 + $0x99] sm:$0xff] %vm545, %v476
      %560 = vst.msk [vmem:[%s351 + $0xa9] sm:$0xff] %vm545, %v478
      %561 = vst.msk [vmem:[%s351 + $0xb1] sm:$0xff] %vm545, %v480
      %562 = vst.msk [vmem:[%s351 + $0xc1] sm:$0xff] %vm545, %v482
      %563 = vst.msk [vmem:[%s351 + $0xc9] sm:$0xff] %vm545, %v484
      %564 = vst.msk [vmem:[%s351 + $0xd9] sm:$0xff] %vm545, %v486
      %565 = vst.msk [vmem:[%s351 + $0xe1] sm:$0xff] %vm545, %v488
      %566 = vst.msk [vmem:[%s351 + $0xf1] sm:$0xff] %vm545, %v490
      %567 = vst.msk [vmem:[%s351 + $0xf9] sm:$0xff] %vm545, %v492
      %568 = vst.msk [vmem:[%s351 + $0x109] sm:$0xff] %vm545, %v494
      %569 = vst.msk [vmem:[%s351 + $0x111] sm:$0xff] %vm545, %v496
      %570 = vst.msk [vmem:[%s351 + $0x121] sm:$0xff] %vm545, %v498
      %571 = vst.msk [vmem:[%s351 + $0x129] sm:$0xff] %vm545, %v500
      %572 = vst.msk [vmem:[%s351 + $0x139] sm:$0xff] %vm545, %v502
      %573 = vst.msk [vmem:[%s351 + $0x141] sm:$0xff] %vm545, %v504
      %574 = vst.msk [vmem:[%s351 + $0x151] sm:$0xff] %vm545, %v506
      %575 = vst.msk [vmem:[%s351 + $0x159] sm:$0xff] %vm545, %v508
      %576 = vst.msk [vmem:[%s351 + $0x169] sm:$0xff] %vm545, %v510
      %577 = vst.msk [vmem:[%s351 + $0x171] sm:$0xff] %vm545, %v512
      %v578 = vld [vmem:[%s2] sm:$0xf]
      %v579 = vld [vmem:[%s2 + $0x4] sm:$0xf]
      %v580 = vld [vmem:[%s2 + $0x8] sm:$0xf]
      %v581 = vld [vmem:[%s2 + $0xc] sm:$0xf]
      %v582 = vld [vmem:[%s2 + $0x10] sm:$0xf]
      %v583 = vld [vmem:[%s2 + $0x14] sm:$0xf]
      %v584 = vld [vmem:[%s2 + $0x18] sm:$0xf]
      %v585 = vld [vmem:[%s2 + $0x1c] sm:$0xf]
      %v586 = vld [vmem:[%s2 + $0x20] sm:$0xf]
      %v587 = vld [vmem:[%s4] sm:$0xf]
      %v588 = vld [vmem:[%s3] sm:$0x1]
      %v589 = vld [vmem:[%s5] sm:$0x1]
      %v590 = vld [vmem:[#allocation2] sm:$0xff]
      %v591 = vld [vmem:[#allocation2 + $0x8] sm:$0xff]
      %v592 = vld [vmem:[#allocation2 + $0x18] sm:$0xff]
      %v593 = vld [vmem:[#allocation2 + $0x20] sm:$0xff]
      %v594 = vld [vmem:[#allocation2 + $0x30] sm:$0xff]
      %v595 = vld [vmem:[#allocation2 + $0x38] sm:$0xff]
      %v596 = vld [vmem:[#allocation2 + $0x48] sm:$0xff]
      %v597 = vld [vmem:[#allocation2 + $0x50] sm:$0xff]
      %v598 = vld [vmem:[#allocation2 + $0x60] sm:$0xff]
      %v599 = vld [vmem:[#allocation2 + $0x68] sm:$0xff]
      %v600 = vld [vmem:[#allocation2 + $0x78] sm:$0xff]
      %v601 = vld [vmem:[#allocation2 + $0x80] sm:$0xff]
      %v602 = vld [vmem:[#allocation2 + $0x90] sm:$0xff]
      %v603 = vld [vmem:[#allocation2 + $0x98] sm:$0xff]
      %v604 = vld [vmem:[#allocation2 + $0xa8] sm:$0xff]
      %v605 = vld [vmem:[#allocation2 + $0xb0] sm:$0xff]
      %606 = vst.msk [vmem:[#allocation3] sm:$0xff] %vm273, %v590
      %607 = vst.msk [vmem:[#allocation3 + $0x8] sm:$0xff] %vm273, %v591
      %608 = vst.msk [vmem:[#allocation3 + $0x10] sm:$0xff] %vm273, %v592
      %609 = vst.msk [vmem:[#allocation3 + $0x18] sm:$0xff] %vm273, %v593
      %610 = vst.msk [vmem:[#allocation3 + $0x20] sm:$0xff] %vm273, %v594
      %611 = vst.msk [vmem:[#allocation3 + $0x28] sm:$0xff] %vm273, %v595
      %612 = vst.msk [vmem:[#allocation3 + $0x30] sm:$0xff] %vm273, %v596
      %613 = vst.msk [vmem:[#allocation3 + $0x38] sm:$0xff] %vm273, %v597
      %614 = vst.msk [vmem:[#allocation3 + $0x40] sm:$0xff] %vm273, %v598
      %615 = vst.msk [vmem:[#allocation3 + $0x48] sm:$0xff] %vm273, %v599
      %616 = vst.msk [vmem:[#allocation3 + $0x50] sm:$0xff] %vm273, %v600
      %617 = vst.msk [vmem:[#allocation3 + $0x58] sm:$0xff] %vm273, %v601
      %618 = vst.msk [vmem:[#allocation3 + $0x60] sm:$0xff] %vm273, %v602
      %619 = vst.msk [vmem:[#allocation3 + $0x68] sm:$0xff] %vm273, %v603
      %620 = vst.msk [vmem:[#allocation3 + $0x70] sm:$0xff] %vm273, %v604
      %621 = vst.msk [vmem:[#allocation3 + $0x78] sm:$0xff] %vm273, %v605
      %v622 = vld [vmem:[#allocation2 + $0x1] sm:$0xff]
      %v623 = vld [vmem:[#allocation2 + $0x9] sm:$0xff]
      %v624 = vld [vmem:[#allocation2 + $0x19] sm:$0xff]
      %v625 = vld [vmem:[#allocation2 + $0x21] sm:$0xff]
      %v626 = vld [vmem:[#allocation2 + $0x31] sm:$0xff]
      %v627 = vld [vmem:[#allocation2 + $0x39] sm:$0xff]
      %v628 = vld [vmem:[#allocation2 + $0x49] sm:$0xff]
      %v629 = vld [vmem:[#allocation2 + $0x51] sm:$0xff]
      %v630 = vld [vmem:[#allocation2 + $0x61] sm:$0xff]
      %v631 = vld [vmem:[#allocation2 + $0x69] sm:$0xff]
      %v632 = vld [vmem:[#allocation2 + $0x79] sm:$0xff]
      %v633 = vld [vmem:[#allocation2 + $0x81] sm:$0xff]
      %v634 = vld [vmem:[#allocation2 + $0x91] sm:$0xff]
      %v635 = vld [vmem:[#allocation2 + $0x99] sm:$0xff]
      %v636 = vld [vmem:[#allocation2 + $0xa9] sm:$0xff]
      %v637 = vld [vmem:[#allocation2 + $0xb1] sm:$0xff]
      %654 = vrot.lane.b32.xlu0 %v622, 8
      %v655 = vpop.permute.xlu0 %654
      %656 = vrot.lane.b32.xlu0 %v623, 8
      %v657 = vpop.permute.xlu0 %656
      %658 = vrot.lane.b32.xlu0 %v624, 8
      %v659 = vpop.permute.xlu0 %658
      %660 = vrot.lane.b32.xlu0 %v625, 8
      %v661 = vpop.permute.xlu0 %660
      %662 = vrot.lane.b32.xlu0 %v626, 8
      %v663 = vpop.permute.xlu0 %662
      %664 = vrot.lane.b32.xlu0 %v627, 8
      %v665 = vpop.permute.xlu0 %664
      %666 = vrot.lane.b32.xlu0 %v628, 8
      %v667 = vpop.permute.xlu0 %666
      %668 = vrot.lane.b32.xlu0 %v629, 8
      %v669 = vpop.permute.xlu0 %668
      %670 = vrot.lane.b32.xlu0 %v630, 8
      %v671 = vpop.permute.xlu0 %670
      %672 = vrot.lane.b32.xlu0 %v631, 8
      %v673 = vpop.permute.xlu0 %672
      %674 = vrot.lane.b32.xlu0 %v632, 8
      %v675 = vpop.permute.xlu0 %674
      %676 = vrot.lane.b32.xlu0 %v633, 8
      %v677 = vpop.permute.xlu0 %676
      %678 = vrot.lane.b32.xlu0 %v634, 8
      %v679 = vpop.permute.xlu0 %678
      %680 = vrot.lane.b32.xlu0 %v635, 8
      %v681 = vpop.permute.xlu0 %680
      %682 = vrot.lane.b32.xlu0 %v636, 8
      %v683 = vpop.permute.xlu0 %682
      %684 = vrot.lane.b32.xlu0 %v637, 8
      %v685 = vpop.permute.xlu0 %684
      %vm702 = vcmask 130112
      %703 = vst.msk [vmem:[#allocation3] sm:$0xff] %vm702, %v655
      %704 = vst.msk [vmem:[#allocation3 + $0x8] sm:$0xff] %vm702, %v657
      %705 = vst.msk [vmem:[#allocation3 + $0x10] sm:$0xff] %vm702, %v659
      %706 = vst.msk [vmem:[#allocation3 + $0x18] sm:$0xff] %vm702, %v661
      %707 = vst.msk [vmem:[#allocation3 + $0x20] sm:$0xff] %vm702, %v663
      %708 = vst.msk [vmem:[#allocation3 + $0x28] sm:$0xff] %vm702, %v665
      %709 = vst.msk [vmem:[#allocation3 + $0x30] sm:$0xff] %vm702, %v667
      %710 = vst.msk [vmem:[#allocation3 + $0x38] sm:$0xff] %vm702, %v669
      %711 = vst.msk [vmem:[#allocation3 + $0x40] sm:$0xff] %vm702, %v671
      %712 = vst.msk [vmem:[#allocation3 + $0x48] sm:$0xff] %vm702, %v673
      %713 = vst.msk [vmem:[#allocation3 + $0x50] sm:$0xff] %vm702, %v675
      %714 = vst.msk [vmem:[#allocation3 + $0x58] sm:$0xff] %vm702, %v677
      %715 = vst.msk [vmem:[#allocation3 + $0x60] sm:$0xff] %vm702, %v679
      %716 = vst.msk [vmem:[#allocation3 + $0x68] sm:$0xff] %vm702, %v681
      %717 = vst.msk [vmem:[#allocation3 + $0x70] sm:$0xff] %vm702, %v683
      %718 = vst.msk [vmem:[#allocation3 + $0x78] sm:$0xff] %vm702, %v685
      %v719 = vld [vmem:[#allocation2 + $0x2] sm:$0xff]
      %v720 = vld [vmem:[#allocation2 + $0xa] sm:$0xff]
      %v721 = vld [vmem:[#allocation2 + $0x1a] sm:$0xff]
      %v722 = vld [vmem:[#allocation2 + $0x22] sm:$0xff]
      %v723 = vld [vmem:[#allocation2 + $0x32] sm:$0xff]
      %v724 = vld [vmem:[#allocation2 + $0x3a] sm:$0xff]
      %v725 = vld [vmem:[#allocation2 + $0x4a] sm:$0xff]
      %v726 = vld [vmem:[#allocation2 + $0x52] sm:$0xff]
      %v727 = vld [vmem:[#allocation2 + $0x62] sm:$0xff]
      %v728 = vld [vmem:[#allocation2 + $0x6a] sm:$0xff]
      %v729 = vld [vmem:[#allocation2 + $0x7a] sm:$0xff]
      %v730 = vld [vmem:[#allocation2 + $0x82] sm:$0xff]
      %v731 = vld [vmem:[#allocation2 + $0x92] sm:$0xff]
      %v732 = vld [vmem:[#allocation2 + $0x9a] sm:$0xff]
      %v733 = vld [vmem:[#allocation2 + $0xaa] sm:$0xff]
      %v734 = vld [vmem:[#allocation2 + $0xb2] sm:$0xff]
      %751 = vrot.lane.b32.xlu0 %v719, 16
      %v752 = vpop.permute.xlu0 %751
      %753 = vrot.lane.b32.xlu0 %v720, 16
      %v754 = vpop.permute.xlu0 %753
      %755 = vrot.lane.b32.xlu0 %v721, 16
      %v756 = vpop.permute.xlu0 %755
      %757 = vrot.lane.b32.xlu0 %v722, 16
      %v758 = vpop.permute.xlu0 %757
      %759 = vrot.lane.b32.xlu0 %v723, 16
      %v760 = vpop.permute.xlu0 %759
      %761 = vrot.lane.b32.xlu0 %v724, 16
      %v762 = vpop.permute.xlu0 %761
      %763 = vrot.lane.b32.xlu0 %v725, 16
      %v764 = vpop.permute.xlu0 %763
      %765 = vrot.lane.b32.xlu0 %v726, 16
      %v766 = vpop.permute.xlu0 %765
      %767 = vrot.lane.b32.xlu0 %v727, 16
      %v768 = vpop.permute.xlu0 %767
      %769 = vrot.lane.b32.xlu0 %v728, 16
      %v770 = vpop.permute.xlu0 %769
      %771 = vrot.lane.b32.xlu0 %v729, 16
      %v772 = vpop.permute.xlu0 %771
      %773 = vrot.lane.b32.xlu0 %v730, 16
      %v774 = vpop.permute.xlu0 %773
      %775 = vrot.lane.b32.xlu0 %v731, 16
      %v776 = vpop.permute.xlu0 %775
      %777 = vrot.lane.b32.xlu0 %v732, 16
      %v778 = vpop.permute.xlu0 %777
      %779 = vrot.lane.b32.xlu0 %v733, 16
      %v780 = vpop.permute.xlu0 %779
      %781 = vrot.lane.b32.xlu0 %v734, 16
      %v782 = vpop.permute.xlu0 %781
      %vm799 = vcmask 195712
      %800 = vst.msk [vmem:[#allocation3] sm:$0xff] %vm799, %v752
      %801 = vst.msk [vmem:[#allocation3 + $0x8] sm:$0xff] %vm799, %v754
      %802 = vst.msk [vmem:[#allocation3 + $0x10] sm:$0xff] %vm799, %v756
      %803 = vst.msk [vmem:[#allocation3 + $0x18] sm:$0xff] %vm799, %v758
      %804 = vst.msk [vmem:[#allocation3 + $0x20] sm:$0xff] %vm799, %v760
      %805 = vst.msk [vmem:[#allocation3 + $0x28] sm:$0xff] %vm799, %v762
      %806 = vst.msk [vmem:[#allocation3 + $0x30] sm:$0xff] %vm799, %v764
      %807 = vst.msk [vmem:[#allocation3 + $0x38] sm:$0xff] %vm799, %v766
      %808 = vst.msk [vmem:[#allocation3 + $0x40] sm:$0xff] %vm799, %v768
      %809 = vst.msk [vmem:[#allocation3 + $0x48] sm:$0xff] %vm799, %v770
      %810 = vst.msk [vmem:[#allocation3 + $0x50] sm:$0xff] %vm799, %v772
      %811 = vst.msk [vmem:[#allocation3 + $0x58] sm:$0xff] %vm799, %v774
      %812 = vst.msk [vmem:[#allocation3 + $0x60] sm:$0xff] %vm799, %v776
      %813 = vst.msk [vmem:[#allocation3 + $0x68] sm:$0xff] %vm799, %v778
      %814 = vst.msk [vmem:[#allocation3 + $0x70] sm:$0xff] %vm799, %v780
      %815 = vst.msk [vmem:[#allocation3 + $0x78] sm:$0xff] %vm799, %v782
      %v816 = vld [vmem:[%s351] sm:$0xff]
      %v817 = vld [vmem:[%s351 + $0x8] sm:$0xff]
      %v818 = vld [vmem:[%s351 + $0x18] sm:$0xff]
      %v819 = vld [vmem:[%s351 + $0x20] sm:$0xff]
      %v820 = vld [vmem:[%s351 + $0x30] sm:$0xff]
      %v821 = vld [vmem:[%s351 + $0x38] sm:$0xff]
      %v822 = vld [vmem:[%s351 + $0x48] sm:$0xff]
      %v823 = vld [vmem:[%s351 + $0x50] sm:$0xff]
      %v824 = vld [vmem:[%s351 + $0x60] sm:$0xff]
      %v825 = vld [vmem:[%s351 + $0x68] sm:$0xff]
      %v826 = vld [vmem:[%s351 + $0x78] sm:$0xff]
      %v827 = vld [vmem:[%s351 + $0x80] sm:$0xff]
      %v828 = vld [vmem:[%s351 + $0x90] sm:$0xff]
      %v829 = vld [vmem:[%s351 + $0x98] sm:$0xff]
      %v830 = vld [vmem:[%s351 + $0xa8] sm:$0xff]
      %v831 = vld [vmem:[%s351 + $0xb0] sm:$0xff]
      %848 = vrot.lane.b32.xlu0 %v816, 24
      %v849 = vpop.permute.xlu0 %848
      %850 = vrot.lane.b32.xlu0 %v817, 24
      %v851 = vpop.permute.xlu0 %850
      %852 = vrot.lane.b32.xlu0 %v818, 24
      %v853 = vpop.permute.xlu0 %852
      %854 = vrot.lane.b32.xlu0 %v819, 24
      %v855 = vpop.permute.xlu0 %854
      %856 = vrot.lane.b32.xlu0 %v820, 24
      %v857 = vpop.permute.xlu0 %856
      %858 = vrot.lane.b32.xlu0 %v821, 24
      %v859 = vpop.permute.xlu0 %858
      %860 = vrot.lane.b32.xlu0 %v822, 24
      %v861 = vpop.permute.xlu0 %860
      %862 = vrot.lane.b32.xlu0 %v823, 24
      %v863 = vpop.permute.xlu0 %862
      %864 = vrot.lane.b32.xlu0 %v824, 24
      %v865 = vpop.permute.xlu0 %864
      %866 = vrot.lane.b32.xlu0 %v825, 24
      %v867 = vpop.permute.xlu0 %866
      %868 = vrot.lane.b32.xlu0 %v826, 24
      %v869 = vpop.permute.xlu0 %868
      %870 = vrot.lane.b32.xlu0 %v827, 24
      %v871 = vpop.permute.xlu0 %870
      %872 = vrot.lane.b32.xlu0 %v828, 24
      %v873 = vpop.permute.xlu0 %872
      %874 = vrot.lane.b32.xlu0 %v829, 24
      %v875 = vpop.permute.xlu0 %874
      %876 = vrot.lane.b32.xlu0 %v830, 24
      %v877 = vpop.permute.xlu0 %876
      %878 = vrot.lane.b32.xlu0 %v831, 24
      %v879 = vpop.permute.xlu0 %878
      %vm896 = vcmask 261312
      %897 = vst.msk [vmem:[#allocation3] sm:$0xff] %vm896, %v849
      %898 = vst.msk [vmem:[#allocation3 + $0x8] sm:$0xff] %vm896, %v851
      %899 = vst.msk [vmem:[#allocation3 + $0x10] sm:$0xff] %vm896, %v853
      %900 = vst.msk [vmem:[#allocation3 + $0x18] sm:$0xff] %vm896, %v855
      %901 = vst.msk [vmem:[#allocation3 + $0x20] sm:$0xff] %vm896, %v857
      %902 = vst.msk [vmem:[#allocation3 + $0x28] sm:$0xff] %vm896, %v859
      %903 = vst.msk [vmem:[#allocation3 + $0x30] sm:$0xff] %vm896, %v861
      %904 = vst.msk [vmem:[#allocation3 + $0x38] sm:$0xff] %vm896, %v863
      %905 = vst.msk [vmem:[#allocation3 + $0x40] sm:$0xff] %vm896, %v865
      %906 = vst.msk [vmem:[#allocation3 + $0x48] sm:$0xff] %vm896, %v867
      %907 = vst.msk [vmem:[#allocation3 + $0x50] sm:$0xff] %vm896, %v869
      %908 = vst.msk [vmem:[#allocation3 + $0x58] sm:$0xff] %vm896, %v871
      %909 = vst.msk [vmem:[#allocation3 + $0x60] sm:$0xff] %vm896, %v873
      %910 = vst.msk [vmem:[#allocation3 + $0x68] sm:$0xff] %vm896, %v875
      %911 = vst.msk [vmem:[#allocation3 + $0x70] sm:$0xff] %vm896, %v877
      %912 = vst.msk [vmem:[#allocation3 + $0x78] sm:$0xff] %vm896, %v879
      %v913 = vld [vmem:[%s351 + $0x1] sm:$0xff]
      %v914 = vld [vmem:[%s351 + $0x9] sm:$0xff]
      %v915 = vld [vmem:[%s351 + $0x19] sm:$0xff]
      %v916 = vld [vmem:[%s351 + $0x21] sm:$0xff]
      %v917 = vld [vmem:[%s351 + $0x31] sm:$0xff]
      %v918 = vld [vmem:[%s351 + $0x39] sm:$0xff]
      %v919 = vld [vmem:[%s351 + $0x49] sm:$0xff]
      %v920 = vld [vmem:[%s351 + $0x51] sm:$0xff]
      %v921 = vld [vmem:[%s351 + $0x61] sm:$0xff]
      %v922 = vld [vmem:[%s351 + $0x69] sm:$0xff]
      %v923 = vld [vmem:[%s351 + $0x79] sm:$0xff]
      %v924 = vld [vmem:[%s351 + $0x81] sm:$0xff]
      %v925 = vld [vmem:[%s351 + $0x91] sm:$0xff]
      %v926 = vld [vmem:[%s351 + $0x99] sm:$0xff]
      %v927 = vld [vmem:[%s351 + $0xa9] sm:$0xff]
      %v928 = vld [vmem:[%s351 + $0xb1] sm:$0xff]
      %945 = vrot.lane.b32.xlu0 %v913, 32
      %v946 = vpop.permute.xlu0 %945
      %947 = vrot.lane.b32.xlu0 %v914, 32
      %v948 = vpop.permute.xlu0 %947
      %949 = vrot.lane.b32.xlu0 %v915, 32
      %v950 = vpop.permute.xlu0 %949
      %951 = vrot.lane.b32.xlu0 %v916, 32
      %v952 = vpop.permute.xlu0 %951
      %953 = vrot.lane.b32.xlu0 %v917, 32
      %v954 = vpop.permute.xlu0 %953
      %955 = vrot.lane.b32.xlu0 %v918, 32
      %v956 = vpop.permute.xlu0 %955
      %957 = vrot.lane.b32.xlu0 %v919, 32
      %v958 = vpop.permute.xlu0 %957
      %959 = vrot.lane.b32.xlu0 %v920, 32
      %v960 = vpop.permute.xlu0 %959
      %961 = vrot.lane.b32.xlu0 %v921, 32
      %v962 = vpop.permute.xlu0 %961
      %963 = vrot.lane.b32.xlu0 %v922, 32
      %v964 = vpop.permute.xlu0 %963
      %965 = vrot.lane.b32.xlu0 %v923, 32
      %v966 = vpop.permute.xlu0 %965
      %967 = vrot.lane.b32.xlu0 %v924, 32
      %v968 = vpop.permute.xlu0 %967
      %969 = vrot.lane.b32.xlu0 %v925, 32
      %v970 = vpop.permute.xlu0 %969
      %971 = vrot.lane.b32.xlu0 %v926, 32
      %v972 = vpop.permute.xlu0 %971
      %973 = vrot.lane.b32.xlu0 %v927, 32
      %v974 = vpop.permute.xlu0 %973
      %975 = vrot.lane.b32.xlu0 %v928, 32
      %v976 = vpop.permute.xlu0 %975
      %vm993 = vcmask 326912
      %994 = vst.msk [vmem:[#allocation3] sm:$0xff] %vm993, %v946
      %995 = vst.msk [vmem:[#allocation3 + $0x8] sm:$0xff] %vm993, %v948
      %996 = vst.msk [vmem:[#allocation3 + $0x10] sm:$0xff] %vm993, %v950
      %997 = vst.msk [vmem:[#allocation3 + $0x18] sm:$0xff] %vm993, %v952
      %998 = vst.msk [vmem:[#allocation3 + $0x20] sm:$0xff] %vm993, %v954
      %999 = vst.msk [vmem:[#allocation3 + $0x28] sm:$0xff] %vm993, %v956
      %1000 = vst.msk [vmem:[#allocation3 + $0x30] sm:$0xff] %vm993, %v958
      %1001 = vst.msk [vmem:[#allocation3 + $0x38] sm:$0xff] %vm993, %v960
      %1002 = vst.msk [vmem:[#allocation3 + $0x40] sm:$0xff] %vm993, %v962
      %1003 = vst.msk [vmem:[#allocation3 + $0x48] sm:$0xff] %vm993, %v964
      %1004 = vst.msk [vmem:[#allocation3 + $0x50] sm:$0xff] %vm993, %v966
      %1005 = vst.msk [vmem:[#allocation3 + $0x58] sm:$0xff] %vm993, %v968
      %1006 = vst.msk [vmem:[#allocation3 + $0x60] sm:$0xff] %vm993, %v970
      %1007 = vst.msk [vmem:[#allocation3 + $0x68] sm:$0xff] %vm993, %v972
      %1008 = vst.msk [vmem:[#allocation3 + $0x70] sm:$0xff] %vm993, %v974
      %1009 = vst.msk [vmem:[#allocation3 + $0x78] sm:$0xff] %vm993, %v976
      %v1010 = vld [vmem:[%s351 + $0x2] sm:$0xff]
      %v1011 = vld [vmem:[%s351 + $0xa] sm:$0xff]
      %v1012 = vld [vmem:[%s351 + $0x1a] sm:$0xff]
      %v1013 = vld [vmem:[%s351 + $0x22] sm:$0xff]
      %v1014 = vld [vmem:[%s351 + $0x32] sm:$0xff]
      %v1015 = vld [vmem:[%s351 + $0x3a] sm:$0xff]
      %v1016 = vld [vmem:[%s351 + $0x4a] sm:$0xff]
      %v1017 = vld [vmem:[%s351 + $0x52] sm:$0xff]
      %v1018 = vld [vmem:[%s351 + $0x62] sm:$0xff]
      %v1019 = vld [vmem:[%s351 + $0x6a] sm:$0xff]
      %v1020 = vld [vmem:[%s351 + $0x7a] sm:$0xff]
      %v1021 = vld [vmem:[%s351 + $0x82] sm:$0xff]
      %v1022 = vld [vmem:[%s351 + $0x92] sm:$0xff]
      %v1023 = vld [vmem:[%s351 + $0x9a] sm:$0xff]
      %v1024 = vld [vmem:[%s351 + $0xaa] sm:$0xff]
      %v1025 = vld [vmem:[%s351 + $0xb2] sm:$0xff]
      %1042 = vrot.lane.b32.xlu0 %v1010, 40
      %v1043 = vpop.permute.xlu0 %1042
      %1044 = vrot.lane.b32.xlu0 %v1011, 40
      %v1045 = vpop.permute.xlu0 %1044
      %1046 = vrot.lane.b32.xlu0 %v1012, 40
      %v1047 = vpop.permute.xlu0 %1046
      %1048 = vrot.lane.b32.xlu0 %v1013, 40
      %v1049 = vpop.permute.xlu0 %1048
      %1050 = vrot.lane.b32.xlu0 %v1014, 40
      %v1051 = vpop.permute.xlu0 %1050
      %1052 = vrot.lane.b32.xlu0 %v1015, 40
      %v1053 = vpop.permute.xlu0 %1052
      %1054 = vrot.lane.b32.xlu0 %v1016, 40
      %v1055 = vpop.permute.xlu0 %1054
      %1056 = vrot.lane.b32.xlu0 %v1017, 40
      %v1057 = vpop.permute.xlu0 %1056
      %1058 = vrot.lane.b32.xlu0 %v1018, 40
      %v1059 = vpop.permute.xlu0 %1058
      %1060 = vrot.lane.b32.xlu0 %v1019, 40
      %v1061 = vpop.permute.xlu0 %1060
      %1062 = vrot.lane.b32.xlu0 %v1020, 40
      %v1063 = vpop.permute.xlu0 %1062
      %1064 = vrot.lane.b32.xlu0 %v1021, 40
      %v1065 = vpop.permute.xlu0 %1064
      %1066 = vrot.lane.b32.xlu0 %v1022, 40
      %v1067 = vpop.permute.xlu0 %1066
      %1068 = vrot.lane.b32.xlu0 %v1023, 40
      %v1069 = vpop.permute.xlu0 %1068
      %1070 = vrot.lane.b32.xlu0 %v1024, 40
      %v1071 = vpop.permute.xlu0 %1070
      %1072 = vrot.lane.b32.xlu0 %v1025, 40
      %v1073 = vpop.permute.xlu0 %1072
      %vm1090 = vcmask 392512
      %1091 = vst.msk [vmem:[#allocation3] sm:$0xff] %vm1090, %v1043
      %1092 = vst.msk [vmem:[#allocation3 + $0x8] sm:$0xff] %vm1090, %v1045
      %1093 = vst.msk [vmem:[#allocation3 + $0x10] sm:$0xff] %vm1090, %v1047
      %1094 = vst.msk [vmem:[#allocation3 + $0x18] sm:$0xff] %vm1090, %v1049
      %1095 = vst.msk [vmem:[#allocation3 + $0x20] sm:$0xff] %vm1090, %v1051
      %1096 = vst.msk [vmem:[#allocation3 + $0x28] sm:$0xff] %vm1090, %v1053
      %1097 = vst.msk [vmem:[#allocation3 + $0x30] sm:$0xff] %vm1090, %v1055
      %1098 = vst.msk [vmem:[#allocation3 + $0x38] sm:$0xff] %vm1090, %v1057
      %1099 = vst.msk [vmem:[#allocation3 + $0x40] sm:$0xff] %vm1090, %v1059
      %1100 = vst.msk [vmem:[#allocation3 + $0x48] sm:$0xff] %vm1090, %v1061
      %1101 = vst.msk [vmem:[#allocation3 + $0x50] sm:$0xff] %vm1090, %v1063
      %1102 = vst.msk [vmem:[#allocation3 + $0x58] sm:$0xff] %vm1090, %v1065
      %1103 = vst.msk [vmem:[#allocation3 + $0x60] sm:$0xff] %vm1090, %v1067
      %1104 = vst.msk [vmem:[#allocation3 + $0x68] sm:$0xff] %vm1090, %v1069
      %1105 = vst.msk [vmem:[#allocation3 + $0x70] sm:$0xff] %vm1090, %v1071
      %1106 = vst.msk [vmem:[#allocation3 + $0x78] sm:$0xff] %vm1090, %v1073
      %s1107 = scalar_lea.vmem [#allocation2], 48
      %v1108 = vld [vmem:[%s1107] sm:$0xff]
      %v1109 = vld [vmem:[%s1107 + $0x8] sm:$0xff]
      %v1110 = vld [vmem:[%s1107 + $0x18] sm:$0xff]
      %v1111 = vld [vmem:[%s1107 + $0x20] sm:$0xff]
      %v1112 = vld [vmem:[%s1107 + $0x30] sm:$0xff]
      %v1113 = vld [vmem:[%s1107 + $0x38] sm:$0xff]
      %v1114 = vld [vmem:[%s1107 + $0x48] sm:$0xff]
      %v1115 = vld [vmem:[%s1107 + $0x50] sm:$0xff]
      %v1116 = vld [vmem:[%s1107 + $0x60] sm:$0xff]
      %v1117 = vld [vmem:[%s1107 + $0x68] sm:$0xff]
      %v1118 = vld [vmem:[%s1107 + $0x78] sm:$0xff]
      %v1119 = vld [vmem:[%s1107 + $0x80] sm:$0xff]
      %v1120 = vld [vmem:[%s1107 + $0x90] sm:$0xff]
      %v1121 = vld [vmem:[%s1107 + $0x98] sm:$0xff]
      %v1122 = vld [vmem:[%s1107 + $0xa8] sm:$0xff]
      %v1123 = vld [vmem:[%s1107 + $0xb0] sm:$0xff]
      %1140 = vrot.lane.b32.xlu0 %v1108, 48
      %v1141 = vpop.permute.xlu0 %1140
      %1142 = vrot.lane.b32.xlu0 %v1109, 48
      %v1143 = vpop.permute.xlu0 %1142
      %1144 = vrot.lane.b32.xlu0 %v1110, 48
      %v1145 = vpop.permute.xlu0 %1144
      %1146 = vrot.lane.b32.xlu0 %v1111, 48
      %v1147 = vpop.permute.xlu0 %1146
      %1148 = vrot.lane.b32.xlu0 %v1112, 48
      %v1149 = vpop.permute.xlu0 %1148
      %1150 = vrot.lane.b32.xlu0 %v1113, 48
      %v1151 = vpop.permute.xlu0 %1150
      %1152 = vrot.lane.b32.xlu0 %v1114, 48
      %v1153 = vpop.permute.xlu0 %1152
      %1154 = vrot.lane.b32.xlu0 %v1115, 48
      %v1155 = vpop.permute.xlu0 %1154
      %1156 = vrot.lane.b32.xlu0 %v1116, 48
      %v1157 = vpop.permute.xlu0 %1156
      %1158 = vrot.lane.b32.xlu0 %v1117, 48
      %v1159 = vpop.permute.xlu0 %1158
      %1160 = vrot.lane.b32.xlu0 %v1118, 48
      %v1161 = vpop.permute.xlu0 %1160
      %1162 = vrot.lane.b32.xlu0 %v1119, 48
      %v1163 = vpop.permute.xlu0 %1162
      %1164 = vrot.lane.b32.xlu0 %v1120, 48
      %v1165 = vpop.permute.xlu0 %1164
      %1166 = vrot.lane.b32.xlu0 %v1121, 48
      %v1167 = vpop.permute.xlu0 %1166
      %1168 = vrot.lane.b32.xlu0 %v1122, 48
      %v1169 = vpop.permute.xlu0 %1168
      %1170 = vrot.lane.b32.xlu0 %v1123, 48
      %v1171 = vpop.permute.xlu0 %1170
      %vm1188 = vcmask 458112
      %1189 = vst.msk [vmem:[#allocation3] sm:$0xff] %vm1188, %v1141
      %1190 = vst.msk [vmem:[#allocation3 + $0x8] sm:$0xff] %vm1188, %v1143
      %1191 = vst.msk [vmem:[#allocation3 + $0x10] sm:$0xff] %vm1188, %v1145
      %1192 = vst.msk [vmem:[#allocation3 + $0x18] sm:$0xff] %vm1188, %v1147
      %1193 = vst.msk [vmem:[#allocation3 + $0x20] sm:$0xff] %vm1188, %v1149
      %1194 = vst.msk [vmem:[#allocation3 + $0x28] sm:$0xff] %vm1188, %v1151
      %1195 = vst.msk [vmem:[#allocation3 + $0x30] sm:$0xff] %vm1188, %v1153
      %1196 = vst.msk [vmem:[#allocation3 + $0x38] sm:$0xff] %vm1188, %v1155
      %1197 = vst.msk [vmem:[#allocation3 + $0x40] sm:$0xff] %vm1188, %v1157
      %1198 = vst.msk [vmem:[#allocation3 + $0x48] sm:$0xff] %vm1188, %v1159
      %1199 = vst.msk [vmem:[#allocation3 + $0x50] sm:$0xff] %vm1188, %v1161
      %1200 = vst.msk [vmem:[#allocation3 + $0x58] sm:$0xff] %vm1188, %v1163
      %1201 = vst.msk [vmem:[#allocation3 + $0x60] sm:$0xff] %vm1188, %v1165
      %1202 = vst.msk [vmem:[#allocation3 + $0x68] sm:$0xff] %vm1188, %v1167
      %1203 = vst.msk [vmem:[#allocation3 + $0x70] sm:$0xff] %vm1188, %v1169
      %1204 = vst.msk [vmem:[#allocation3 + $0x78] sm:$0xff] %vm1188, %v1171
      %v1205 = vld [vmem:[%s1107 + $0x1] sm:$0xff]
      %v1206 = vld [vmem:[%s1107 + $0x9] sm:$0xff]
      %v1207 = vld [vmem:[%s1107 + $0x19] sm:$0xff]
      %v1208 = vld [vmem:[%s1107 + $0x21] sm:$0xff]
      %v1209 = vld [vmem:[%s1107 + $0x31] sm:$0xff]
      %v1210 = vld [vmem:[%s1107 + $0x39] sm:$0xff]
      %v1211 = vld [vmem:[%s1107 + $0x49] sm:$0xff]
      %v1212 = vld [vmem:[%s1107 + $0x51] sm:$0xff]
      %v1213 = vld [vmem:[%s1107 + $0x61] sm:$0xff]
      %v1214 = vld [vmem:[%s1107 + $0x69] sm:$0xff]
      %v1215 = vld [vmem:[%s1107 + $0x79] sm:$0xff]
      %v1216 = vld [vmem:[%s1107 + $0x81] sm:$0xff]
      %v1217 = vld [vmem:[%s1107 + $0x91] sm:$0xff]
      %v1218 = vld [vmem:[%s1107 + $0x99] sm:$0xff]
      %v1219 = vld [vmem:[%s1107 + $0xa9] sm:$0xff]
      %v1220 = vld [vmem:[%s1107 + $0xb1] sm:$0xff]
      %1237 = vrot.lane.b32.xlu0 %v1205, 56
      %v1238 = vpop.permute.xlu0 %1237
      %1239 = vrot.lane.b32.xlu0 %v1206, 56
      %v1240 = vpop.permute.xlu0 %1239
      %1241 = vrot.lane.b32.xlu0 %v1207, 56
      %v1242 = vpop.permute.xlu0 %1241
      %1243 = vrot.lane.b32.xlu0 %v1208, 56
      %v1244 = vpop.permute.xlu0 %1243
      %1245 = vrot.lane.b32.xlu0 %v1209, 56
      %v1246 = vpop.permute.xlu0 %1245
      %1247 = vrot.lane.b32.xlu0 %v1210, 56
      %v1248 = vpop.permute.xlu0 %1247
      %1249 = vrot.lane.b32.xlu0 %v1211, 56
      %v1250 = vpop.permute.xlu0 %1249
      %1251 = vrot.lane.b32.xlu0 %v1212, 56
      %v1252 = vpop.permute.xlu0 %1251
      %1253 = vrot.lane.b32.xlu0 %v1213, 56
      %v1254 = vpop.permute.xlu0 %1253
      %1255 = vrot.lane.b32.xlu0 %v1214, 56
      %v1256 = vpop.permute.xlu0 %1255
      %1257 = vrot.lane.b32.xlu0 %v1215, 56
      %v1258 = vpop.permute.xlu0 %1257
      %1259 = vrot.lane.b32.xlu0 %v1216, 56
      %v1260 = vpop.permute.xlu0 %1259
      %1261 = vrot.lane.b32.xlu0 %v1217, 56
      %v1262 = vpop.permute.xlu0 %1261
      %1263 = vrot.lane.b32.xlu0 %v1218, 56
      %v1264 = vpop.permute.xlu0 %1263
      %1265 = vrot.lane.b32.xlu0 %v1219, 56
      %v1266 = vpop.permute.xlu0 %1265
      %1267 = vrot.lane.b32.xlu0 %v1220, 56
      %v1268 = vpop.permute.xlu0 %1267
      %vm1285 = vcmask 523712
      %1286 = vst.msk [vmem:[#allocation3] sm:$0xff] %vm1285, %v1238
      %1287 = vst.msk [vmem:[#allocation3 + $0x8] sm:$0xff] %vm1285, %v1240
      %1288 = vst.msk [vmem:[#allocation3 + $0x10] sm:$0xff] %vm1285, %v1242
      %1289 = vst.msk [vmem:[#allocation3 + $0x18] sm:$0xff] %vm1285, %v1244
      %1290 = vst.msk [vmem:[#allocation3 + $0x20] sm:$0xff] %vm1285, %v1246
      %1291 = vst.msk [vmem:[#allocation3 + $0x28] sm:$0xff] %vm1285, %v1248
      %1292 = vst.msk [vmem:[#allocation3 + $0x30] sm:$0xff] %vm1285, %v1250
      %1293 = vst.msk [vmem:[#allocation3 + $0x38] sm:$0xff] %vm1285, %v1252
      %1294 = vst.msk [vmem:[#allocation3 + $0x40] sm:$0xff] %vm1285, %v1254
      %1295 = vst.msk [vmem:[#allocation3 + $0x48] sm:$0xff] %vm1285, %v1256
      %1296 = vst.msk [vmem:[#allocation3 + $0x50] sm:$0xff] %vm1285, %v1258
      %1297 = vst.msk [vmem:[#allocation3 + $0x58] sm:$0xff] %vm1285, %v1260
      %1298 = vst.msk [vmem:[#allocation3 + $0x60] sm:$0xff] %vm1285, %v1262
      %1299 = vst.msk [vmem:[#allocation3 + $0x68] sm:$0xff] %vm1285, %v1264
      %1300 = vst.msk [vmem:[#allocation3 + $0x70] sm:$0xff] %vm1285, %v1266
      %1301 = vst.msk [vmem:[#allocation3 + $0x78] sm:$0xff] %vm1285, %v1268
      %v1302 = vld [vmem:[%s1107 + $0x2] sm:$0xff]
      %v1303 = vld [vmem:[%s1107 + $0xa] sm:$0xff]
      %v1304 = vld [vmem:[%s1107 + $0x1a] sm:$0xff]
      %v1305 = vld [vmem:[%s1107 + $0x22] sm:$0xff]
      %v1306 = vld [vmem:[%s1107 + $0x32] sm:$0xff]
      %v1307 = vld [vmem:[%s1107 + $0x3a] sm:$0xff]
      %v1308 = vld [vmem:[%s1107 + $0x4a] sm:$0xff]
      %v1309 = vld [vmem:[%s1107 + $0x52] sm:$0xff]
      %v1310 = vld [vmem:[%s1107 + $0x62] sm:$0xff]
      %v1311 = vld [vmem:[%s1107 + $0x6a] sm:$0xff]
      %v1312 = vld [vmem:[%s1107 + $0x7a] sm:$0xff]
      %v1313 = vld [vmem:[%s1107 + $0x82] sm:$0xff]
      %v1314 = vld [vmem:[%s1107 + $0x92] sm:$0xff]
      %v1315 = vld [vmem:[%s1107 + $0x9a] sm:$0xff]
      %v1316 = vld [vmem:[%s1107 + $0xaa] sm:$0xff]
      %v1317 = vld [vmem:[%s1107 + $0xb2] sm:$0xff]
      %1334 = vrot.lane.b32.xlu0 %v1302, 64
      %v1335 = vpop.permute.xlu0 %1334
      %1336 = vrot.lane.b32.xlu0 %v1303, 64
      %v1337 = vpop.permute.xlu0 %1336
      %1338 = vrot.lane.b32.xlu0 %v1304, 64
      %v1339 = vpop.permute.xlu0 %1338
      %1340 = vrot.lane.b32.xlu0 %v1305, 64
      %v1341 = vpop.permute.xlu0 %1340
      %1342 = vrot.lane.b32.xlu0 %v1306, 64
      %v1343 = vpop.permute.xlu0 %1342
      %1344 = vrot.lane.b32.xlu0 %v1307, 64
      %v1345 = vpop.permute.xlu0 %1344
      %1346 = vrot.lane.b32.xlu0 %v1308, 64
      %v1347 = vpop.permute.xlu0 %1346
      %1348 = vrot.lane.b32.xlu0 %v1309, 64
      %v1349 = vpop.permute.xlu0 %1348
      %1350 = vrot.lane.b32.xlu0 %v1310, 64
      %v1351 = vpop.permute.xlu0 %1350
      %1352 = vrot.lane.b32.xlu0 %v1311, 64
      %v1353 = vpop.permute.xlu0 %1352
      %1354 = vrot.lane.b32.xlu0 %v1312, 64
      %v1355 = vpop.permute.xlu0 %1354
      %1356 = vrot.lane.b32.xlu0 %v1313, 64
      %v1357 = vpop.permute.xlu0 %1356
      %1358 = vrot.lane.b32.xlu0 %v1314, 64
      %v1359 = vpop.permute.xlu0 %1358
      %1360 = vrot.lane.b32.xlu0 %v1315, 64
      %v1361 = vpop.permute.xlu0 %1360
      %1362 = vrot.lane.b32.xlu0 %v1316, 64
      %v1363 = vpop.permute.xlu0 %1362
      %1364 = vrot.lane.b32.xlu0 %v1317, 64
      %v1365 = vpop.permute.xlu0 %1364
      %vm1382 = vcmask 589312
      %1383 = vst.msk [vmem:[#allocation3] sm:$0xff] %vm1382, %v1335
      %1384 = vst.msk [vmem:[#allocation3 + $0x8] sm:$0xff] %vm1382, %v1337
      %1385 = vst.msk [vmem:[#allocation3 + $0x10] sm:$0xff] %vm1382, %v1339
      %1386 = vst.msk [vmem:[#allocation3 + $0x18] sm:$0xff] %vm1382, %v1341
      %1387 = vst.msk [vmem:[#allocation3 + $0x20] sm:$0xff] %vm1382, %v1343
      %1388 = vst.msk [vmem:[#allocation3 + $0x28] sm:$0xff] %vm1382, %v1345
      %1389 = vst.msk [vmem:[#allocation3 + $0x30] sm:$0xff] %vm1382, %v1347
      %1390 = vst.msk [vmem:[#allocation3 + $0x38] sm:$0xff] %vm1382, %v1349
      %1391 = vst.msk [vmem:[#allocation3 + $0x40] sm:$0xff] %vm1382, %v1351
      %1392 = vst.msk [vmem:[#allocation3 + $0x48] sm:$0xff] %vm1382, %v1353
      %1393 = vst.msk [vmem:[#allocation3 + $0x50] sm:$0xff] %vm1382, %v1355
      %1394 = vst.msk [vmem:[#allocation3 + $0x58] sm:$0xff] %vm1382, %v1357
      %1395 = vst.msk [vmem:[#allocation3 + $0x60] sm:$0xff] %vm1382, %v1359
      %1396 = vst.msk [vmem:[#allocation3 + $0x68] sm:$0xff] %vm1382, %v1361
      %1397 = vst.msk [vmem:[#allocation3 + $0x70] sm:$0xff] %vm1382, %v1363
      %1398 = vst.msk [vmem:[#allocation3 + $0x78] sm:$0xff] %vm1382, %v1365
      %v1399 = vld [vmem:[#allocation3] sm:$0xff]
      %v1400 = vld [vmem:[#allocation3 + $0x8] sm:$0xff]
      %v1401 = vld [vmem:[#allocation3 + $0x10] sm:$0xff]
      %v1402 = vld [vmem:[#allocation3 + $0x18] sm:$0xff]
      %v1403 = vld [vmem:[#allocation3 + $0x20] sm:$0xff]
      %v1404 = vld [vmem:[#allocation3 + $0x28] sm:$0xff]
      %v1405 = vld [vmem:[#allocation3 + $0x30] sm:$0xff]
      %v1406 = vld [vmem:[#allocation3 + $0x38] sm:$0xff]
      %v1407 = vld [vmem:[#allocation3 + $0x40] sm:$0xff]
      %v1408 = vld [vmem:[#allocation3 + $0x48] sm:$0xff]
      %v1409 = vld [vmem:[#allocation3 + $0x50] sm:$0xff]
      %v1410 = vld [vmem:[#allocation3 + $0x58] sm:$0xff]
      %v1411 = vld [vmem:[#allocation3 + $0x60] sm:$0xff]
      %v1412 = vld [vmem:[#allocation3 + $0x68] sm:$0xff]
      %v1413 = vld [vmem:[#allocation3 + $0x70] sm:$0xff]
      %v1414 = vld [vmem:[#allocation3 + $0x78] sm:$0xff]
      %v1415 = vpack.c.bf16 %v1400, %v1399
      %v1416 = vpack.c.bf16 %v1402, %v1401
      %v1417 = vpack.c.bf16 %v1404, %v1403
      %v1418 = vpack.c.bf16 %v1406, %v1405
      %v1419 = vpack.c.bf16 %v1408, %v1407
      %v1420 = vpack.c.bf16 %v1410, %v1409
      %v1421 = vpack.c.bf16 %v1412, %v1411
      %v1422 = vpack.c.bf16 %v1414, %v1413
      %v1424 = vlaneseq
      %v1425 = vshrl.u32 %v1424, 7
      %v1426 = vsub.s32 0, %v1425
      %v1427 = vrot.slane %v588, %v1426
      %v1438 = vunpack.c.l.b16 %v578
      %v1439 = vunpack.c.l.b16 %v579
      %v1440 = vunpack.c.l.b16 %v580
      %v1441 = vunpack.c.l.b16 %v581
      %v1442 = vunpack.c.l.b16 %v582
      %v1443 = vunpack.c.l.b16 %v583
      %v1444 = vunpack.c.l.b16 %v584
      %v1445 = vunpack.c.l.b16 %v585
      %v1446 = vunpack.c.l.b16 %v586
      %v1447 = vpack.c.b16 %v1439, %v1438
      %v1448 = vpack.c.b16 %v1441, %v1440
      %v1449 = vpack.c.b16 %v1443, %v1442
      %v1450 = vpack.c.b16 %v1445, %v1444
      %v1451 = vpack.c.b16 %v1446, %v1446
      %vm1456 = vcmask 588800
      %v1458 = vsel %vm1456, %v1415, 0
      %v1461 = vsel %vm1456, %v1416, 0
      %v1464 = vsel %vm1456, %v1417, 0
      %v1467 = vsel %vm1456, %v1418, 0
      %v1470 = vsel %vm1456, %v1419, 0
      %v1473 = vsel %vm1456, %v1420, 0
      %v1476 = vsel %vm1456, %v1421, 0
      %v1479 = vsel %vm1456, %v1422, 0
      %vm1481 = vcmask 1043456
      %v1483 = vsel %vm1481, %v1451, 0
      %1485 = vmatprep.subr.bf16.mxu0 0
      %1486 = vmatpush1.bf16.msra.mxu0 %v1447
      %1487 = vmatprep.subr.bf16.mxu0 0
      %1488 = vmatpush1.bf16.msra.mxu0 %v1448
      %1489 = vmatprep.subr.bf16.mxu0 0
      %1490 = vmatpush1.bf16.msra.mxu0 %v1449
      %1491 = vmatprep.subr.bf16.mxu0 0
      %1492 = vmatpush1.bf16.msra.mxu0 %v1450
      %1493 = vmatprep.subr.bf16.mxu0 0
      %1494 = vmatpush1.bf16.msra.mxu0 %v1483
      %1495 = vmatprep.subr.bf16.mxu0 0
      %1496 = vmatpush1.bf16.msra.mxu0 0
      %1497 = vmatprep.subr.bf16.mxu0 0
      %1498 = vmatpush1.bf16.msra.mxu0 0
      %1499 = vmatprep.subr.bf16.mxu0 0
      %1500 = vmatpush1.bf16.msra.mxu0 0
      %1501 = vmatprep.subr.bf16.mxu0 0
      %1502 = vmatpush1.bf16.msra.mxu0 0
      %1503 = vmatprep.subr.bf16.mxu0 0
      %1504 = vmatpush1.bf16.msra.mxu0 0
      %1505 = vmatprep.subr.bf16.mxu0 0
      %1506 = vmatpush1.bf16.msra.mxu0 0
      %1507 = vmatprep.subr.bf16.mxu0 0
      %1508 = vmatpush1.bf16.msra.mxu0 0
      %1509 = vmatprep.subr.bf16.mxu0 0
      %1510 = vmatpush1.bf16.msra.mxu0 0
      %1511 = vmatprep.subr.bf16.mxu0 0
      %1512 = vmatpush1.bf16.msra.mxu0 0
      %1513 = vmatprep.subr.bf16.mxu0 0
      %1514 = vmatpush1.bf16.msra.mxu0 0
      %1515 = vmatprep.subr.bf16.mxu0 0
      %1516 = vmatpush1.bf16.msra.mxu0 0
      %1517 = vmatprep.mubr.bf16.mxu0 0
      %1518 = vmatmul.mubr.bf16.gmra.mrb[0].mxu0 %v1458
      %v1519 = vpop.f32.mrb[0].mxu0
      %v1520 = vadd.f32 %v1427, %v1519
      %v1521 = vpop.f32.mrb[0].mxu0
      %v1522 = vpop.f32.mrb[0].mxu0
      %v1523 = vadd.f32 %v1427, %v1522
      %v1524 = vpop.f32.mrb[0].mxu0
      %1525 = vmatprep.mubr.bf16.mxu0 0
      %1526 = vmatmul.mubr.bf16.gmra.mrb[0].mxu0 %v1461
      %v1527 = vpop.f32.mrb[0].mxu0
      %v1528 = vadd.f32 %v1427, %v1527
      %v1529 = vpop.f32.mrb[0].mxu0
      %v1530 = vpop.f32.mrb[0].mxu0
      %v1531 = vadd.f32 %v1427, %v1530
      %v1532 = vpop.f32.mrb[0].mxu0
      %1533 = vmatprep.mubr.bf16.mxu0 0
      %1534 = vmatmul.mubr.bf16.gmra.mrb[0].mxu0 %v1464
      %v1535 = vpop.f32.mrb[0].mxu0
      %v1536 = vadd.f32 %v1427, %v1535
      %v1537 = vpop.f32.mrb[0].mxu0
      %v1538 = vpop.f32.mrb[0].mxu0
      %v1539 = vadd.f32 %v1427, %v1538
      %v1540 = vpop.f32.mrb[0].mxu0
      %1541 = vmatprep.mubr.bf16.mxu0 0
      %1542 = vmatmul.mubr.bf16.gmra.mrb[0].mxu0 %v1467
      %v1543 = vpop.f32.mrb[0].mxu0
      %v1544 = vadd.f32 %v1427, %v1543
      %v1545 = vpop.f32.mrb[0].mxu0
      %v1546 = vpop.f32.mrb[0].mxu0
      %v1547 = vadd.f32 %v1427, %v1546
      %v1548 = vpop.f32.mrb[0].mxu0
      %1549 = vmatprep.mubr.bf16.mxu0 0
      %1550 = vmatmul.mubr.bf16.gmra.mrb[0].mxu0 %v1470
      %v1551 = vpop.f32.mrb[0].mxu0
      %v1552 = vadd.f32 %v1427, %v1551
      %v1553 = vpop.f32.mrb[0].mxu0
      %v1554 = vpop.f32.mrb[0].mxu0
      %v1555 = vadd.f32 %v1427, %v1554
      %v1556 = vpop.f32.mrb[0].mxu0
      %1557 = vmatprep.mubr.bf16.mxu0 0
      %1558 = vmatmul.mubr.bf16.gmra.mrb[0].mxu0 %v1473
      %v1559 = vpop.f32.mrb[0].mxu0
      %v1560 = vadd.f32 %v1427, %v1559
      %v1561 = vpop.f32.mrb[0].mxu0
      %v1562 = vpop.f32.mrb[0].mxu0
      %v1563 = vadd.f32 %v1427, %v1562
      %v1564 = vpop.f32.mrb[0].mxu0
      %1565 = vmatprep.mubr.bf16.mxu0 0
      %1566 = vmatmul.mubr.bf16.gmra.mrb[0].mxu0 %v1476
      %v1567 = vpop.f32.mrb[0].mxu0
      %v1568 = vadd.f32 %v1427, %v1567
      %v1569 = vpop.f32.mrb[0].mxu0
      %v1570 = vpop.f32.mrb[0].mxu0
      %v1571 = vadd.f32 %v1427, %v1570
      %v1572 = vpop.f32.mrb[0].mxu0
      %1573 = vmatprep.mubr.bf16.mxu0 0
      %1574 = vmatmul.mubr.bf16.gmra.mrb[0].mxu0 %v1479
      %v1575 = vpop.f32.mrb[0].mxu0
      %v1576 = vadd.f32 %v1427, %v1575
      %v1577 = vpop.f32.mrb[0].mxu0
      %v1578 = vpop.f32.mrb[0].mxu0
      %v1579 = vadd.f32 %v1427, %v1578
      %v1580 = vpop.f32.mrb[0].mxu0
      %1581 = vdwg.mxu0
      %v1582 = vxor.u32 %v1520, 2147483648
      %v1583 = vxor.u32 %v1523, 2147483648
      %v1584 = vxor.u32 %v1528, 2147483648
      %v1585 = vxor.u32 %v1531, 2147483648
      %v1586 = vxor.u32 %v1536, 2147483648
      %v1587 = vxor.u32 %v1539, 2147483648
      %v1588 = vxor.u32 %v1544, 2147483648
      %v1589 = vxor.u32 %v1547, 2147483648
      %v1590 = vxor.u32 %v1552, 2147483648
      %v1591 = vxor.u32 %v1555, 2147483648
      %v1592 = vxor.u32 %v1560, 2147483648
      %v1593 = vxor.u32 %v1563, 2147483648
      %v1594 = vxor.u32 %v1568, 2147483648
      %v1595 = vxor.u32 %v1571, 2147483648
      %v1596 = vxor.u32 %v1576, 2147483648
      %v1597 = vxor.u32 %v1579, 2147483648
      %v1598 = vmul.f32 %v1582, 1.442695
      %v1599 = vpow.pop %v1598
      %v1600 = vmul.f32 %v1583, 1.442695
      %v1601 = vpow.pop %v1600
      %v1602 = vmul.f32 %v1584, 1.442695
      %v1603 = vpow.pop %v1602
      %v1604 = vmul.f32 %v1585, 1.442695
      %v1605 = vpow.pop %v1604
      %v1606 = vmul.f32 %v1586, 1.442695
      %v1607 = vpow.pop %v1606
      %v1608 = vmul.f32 %v1587, 1.442695
      %v1609 = vpow.pop %v1608
      %v1610 = vmul.f32 %v1588, 1.442695
      %v1611 = vpow.pop %v1610
      %v1612 = vmul.f32 %v1589, 1.442695
      %v1613 = vpow.pop %v1612
      %v1614 = vmul.f32 %v1590, 1.442695
      %v1615 = vpow.pop %v1614
      %v1616 = vmul.f32 %v1591, 1.442695
      %v1617 = vpow.pop %v1616
      %v1618 = vmul.f32 %v1592, 1.442695
      %v1619 = vpow.pop %v1618
      %v1620 = vmul.f32 %v1593, 1.442695
      %v1621 = vpow.pop %v1620
      %v1622 = vmul.f32 %v1594, 1.442695
      %v1623 = vpow.pop %v1622
      %v1624 = vmul.f32 %v1595, 1.442695
      %v1625 = vpow.pop %v1624
      %v1626 = vmul.f32 %v1596, 1.442695
      %v1627 = vpow.pop %v1626
      %v1628 = vmul.f32 %v1597, 1.442695
      %v1629 = vpow.pop %v1628
      %v1630 = vadd.f32 %v1599, 1.0
      %v1631 = vadd.f32 %v1601, 1.0
      %v1632 = vadd.f32 %v1603, 1.0
      %v1633 = vadd.f32 %v1605, 1.0
      %v1634 = vadd.f32 %v1607, 1.0
      %v1635 = vadd.f32 %v1609, 1.0
      %v1636 = vadd.f32 %v1611, 1.0
      %v1637 = vadd.f32 %v1613, 1.0
      %v1638 = vadd.f32 %v1615, 1.0
      %v1639 = vadd.f32 %v1617, 1.0
      %v1640 = vadd.f32 %v1619, 1.0
      %v1641 = vadd.f32 %v1621, 1.0
      %v1642 = vadd.f32 %v1623, 1.0
      %v1643 = vadd.f32 %v1625, 1.0
      %v1644 = vadd.f32 %v1627, 1.0
      %v1645 = vadd.f32 %v1629, 1.0
      %v1646 = vrcp.pop %v1630
      %v1647 = vmul.f32 1.0, %v1646
      %v1648 = vrcp.pop %v1631
      %v1649 = vmul.f32 1.0, %v1648
      %v1650 = vrcp.pop %v1632
      %v1651 = vmul.f32 1.0, %v1650
      %v1652 = vrcp.pop %v1633
      %v1653 = vmul.f32 1.0, %v1652
      %v1654 = vrcp.pop %v1634
      %v1655 = vmul.f32 1.0, %v1654
      %v1656 = vrcp.pop %v1635
      %v1657 = vmul.f32 1.0, %v1656
      %v1658 = vrcp.pop %v1636
      %v1659 = vmul.f32 1.0, %v1658
      %v1660 = vrcp.pop %v1637
      %v1661 = vmul.f32 1.0, %v1660
      %v1662 = vrcp.pop %v1638
      %v1663 = vmul.f32 1.0, %v1662
      %v1664 = vrcp.pop %v1639
      %v1665 = vmul.f32 1.0, %v1664
      %v1666 = vrcp.pop %v1640
      %v1667 = vmul.f32 1.0, %v1666
      %v1668 = vrcp.pop %v1641
      %v1669 = vmul.f32 1.0, %v1668
      %v1670 = vrcp.pop %v1642
      %v1671 = vmul.f32 1.0, %v1670
      %v1672 = vrcp.pop %v1643
      %v1673 = vmul.f32 1.0, %v1672
      %v1674 = vrcp.pop %v1644
      %v1675 = vmul.f32 1.0, %v1674
      %v1676 = vrcp.pop %v1645
      %v1677 = vmul.f32 1.0, %v1676
      %v1678 = vld [vmem:[%s261] sm:$0xff]
      %v1679 = vld [vmem:[%s261 + $0x8] sm:$0xff]
      %v1680 = vld [vmem:[%s261 + $0x10] sm:$0xff]
      %v1681 = vld [vmem:[%s261 + $0x18] sm:$0xff]
      %v1682 = vld [vmem:[%s261 + $0x20] sm:$0xff]
      %v1683 = vld [vmem:[%s261 + $0x28] sm:$0xff]
      %v1684 = vld [vmem:[%s261 + $0x30] sm:$0xff]
      %v1685 = vld [vmem:[%s261 + $0x38] sm:$0xff]
      %v1686 = vld [vmem:[%s261 + $0x40] sm:$0xff]
      %v1687 = vld [vmem:[%s261 + $0x48] sm:$0xff]
      %v1688 = vld [vmem:[%s261 + $0x50] sm:$0xff]
      %v1689 = vld [vmem:[%s261 + $0x58] sm:$0xff]
      %v1690 = vld [vmem:[%s261 + $0x60] sm:$0xff]
      %v1691 = vld [vmem:[%s261 + $0x68] sm:$0xff]
      %v1692 = vld [vmem:[%s261 + $0x70] sm:$0xff]
      %v1693 = vld [vmem:[%s261 + $0x78] sm:$0xff]
      %v1694 = vld [vmem:[%s266] sm:$0xff]
      %v1695 = vld [vmem:[%s266 + $0x8] sm:$0xff]
      %v1696 = vld [vmem:[%s266 + $0x10] sm:$0xff]
      %v1697 = vld [vmem:[%s266 + $0x18] sm:$0xff]
      %v1698 = vld [vmem:[%s266 + $0x20] sm:$0xff]
      %v1699 = vld [vmem:[%s266 + $0x28] sm:$0xff]
      %v1700 = vld [vmem:[%s266 + $0x30] sm:$0xff]
      %v1701 = vld [vmem:[%s266 + $0x38] sm:$0xff]
      %v1702 = vld [vmem:[%s266 + $0x40] sm:$0xff]
      %v1703 = vld [vmem:[%s266 + $0x48] sm:$0xff]
      %v1704 = vld [vmem:[%s266 + $0x50] sm:$0xff]
      %v1705 = vld [vmem:[%s266 + $0x58] sm:$0xff]
      %v1706 = vld [vmem:[%s266 + $0x60] sm:$0xff]
      %v1707 = vld [vmem:[%s266 + $0x68] sm:$0xff]
      %v1708 = vld [vmem:[%s266 + $0x70] sm:$0xff]
      %v1709 = vld [vmem:[%s266 + $0x78] sm:$0xff]
      %v1710 = vmul.f32 %v1647, %v1678
      %v1711 = vmul.f32 %v1649, %v1679
      %v1712 = vmul.f32 %v1651, %v1680
      %v1713 = vmul.f32 %v1653, %v1681
      %v1714 = vmul.f32 %v1655, %v1682
      %v1715 = vmul.f32 %v1657, %v1683
      %v1716 = vmul.f32 %v1659, %v1684
      %v1717 = vmul.f32 %v1661, %v1685
      %v1718 = vmul.f32 %v1663, %v1686
      %v1719 = vmul.f32 %v1665, %v1687
      %v1720 = vmul.f32 %v1667, %v1688
      %v1721 = vmul.f32 %v1669, %v1689
      %v1722 = vmul.f32 %v1671, %v1690
      %v1723 = vmul.f32 %v1673, %v1691
      %v1724 = vmul.f32 %v1675, %v1692
      %v1725 = vmul.f32 %v1677, %v1693
      %1742 = vrot.lane.b32.xlu0 %v1694, 4
      %v1743 = vpop.permute.xlu0 %1742
      %1744 = vrot.lane.b32.xlu0 %v1695, 4
      %v1745 = vpop.permute.xlu0 %1744
      %1746 = vrot.lane.b32.xlu0 %v1696, 4
      %v1747 = vpop.permute.xlu0 %1746
      %1748 = vrot.lane.b32.xlu0 %v1697, 4
      %v1749 = vpop.permute.xlu0 %1748
      %1750 = vrot.lane.b32.xlu0 %v1698, 4
      %v1751 = vpop.permute.xlu0 %1750
      %1752 = vrot.lane.b32.xlu0 %v1699, 4
      %v1753 = vpop.permute.xlu0 %1752
      %1754 = vrot.lane.b32.xlu0 %v1700, 4
      %v1755 = vpop.permute.xlu0 %1754
      %1756 = vrot.lane.b32.xlu0 %v1701, 4
      %v1757 = vpop.permute.xlu0 %1756
      %1758 = vrot.lane.b32.xlu0 %v1702, 4
      %v1759 = vpop.permute.xlu0 %1758
      %1760 = vrot.lane.b32.xlu0 %v1703, 4
      %v1761 = vpop.permute.xlu0 %1760
      %1762 = vrot.lane.b32.xlu0 %v1704, 4
      %v1763 = vpop.permute.xlu0 %1762
      %1764 = vrot.lane.b32.xlu0 %v1705, 4
      %v1765 = vpop.permute.xlu0 %1764
      %1766 = vrot.lane.b32.xlu0 %v1706, 4
      %v1767 = vpop.permute.xlu0 %1766
      %1768 = vrot.lane.b32.xlu0 %v1707, 4
      %v1769 = vpop.permute.xlu0 %1768
      %1770 = vrot.lane.b32.xlu0 %v1708, 4
      %v1771 = vpop.permute.xlu0 %1770
      %1772 = vrot.lane.b32.xlu0 %v1709, 4
      %v1773 = vpop.permute.xlu0 %1772
      %v1790 = vmul.f32 %v1647, %v1743
      %v1791 = vmul.f32 %v1649, %v1745
      %v1792 = vmul.f32 %v1651, %v1747
      %v1793 = vmul.f32 %v1653, %v1749
      %v1794 = vmul.f32 %v1655, %v1751
      %v1795 = vmul.f32 %v1657, %v1753
      %v1796 = vmul.f32 %v1659, %v1755
      %v1797 = vmul.f32 %v1661, %v1757
      %v1798 = vmul.f32 %v1663, %v1759
      %v1799 = vmul.f32 %v1665, %v1761
      %v1800 = vmul.f32 %v1667, %v1763
      %v1801 = vmul.f32 %v1669, %v1765
      %v1802 = vmul.f32 %v1671, %v1767
      %v1803 = vmul.f32 %v1673, %v1769
      %v1804 = vmul.f32 %v1675, %v1771
      %v1805 = vmul.f32 %v1677, %v1773
      %v1806 = vpack.c.bf16 %v1711, %v1710
      %v1807 = vpack.c.bf16 %v1713, %v1712
      %v1808 = vpack.c.bf16 %v1715, %v1714
      %v1809 = vpack.c.bf16 %v1717, %v1716
      %v1810 = vpack.c.bf16 %v1719, %v1718
      %v1811 = vpack.c.bf16 %v1721, %v1720
      %v1812 = vpack.c.bf16 %v1723, %v1722
      %v1813 = vpack.c.bf16 %v1725, %v1724
      %v1814 = vpack.c.bf16 %v1791, %v1790
      %v1815 = vpack.c.bf16 %v1793, %v1792
      %v1816 = vpack.c.bf16 %v1795, %v1794
      %v1817 = vpack.c.bf16 %v1797, %v1796
      %v1818 = vpack.c.bf16 %v1799, %v1798
      %v1819 = vpack.c.bf16 %v1801, %v1800
      %v1820 = vpack.c.bf16 %v1803, %v1802
      %v1821 = vpack.c.bf16 %v1805, %v1804
      %1830 = vrot.lane.b32.xlu0 %v1814, 124
      %v1831 = vpop.permute.xlu0 %1830
      %1832 = vrot.lane.b32.xlu0 %v1815, 124
      %v1833 = vpop.permute.xlu0 %1832
      %1834 = vrot.lane.b32.xlu0 %v1816, 124
      %v1835 = vpop.permute.xlu0 %1834
      %1836 = vrot.lane.b32.xlu0 %v1817, 124
      %v1837 = vpop.permute.xlu0 %1836
      %1838 = vrot.lane.b32.xlu0 %v1818, 124
      %v1839 = vpop.permute.xlu0 %1838
      %1840 = vrot.lane.b32.xlu0 %v1819, 124
      %v1841 = vpop.permute.xlu0 %1840
      %1842 = vrot.lane.b32.xlu0 %v1820, 124
      %v1843 = vpop.permute.xlu0 %1842
      %1844 = vrot.lane.b32.xlu0 %v1821, 124
      %v1845 = vpop.permute.xlu0 %1844
      %v1847 = vunpack.c.l.b16 %v587
      %v1848 = vpack.c.b16 %v1847, %v1847
      %v1849 = vrot.slane %v1848, 2
      %v1851 = vsel %vm352, %v1831, 0
      %v1854 = vsel %vm352, %v1833, 0
      %v1857 = vsel %vm352, %v1835, 0
      %v1860 = vsel %vm352, %v1837, 0
      %v1863 = vsel %vm352, %v1839, 0
      %v1866 = vsel %vm352, %v1841, 0
      %v1869 = vsel %vm352, %v1843, 0
      %v1872 = vsel %vm352, %v1845, 0
      %vm1874 = vcmask 1041408
      %v1876 = vsel %vm1874, %v1849, 0
      %1878 = vmatprep.subr.bf16.mxu0 0
      %1879 = vmatpush1.bf16.msra.mxu0 %v1876
      %1880 = vmatprep.subr.bf16.mxu0 0
      %1881 = vmatpush1.bf16.msra.mxu0 0
      %1882 = vmatprep.subr.bf16.mxu0 0
      %1883 = vmatpush1.bf16.msra.mxu0 0
      %1884 = vmatprep.subr.bf16.mxu0 0
      %1885 = vmatpush1.bf16.msra.mxu0 0
      %1886 = vmatprep.subr.bf16.mxu0 0
      %1887 = vmatpush1.bf16.msra.mxu0 0
      %1888 = vmatprep.subr.bf16.mxu0 0
      %1889 = vmatpush1.bf16.msra.mxu0 0
      %1890 = vmatprep.subr.bf16.mxu0 0
      %1891 = vmatpush1.bf16.msra.mxu0 0
      %1892 = vmatprep.subr.bf16.mxu0 0
      %1893 = vmatpush1.bf16.msra.mxu0 0
      %1894 = vmatprep.subr.bf16.mxu0 0
      %1895 = vmatpush1.bf16.msra.mxu0 0
      %1896 = vmatprep.subr.bf16.mxu0 0
      %1897 = vmatpush1.bf16.msra.mxu0 0
      %1898 = vmatprep.subr.bf16.mxu0 0
      %1899 = vmatpush1.bf16.msra.mxu0 0
      %1900 = vmatprep.subr.bf16.mxu0 0
      %1901 = vmatpush1.bf16.msra.mxu0 0
      %1902 = vmatprep.subr.bf16.mxu0 0
      %1903 = vmatpush1.bf16.msra.mxu0 0
      %1904 = vmatprep.subr.bf16.mxu0 0
      %1905 = vmatpush1.bf16.msra.mxu0 0
      %1906 = vmatprep.subr.bf16.mxu0 0
      %1907 = vmatpush1.bf16.msra.mxu0 0
      %1908 = vmatprep.subr.bf16.mxu0 0
      %1909 = vmatpush1.bf16.msra.mxu0 0
      %1910 = vmatprep.mubr.bf16.mxu0 0
      %1911 = vmatmul.mubr.bf16.gmra.mrb[0].mxu0 %v1851
      %v1912 = vpop.f32.mrb[0].mxu0
      %v1913 = vadd.f32 0.0, %v1912
      %v1914 = vpop.f32.mrb[0].mxu0
      %v1915 = vpop.f32.mrb[0].mxu0
      %v1916 = vadd.f32 0.0, %v1915
      %v1917 = vpop.f32.mrb[0].mxu0
      %1918 = vmatprep.mubr.bf16.mxu0 0
      %1919 = vmatmul.mubr.bf16.gmra.mrb[0].mxu0 %v1854
      %v1920 = vpop.f32.mrb[0].mxu0
      %v1921 = vadd.f32 0.0, %v1920
      %v1922 = vpop.f32.mrb[0].mxu0
      %v1923 = vpop.f32.mrb[0].mxu0
      %v1924 = vadd.f32 0.0, %v1923
      %v1925 = vpop.f32.mrb[0].mxu0
      %1926 = vmatprep.mubr.bf16.mxu0 0
      %1927 = vmatmul.mubr.bf16.gmra.mrb[0].mxu0 %v1857
      %v1928 = vpop.f32.mrb[0].mxu0
      %v1929 = vadd.f32 0.0, %v1928
      %v1930 = vpop.f32.mrb[0].mxu0
      %v1931 = vpop.f32.mrb[0].mxu0
      %v1932 = vadd.f32 0.0, %v1931
      %v1933 = vpop.f32.mrb[0].mxu0
      %1934 = vmatprep.mubr.bf16.mxu0 0
      %1935 = vmatmul.mubr.bf16.gmra.mrb[0].mxu0 %v1860
      %v1936 = vpop.f32.mrb[0].mxu0
      %v1937 = vadd.f32 0.0, %v1936
      %v1938 = vpop.f32.mrb[0].mxu0
      %v1939 = vpop.f32.mrb[0].mxu0
      %v1940 = vadd.f32 0.0, %v1939
      %v1941 = vpop.f32.mrb[0].mxu0
      %1942 = vmatprep.mubr.bf16.mxu0 0
      %1943 = vmatmul.mubr.bf16.gmra.mrb[0].mxu0 %v1863
      %v1944 = vpop.f32.mrb[0].mxu0
      %v1945 = vadd.f32 0.0, %v1944
      %v1946 = vpop.f32.mrb[0].mxu0
      %v1947 = vpop.f32.mrb[0].mxu0
      %v1948 = vadd.f32 0.0, %v1947
      %v1949 = vpop.f32.mrb[0].mxu0
      %1950 = vmatprep.mubr.bf16.mxu0 0
      %1951 = vmatmul.mubr.bf16.gmra.mrb[0].mxu0 %v1866
      %v1952 = vpop.f32.mrb[0].mxu0
      %v1953 = vadd.f32 0.0, %v1952
      %v1954 = vpop.f32.mrb[0].mxu0
      %v1955 = vpop.f32.mrb[0].mxu0
      %v1956 = vadd.f32 0.0, %v1955
      %v1957 = vpop.f32.mrb[0].mxu0
      %1958 = vmatprep.mubr.bf16.mxu0 0
      %1959 = vmatmul.mubr.bf16.gmra.mrb[0].mxu0 %v1869
      %v1960 = vpop.f32.mrb[0].mxu0
      %v1961 = vadd.f32 0.0, %v1960
      %v1962 = vpop.f32.mrb[0].mxu0
      %v1963 = vpop.f32.mrb[0].mxu0
      %v1964 = vadd.f32 0.0, %v1963
      %v1965 = vpop.f32.mrb[0].mxu0
      %1966 = vmatprep.mubr.bf16.mxu0 0
      %1967 = vmatmul.mubr.bf16.gmra.mrb[0].mxu0 %v1872
      %v1968 = vpop.f32.mrb[0].mxu0
      %v1969 = vadd.f32 0.0, %v1968
      %v1970 = vpop.f32.mrb[0].mxu0
      %v1971 = vpop.f32.mrb[0].mxu0
      %v1972 = vadd.f32 0.0, %v1971
      %v1973 = vpop.f32.mrb[0].mxu0
      %1974 = vdwg.mxu0
      %v1976 = vsel %vm352, %v1806, 0
      %v1979 = vsel %vm352, %v1807, 0
      %v1982 = vsel %vm352, %v1808, 0
      %v1985 = vsel %vm352, %v1809, 0
      %v1988 = vsel %vm352, %v1810, 0
      %v1991 = vsel %vm352, %v1811, 0
      %v1994 = vsel %vm352, %v1812, 0
      %v1997 = vsel %vm352, %v1813, 0
      %v2000 = vsel %vm1874, %v587, 0
      %2002 = vmatprep.subr.bf16.mxu0 0
      %2003 = vmatpush1.bf16.msra.mxu0 %v2000
      %2004 = vmatprep.subr.bf16.mxu0 0
      %2005 = vmatpush1.bf16.msra.mxu0 0
      %2006 = vmatprep.subr.bf16.mxu0 0
      %2007 = vmatpush1.bf16.msra.mxu0 0
      %2008 = vmatprep.subr.bf16.mxu0 0
      %2009 = vmatpush1.bf16.msra.mxu0 0
      %2010 = vmatprep.subr.bf16.mxu0 0
      %2011 = vmatpush1.bf16.msra.mxu0 0
      %2012 = vmatprep.subr.bf16.mxu0 0
      %2013 = vmatpush1.bf16.msra.mxu0 0
      %2014 = vmatprep.subr.bf16.mxu0 0
      %2015 = vmatpush1.bf16.msra.mxu0 0
      %2016 = vmatprep.subr.bf16.mxu0 0
      %2017 = vmatpush1.bf16.msra.mxu0 0
      %2018 = vmatprep.subr.bf16.mxu0 0
      %2019 = vmatpush1.bf16.msra.mxu0 0
      %2020 = vmatprep.subr.bf16.mxu0 0
      %2021 = vmatpush1.bf16.msra.mxu0 0
      %2022 = vmatprep.subr.bf16.mxu0 0
      %2023 = vmatpush1.bf16.msra.mxu0 0
      %2024 = vmatprep.subr.bf16.mxu0 0
      %2025 = vmatpush1.bf16.msra.mxu0 0
      %2026 = vmatprep.subr.bf16.mxu0 0
      %2027 = vmatpush1.bf16.msra.mxu0 0
      %2028 = vmatprep.subr.bf16.mxu0 0
      %2029 = vmatpush1.bf16.msra.mxu0 0
      %2030 = vmatprep.subr.bf16.mxu0 0
      %2031 = vmatpush1.bf16.msra.mxu0 0
      %2032 = vmatprep.subr.bf16.mxu0 0
      %2033 = vmatpush1.bf16.msra.mxu0 0
      %2034 = vmatprep.mubr.bf16.mxu0 0
      %2035 = vmatmul.mubr.bf16.gmra.mrb[0].mxu0 %v1976
      %v2036 = vpop.f32.mrb[0].mxu0
      %v2037 = vadd.f32 %v1913, %v2036
      %v2038 = vpop.f32.mrb[0].mxu0
      %v2039 = vpop.f32.mrb[0].mxu0
      %v2040 = vadd.f32 %v1916, %v2039
      %v2041 = vpop.f32.mrb[0].mxu0
      %2042 = vmatprep.mubr.bf16.mxu0 0
      %2043 = vmatmul.mubr.bf16.gmra.mrb[0].mxu0 %v1979
      %v2044 = vpop.f32.mrb[0].mxu0
      %v2045 = vadd.f32 %v1921, %v2044
      %v2046 = vpop.f32.mrb[0].mxu0
      %v2047 = vpop.f32.mrb[0].mxu0
      %v2048 = vadd.f32 %v1924, %v2047
      %v2049 = vpop.f32.mrb[0].mxu0
      %2050 = vmatprep.mubr.bf16.mxu0 0
      %2051 = vmatmul.mubr.bf16.gmra.mrb[0].mxu0 %v1982
      %v2052 = vpop.f32.mrb[0].mxu0
      %v2053 = vadd.f32 %v1929, %v2052
      %v2054 = vpop.f32.mrb[0].mxu0
      %v2055 = vpop.f32.mrb[0].mxu0
      %v2056 = vadd.f32 %v1932, %v2055
      %v2057 = vpop.f32.mrb[0].mxu0
      %2058 = vmatprep.mubr.bf16.mxu0 0
      %2059 = vmatmul.mubr.bf16.gmra.mrb[0].mxu0 %v1985
      %v2060 = vpop.f32.mrb[0].mxu0
      %v2061 = vadd.f32 %v1937, %v2060
      %v2062 = vpop.f32.mrb[0].mxu0
      %v2063 = vpop.f32.mrb[0].mxu0
      %v2064 = vadd.f32 %v1940, %v2063
      %v2065 = vpop.f32.mrb[0].mxu0
      %2066 = vmatprep.mubr.bf16.mxu0 0
      %2067 = vmatmul.mubr.bf16.gmra.mrb[0].mxu0 %v1988
      %v2068 = vpop.f32.mrb[0].mxu0
      %v2069 = vadd.f32 %v1945, %v2068
      %v2070 = vpop.f32.mrb[0].mxu0
      %v2071 = vpop.f32.mrb[0].mxu0
      %v2072 = vadd.f32 %v1948, %v2071
      %v2073 = vpop.f32.mrb[0].mxu0
      %2074 = vmatprep.mubr.bf16.mxu0 0
      %2075 = vmatmul.mubr.bf16.gmra.mrb[0].mxu0 %v1991
      %v2076 = vpop.f32.mrb[0].mxu0
      %v2077 = vadd.f32 %v1953, %v2076
      %v2078 = vpop.f32.mrb[0].mxu0
      %v2079 = vpop.f32.mrb[0].mxu0
      %v2080 = vadd.f32 %v1956, %v2079
      %v2081 = vpop.f32.mrb[0].mxu0
      %2082 = vmatprep.mubr.bf16.mxu0 0
      %2083 = vmatmul.mubr.bf16.gmra.mrb[0].mxu0 %v1994
      %v2084 = vpop.f32.mrb[0].mxu0
      %v2085 = vadd.f32 %v1961, %v2084
      %v2086 = vpop.f32.mrb[0].mxu0
      %v2087 = vpop.f32.mrb[0].mxu0
      %v2088 = vadd.f32 %v1964, %v2087
      %v2089 = vpop.f32.mrb[0].mxu0
      %2090 = vmatprep.mubr.bf16.mxu0 0
      %2091 = vmatmul.mubr.bf16.gmra.mrb[0].mxu0 %v1997
      %v2092 = vpop.f32.mrb[0].mxu0
      %v2093 = vadd.f32 %v1969, %v2092
      %v2094 = vpop.f32.mrb[0].mxu0
      %v2095 = vpop.f32.mrb[0].mxu0
      %v2096 = vadd.f32 %v1972, %v2095
      %v2097 = vpop.f32.mrb[0].mxu0
      %2098 = vdwg.mxu0
      %v2100 = vlaneseq
      %v2101 = vshrl.u32 %v2100, 7
      %v2102 = vsub.s32 0, %v2101
      %v2103 = vrot.slane %v589, %v2102
      %v2105 = vadd.f32 %v2037, %v2103
      %v2106 = vadd.f32 %v2040, %v2103
      %v2107 = vadd.f32 %v2045, %v2103
      %v2108 = vadd.f32 %v2048, %v2103
      %v2109 = vadd.f32 %v2053, %v2103
      %v2110 = vadd.f32 %v2056, %v2103
      %v2111 = vadd.f32 %v2061, %v2103
      %v2112 = vadd.f32 %v2064, %v2103
      %v2113 = vadd.f32 %v2069, %v2103
      %v2114 = vadd.f32 %v2072, %v2103
      %v2115 = vadd.f32 %v2077, %v2103
      %v2116 = vadd.f32 %v2080, %v2103
      %v2117 = vadd.f32 %v2085, %v2103
      %v2118 = vadd.f32 %v2088, %v2103
      %v2119 = vadd.f32 %v2093, %v2103
      %v2120 = vadd.f32 %v2096, %v2103
      %2121 = vst.msk [vmem:[%s271] sm:$0xff] %vm352, %v2105
      %2122 = vst.msk [vmem:[%s271 + $0x8] sm:$0xff] %vm352, %v2106
      %2123 = vst.msk [vmem:[%s271 + $0x10] sm:$0xff] %vm352, %v2107
      %2124 = vst.msk [vmem:[%s271 + $0x18] sm:$0xff] %vm352, %v2108
      %2125 = vst.msk [vmem:[%s271 + $0x20] sm:$0xff] %vm352, %v2109
      %2126 = vst.msk [vmem:[%s271 + $0x28] sm:$0xff] %vm352, %v2110
      %2127 = vst.msk [vmem:[%s271 + $0x30] sm:$0xff] %vm352, %v2111
      %2128 = vst.msk [vmem:[%s271 + $0x38] sm:$0xff] %vm352, %v2112
      %2129 = vst.msk [vmem:[%s271 + $0x40] sm:$0xff] %vm352, %v2113
      %2130 = vst.msk [vmem:[%s271 + $0x48] sm:$0xff] %vm352, %v2114
      %2131 = vst.msk [vmem:[%s271 + $0x50] sm:$0xff] %vm352, %v2115
      %2132 = vst.msk [vmem:[%s271 + $0x58] sm:$0xff] %vm352, %v2116
      %2133 = vst.msk [vmem:[%s271 + $0x60] sm:$0xff] %vm352, %v2117
      %2134 = vst.msk [vmem:[%s271 + $0x68] sm:$0xff] %vm352, %v2118
      %2135 = vst.msk [vmem:[%s271 + $0x70] sm:$0xff] %vm352, %v2119
      %2136 = vst.msk [vmem:[%s271 + $0x78] sm:$0xff] %vm352, %v2120
      %s2137 = scalar_lea.vmem [#allocation2], 192
      %v2138 = vld [vmem:[%s2137] sm:$0xff]
      %v2139 = vld [vmem:[%s2137 + $0x8] sm:$0xff]
      %v2140 = vld [vmem:[%s2137 + $0x18] sm:$0xff]
      %v2141 = vld [vmem:[%s2137 + $0x20] sm:$0xff]
      %v2142 = vld [vmem:[%s2137 + $0x30] sm:$0xff]
      %v2143 = vld [vmem:[%s2137 + $0x38] sm:$0xff]
      %v2144 = vld [vmem:[%s2137 + $0x48] sm:$0xff]
      %v2145 = vld [vmem:[%s2137 + $0x50] sm:$0xff]
      %v2146 = vld [vmem:[%s2137 + $0x60] sm:$0xff]
      %v2147 = vld [vmem:[%s2137 + $0x68] sm:$0xff]
      %v2148 = vld [vmem:[%s2137 + $0x78] sm:$0xff]
      %v2149 = vld [vmem:[%s2137 + $0x80] sm:$0xff]
      %v2150 = vld [vmem:[%s2137 + $0x90] sm:$0xff]
      %v2151 = vld [vmem:[%s2137 + $0x98] sm:$0xff]
      %v2152 = vld [vmem:[%s2137 + $0xa8] sm:$0xff]
      %v2153 = vld [vmem:[%s2137 + $0xb0] sm:$0xff]
      %2154 = vst.msk [vmem:[#allocation3] sm:$0xff] %vm273, %v2138
      %2155 = vst.msk [vmem:[#allocation3 + $0x8] sm:$0xff] %vm273, %v2139
      %2156 = vst.msk [vmem:[#allocation3 + $0x10] sm:$0xff] %vm273, %v2140
      %2157 = vst.msk [vmem:[#allocation3 + $0x18] sm:$0xff] %vm273, %v2141
      %2158 = vst.msk [vmem:[#allocation3 + $0x20] sm:$0xff] %vm273, %v2142
      %2159 = vst.msk [vmem:[#allocation3 + $0x28] sm:$0xff] %vm273, %v2143
      %2160 = vst.msk [vmem:[#allocation3 + $0x30] sm:$0xff] %vm273, %v2144
      %2161 = vst.msk [vmem:[#allocation3 + $0x38] sm:$0xff] %vm273, %v2145
      %2162 = vst.msk [vmem:[#allocation3 + $0x40] sm:$0xff] %vm273, %v2146
      %2163 = vst.msk [vmem:[#allocation3 + $0x48] sm:$0xff] %vm273, %v2147
      %2164 = vst.msk [vmem:[#allocation3 + $0x50] sm:$0xff] %vm273, %v2148
      %2165 = vst.msk [vmem:[#allocation3 + $0x58] sm:$0xff] %vm273, %v2149
      %2166 = vst.msk [vmem:[#allocation3 + $0x60] sm:$0xff] %vm273, %v2150
      %2167 = vst.msk [vmem:[#allocation3 + $0x68] sm:$0xff] %vm273, %v2151
      %2168 = vst.msk [vmem:[#allocation3 + $0x70] sm:$0xff] %vm273, %v2152
      %2169 = vst.msk [vmem:[#allocation3 + $0x78] sm:$0xff] %vm273, %v2153
      %v2170 = vld [vmem:[%s2137 + $0x1] sm:$0xff]
      %v2171 = vld [vmem:[%s2137 + $0x9] sm:$0xff]
      %v2172 = vld [vmem:[%s2137 + $0x19] sm:$0xff]
      %v2173 = vld [vmem:[%s2137 + $0x21] sm:$0xff]
      %v2174 = vld [vmem:[%s2137 + $0x31] sm:$0xff]
      %v2175 = vld [vmem:[%s2137 + $0x39] sm:$0xff]
      %v2176 = vld [vmem:[%s2137 + $0x49] sm:$0xff]
      %v2177 = vld [vmem:[%s2137 + $0x51] sm:$0xff]
      %v2178 = vld [vmem:[%s2137 + $0x61] sm:$0xff]
      %v2179 = vld [vmem:[%s2137 + $0x69] sm:$0xff]
      %v2180 = vld [vmem:[%s2137 + $0x79] sm:$0xff]
      %v2181 = vld [vmem:[%s2137 + $0x81] sm:$0xff]
      %v2182 = vld [vmem:[%s2137 + $0x91] sm:$0xff]
      %v2183 = vld [vmem:[%s2137 + $0x99] sm:$0xff]
      %v2184 = vld [vmem:[%s2137 + $0xa9] sm:$0xff]
      %v2185 = vld [vmem:[%s2137 + $0xb1] sm:$0xff]
      %2202 = vrot.lane.b32.xlu0 %v2170, 8
      %v2203 = vpop.permute.xlu0 %2202
      %2204 = vrot.lane.b32.xlu0 %v2171, 8
      %v2205 = vpop.permute.xlu0 %2204
      %2206 = vrot.lane.b32.xlu0 %v2172, 8
      %v2207 = vpop.permute.xlu0 %2206
      %2208 = vrot.lane.b32.xlu0 %v2173, 8
      %v2209 = vpop.permute.xlu0 %2208
      %2210 = vrot.lane.b32.xlu0 %v2174, 8
      %v2211 = vpop.permute.xlu0 %2210
      %2212 = vrot.lane.b32.xlu0 %v2175, 8
      %v2213 = vpop.permute.xlu0 %2212
      %2214 = vrot.lane.b32.xlu0 %v2176, 8
      %v2215 = vpop.permute.xlu0 %2214
      %2216 = vrot.lane.b32.xlu0 %v2177, 8
      %v2217 = vpop.permute.xlu0 %2216
      %2218 = vrot.lane.b32.xlu0 %v2178, 8
      %v2219 = vpop.permute.xlu0 %2218
      %2220 = vrot.lane.b32.xlu0 %v2179, 8
      %v2221 = vpop.permute.xlu0 %2220
      %2222 = vrot.lane.b32.xlu0 %v2180, 8
      %v2223 = vpop.permute.xlu0 %2222
      %2224 = vrot.lane.b32.xlu0 %v2181, 8
      %v2225 = vpop.permute.xlu0 %2224
      %2226 = vrot.lane.b32.xlu0 %v2182, 8
      %v2227 = vpop.permute.xlu0 %2226
      %2228 = vrot.lane.b32.xlu0 %v2183, 8
      %v2229 = vpop.permute.xlu0 %2228
      %2230 = vrot.lane.b32.xlu0 %v2184, 8
      %v2231 = vpop.permute.xlu0 %2230
      %2232 = vrot.lane.b32.xlu0 %v2185, 8
      %v2233 = vpop.permute.xlu0 %2232
      %2250 = vst.msk [vmem:[#allocation3] sm:$0xff] %vm702, %v2203
      %2251 = vst.msk [vmem:[#allocation3 + $0x8] sm:$0xff] %vm702, %v2205
      %2252 = vst.msk [vmem:[#allocation3 + $0x10] sm:$0xff] %vm702, %v2207
      %2253 = vst.msk [vmem:[#allocation3 + $0x18] sm:$0xff] %vm702, %v2209
      %2254 = vst.msk [vmem:[#allocation3 + $0x20] sm:$0xff] %vm702, %v2211
      %2255 = vst.msk [vmem:[#allocation3 + $0x28] sm:$0xff] %vm702, %v2213
      %2256 = vst.msk [vmem:[#allocation3 + $0x30] sm:$0xff] %vm702, %v2215
      %2257 = vst.msk [vmem:[#allocation3 + $0x38] sm:$0xff] %vm702, %v2217
      %2258 = vst.msk [vmem:[#allocation3 + $0x40] sm:$0xff] %vm702, %v2219
      %2259 = vst.msk [vmem:[#allocation3 + $0x48] sm:$0xff] %vm702, %v2221
      %2260 = vst.msk [vmem:[#allocation3 + $0x50] sm:$0xff] %vm702, %v2223
      %2261 = vst.msk [vmem:[#allocation3 + $0x58] sm:$0xff] %vm702, %v2225
      %2262 = vst.msk [vmem:[#allocation3 + $0x60] sm:$0xff] %vm702, %v2227
      %2263 = vst.msk [vmem:[#allocation3 + $0x68] sm:$0xff] %vm702, %v2229
      %2264 = vst.msk [vmem:[#allocation3 + $0x70] sm:$0xff] %vm702, %v2231
      %2265 = vst.msk [vmem:[#allocation3 + $0x78] sm:$0xff] %vm702, %v2233
      %v2266 = vld [vmem:[%s2137 + $0x2] sm:$0xff]
      %v2267 = vld [vmem:[%s2137 + $0xa] sm:$0xff]
      %v2268 = vld [vmem:[%s2137 + $0x1a] sm:$0xff]
      %v2269 = vld [vmem:[%s2137 + $0x22] sm:$0xff]
      %v2270 = vld [vmem:[%s2137 + $0x32] sm:$0xff]
      %v2271 = vld [vmem:[%s2137 + $0x3a] sm:$0xff]
      %v2272 = vld [vmem:[%s2137 + $0x4a] sm:$0xff]
      %v2273 = vld [vmem:[%s2137 + $0x52] sm:$0xff]
      %v2274 = vld [vmem:[%s2137 + $0x62] sm:$0xff]
      %v2275 = vld [vmem:[%s2137 + $0x6a] sm:$0xff]
      %v2276 = vld [vmem:[%s2137 + $0x7a] sm:$0xff]
      %v2277 = vld [vmem:[%s2137 + $0x82] sm:$0xff]
      %v2278 = vld [vmem:[%s2137 + $0x92] sm:$0xff]
      %v2279 = vld [vmem:[%s2137 + $0x9a] sm:$0xff]
      %v2280 = vld [vmem:[%s2137 + $0xaa] sm:$0xff]
      %v2281 = vld [vmem:[%s2137 + $0xb2] sm:$0xff]
      %2298 = vrot.lane.b32.xlu0 %v2266, 16
      %v2299 = vpop.permute.xlu0 %2298
      %2300 = vrot.lane.b32.xlu0 %v2267, 16
      %v2301 = vpop.permute.xlu0 %2300
      %2302 = vrot.lane.b32.xlu0 %v2268, 16
      %v2303 = vpop.permute.xlu0 %2302
      %2304 = vrot.lane.b32.xlu0 %v2269, 16
      %v2305 = vpop.permute.xlu0 %2304
      %2306 = vrot.lane.b32.xlu0 %v2270, 16
      %v2307 = vpop.permute.xlu0 %2306
      %2308 = vrot.lane.b32.xlu0 %v2271, 16
      %v2309 = vpop.permute.xlu0 %2308
      %2310 = vrot.lane.b32.xlu0 %v2272, 16
      %v2311 = vpop.permute.xlu0 %2310
      %2312 = vrot.lane.b32.xlu0 %v2273, 16
      %v2313 = vpop.permute.xlu0 %2312
      %2314 = vrot.lane.b32.xlu0 %v2274, 16
      %v2315 = vpop.permute.xlu0 %2314
      %2316 = vrot.lane.b32.xlu0 %v2275, 16
      %v2317 = vpop.permute.xlu0 %2316
      %2318 = vrot.lane.b32.xlu0 %v2276, 16
      %v2319 = vpop.permute.xlu0 %2318
      %2320 = vrot.lane.b32.xlu0 %v2277, 16
      %v2321 = vpop.permute.xlu0 %2320
      %2322 = vrot.lane.b32.xlu0 %v2278, 16
      %v2323 = vpop.permute.xlu0 %2322
      %2324 = vrot.lane.b32.xlu0 %v2279, 16
      %v2325 = vpop.permute.xlu0 %2324
      %2326 = vrot.lane.b32.xlu0 %v2280, 16
      %v2327 = vpop.permute.xlu0 %2326
      %2328 = vrot.lane.b32.xlu0 %v2281, 16
      %v2329 = vpop.permute.xlu0 %2328
      %2346 = vst.msk [vmem:[#allocation3] sm:$0xff] %vm799, %v2299
      %2347 = vst.msk [vmem:[#allocation3 + $0x8] sm:$0xff] %vm799, %v2301
      %2348 = vst.msk [vmem:[#allocation3 + $0x10] sm:$0xff] %vm799, %v2303
      %2349 = vst.msk [vmem:[#allocation3 + $0x18] sm:$0xff] %vm799, %v2305
      %2350 = vst.msk [vmem:[#allocation3 + $0x20] sm:$0xff] %vm799, %v2307
      %2351 = vst.msk [vmem:[#allocation3 + $0x28] sm:$0xff] %vm799, %v2309
      %2352 = vst.msk [vmem:[#allocation3 + $0x30] sm:$0xff] %vm799, %v2311
      %2353 = vst.msk [vmem:[#allocation3 + $0x38] sm:$0xff] %vm799, %v2313
      %2354 = vst.msk [vmem:[#allocation3 + $0x40] sm:$0xff] %vm799, %v2315
      %2355 = vst.msk [vmem:[#allocation3 + $0x48] sm:$0xff] %vm799, %v2317
      %2356 = vst.msk [vmem:[#allocation3 + $0x50] sm:$0xff] %vm799, %v2319
      %2357 = vst.msk [vmem:[#allocation3 + $0x58] sm:$0xff] %vm799, %v2321
      %2358 = vst.msk [vmem:[#allocation3 + $0x60] sm:$0xff] %vm799, %v2323
      %2359 = vst.msk [vmem:[#allocation3 + $0x68] sm:$0xff] %vm799, %v2325
      %2360 = vst.msk [vmem:[#allocation3 + $0x70] sm:$0xff] %vm799, %v2327
      %2361 = vst.msk [vmem:[#allocation3 + $0x78] sm:$0xff] %vm799, %v2329
      %s2362 = scalar_lea.vmem [#allocation2], 216
      %v2363 = vld [vmem:[%s2362] sm:$0xff]
      %v2364 = vld [vmem:[%s2362 + $0x8] sm:$0xff]
      %v2365 = vld [vmem:[%s2362 + $0x18] sm:$0xff]
      %v2366 = vld [vmem:[%s2362 + $0x20] sm:$0xff]
      %v2367 = vld [vmem:[%s2362 + $0x30] sm:$0xff]
      %v2368 = vld [vmem:[%s2362 + $0x38] sm:$0xff]
      %v2369 = vld [vmem:[%s2362 + $0x48] sm:$0xff]
      %v2370 = vld [vmem:[%s2362 + $0x50] sm:$0xff]
      %v2371 = vld [vmem:[%s2362 + $0x60] sm:$0xff]
      %v2372 = vld [vmem:[%s2362 + $0x68] sm:$0xff]
      %v2373 = vld [vmem:[%s2362 + $0x78] sm:$0xff]
      %v2374 = vld [vmem:[%s2362 + $0x80] sm:$0xff]
      %v2375 = vld [vmem:[%s2362 + $0x90] sm:$0xff]
      %v2376 = vld [vmem:[%s2362 + $0x98] sm:$0xff]
      %v2377 = vld [vmem:[%s2362 + $0xa8] sm:$0xff]
      %v2378 = vld [vmem:[%s2362 + $0xb0] sm:$0xff]
      %2395 = vrot.lane.b32.xlu0 %v2363, 24
      %v2396 = vpop.permute.xlu0 %2395
      %2397 = vrot.lane.b32.xlu0 %v2364, 24
      %v2398 = vpop.permute.xlu0 %2397
      %2399 = vrot.lane.b32.xlu0 %v2365, 24
      %v2400 = vpop.permute.xlu0 %2399
      %2401 = vrot.lane.b32.xlu0 %v2366, 24
      %v2402 = vpop.permute.xlu0 %2401
      %2403 = vrot.lane.b32.xlu0 %v2367, 24
      %v2404 = vpop.permute.xlu0 %2403
      %2405 = vrot.lane.b32.xlu0 %v2368, 24
      %v2406 = vpop.permute.xlu0 %2405
      %2407 = vrot.lane.b32.xlu0 %v2369, 24
      %v2408 = vpop.permute.xlu0 %2407
      %2409 = vrot.lane.b32.xlu0 %v2370, 24
      %v2410 = vpop.permute.xlu0 %2409
      %2411 = vrot.lane.b32.xlu0 %v2371, 24
      %v2412 = vpop.permute.xlu0 %2411
      %2413 = vrot.lane.b32.xlu0 %v2372, 24
      %v2414 = vpop.permute.xlu0 %2413
      %2415 = vrot.lane.b32.xlu0 %v2373, 24
      %v2416 = vpop.permute.xlu0 %2415
      %2417 = vrot.lane.b32.xlu0 %v2374, 24
      %v2418 = vpop.permute.xlu0 %2417
      %2419 = vrot.lane.b32.xlu0 %v2375, 24
      %v2420 = vpop.permute.xlu0 %2419
      %2421 = vrot.lane.b32.xlu0 %v2376, 24
      %v2422 = vpop.permute.xlu0 %2421
      %2423 = vrot.lane.b32.xlu0 %v2377, 24
      %v2424 = vpop.permute.xlu0 %2423
      %2425 = vrot.lane.b32.xlu0 %v2378, 24
      %v2426 = vpop.permute.xlu0 %2425
      %2443 = vst.msk [vmem:[#allocation3] sm:$0xff] %vm896, %v2396
      %2444 = vst.msk [vmem:[#allocation3 + $0x8] sm:$0xff] %vm896, %v2398
      %2445 = vst.msk [vmem:[#allocation3 + $0x10] sm:$0xff] %vm896, %v2400
      %2446 = vst.msk [vmem:[#allocation3 + $0x18] sm:$0xff] %vm896, %v2402
      %2447 = vst.msk [vmem:[#allocation3 + $0x20] sm:$0xff] %vm896, %v2404
      %2448 = vst.msk [vmem:[#allocation3 + $0x28] sm:$0xff] %vm896, %v2406
      %2449 = vst.msk [vmem:[#allocation3 + $0x30] sm:$0xff] %vm896, %v2408
      %2450 = vst.msk [vmem:[#allocation3 + $0x38] sm:$0xff] %vm896, %v2410
      %2451 = vst.msk [vmem:[#allocation3 + $0x40] sm:$0xff] %vm896, %v2412
      %2452 = vst.msk [vmem:[#allocation3 + $0x48] sm:$0xff] %vm896, %v2414
      %2453 = vst.msk [vmem:[#allocation3 + $0x50] sm:$0xff] %vm896, %v2416
      %2454 = vst.msk [vmem:[#allocation3 + $0x58] sm:$0xff] %vm896, %v2418
      %2455 = vst.msk [vmem:[#allocation3 + $0x60] sm:$0xff] %vm896, %v2420
      %2456 = vst.msk [vmem:[#allocation3 + $0x68] sm:$0xff] %vm896, %v2422
      %2457 = vst.msk [vmem:[#allocation3 + $0x70] sm:$0xff] %vm896, %v2424
      %2458 = vst.msk [vmem:[#allocation3 + $0x78] sm:$0xff] %vm896, %v2426
      %v2459 = vld [vmem:[%s2362 + $0x1] sm:$0xff]
      %v2460 = vld [vmem:[%s2362 + $0x9] sm:$0xff]
      %v2461 = vld [vmem:[%s2362 + $0x19] sm:$0xff]
      %v2462 = vld [vmem:[%s2362 + $0x21] sm:$0xff]
      %v2463 = vld [vmem:[%s2362 + $0x31] sm:$0xff]
      %v2464 = vld [vmem:[%s2362 + $0x39] sm:$0xff]
      %v2465 = vld [vmem:[%s2362 + $0x49] sm:$0xff]
      %v2466 = vld [vmem:[%s2362 + $0x51] sm:$0xff]
      %v2467 = vld [vmem:[%s2362 + $0x61] sm:$0xff]
      %v2468 = vld [vmem:[%s2362 + $0x69] sm:$0xff]
      %v2469 = vld [vmem:[%s2362 + $0x79] sm:$0xff]
      %v2470 = vld [vmem:[%s2362 + $0x81] sm:$0xff]
      %v2471 = vld [vmem:[%s2362 + $0x91] sm:$0xff]
      %v2472 = vld [vmem:[%s2362 + $0x99] sm:$0xff]
      %v2473 = vld [vmem:[%s2362 + $0xa9] sm:$0xff]
      %v2474 = vld [vmem:[%s2362 + $0xb1] sm:$0xff]
      %2491 = vrot.lane.b32.xlu0 %v2459, 32
      %v2492 = vpop.permute.xlu0 %2491
      %2493 = vrot.lane.b32.xlu0 %v2460, 32
      %v2494 = vpop.permute.xlu0 %2493
      %2495 = vrot.lane.b32.xlu0 %v2461, 32
      %v2496 = vpop.permute.xlu0 %2495
      %2497 = vrot.lane.b32.xlu0 %v2462, 32
      %v2498 = vpop.permute.xlu0 %2497
      %2499 = vrot.lane.b32.xlu0 %v2463, 32
      %v2500 = vpop.permute.xlu0 %2499
      %2501 = vrot.lane.b32.xlu0 %v2464, 32
      %v2502 = vpop.permute.xlu0 %2501
      %2503 = vrot.lane.b32.xlu0 %v2465, 32
      %v2504 = vpop.permute.xlu0 %2503
      %2505 = vrot.lane.b32.xlu0 %v2466, 32
      %v2506 = vpop.permute.xlu0 %2505
      %2507 = vrot.lane.b32.xlu0 %v2467, 32
      %v2508 = vpop.permute.xlu0 %2507
      %2509 = vrot.lane.b32.xlu0 %v2468, 32
      %v2510 = vpop.permute.xlu0 %2509
      %2511 = vrot.lane.b32.xlu0 %v2469, 32
      %v2512 = vpop.permute.xlu0 %2511
      %2513 = vrot.lane.b32.xlu0 %v2470, 32
      %v2514 = vpop.permute.xlu0 %2513
      %2515 = vrot.lane.b32.xlu0 %v2471, 32
      %v2516 = vpop.permute.xlu0 %2515
      %2517 = vrot.lane.b32.xlu0 %v2472, 32
      %v2518 = vpop.permute.xlu0 %2517
      %2519 = vrot.lane.b32.xlu0 %v2473, 32
      %v2520 = vpop.permute.xlu0 %2519
      %2521 = vrot.lane.b32.xlu0 %v2474, 32
      %v2522 = vpop.permute.xlu0 %2521
      %2539 = vst.msk [vmem:[#allocation3] sm:$0xff] %vm993, %v2492
      %2540 = vst.msk [vmem:[#allocation3 + $0x8] sm:$0xff] %vm993, %v2494
      %2541 = vst.msk [vmem:[#allocation3 + $0x10] sm:$0xff] %vm993, %v2496
      %2542 = vst.msk [vmem:[#allocation3 + $0x18] sm:$0xff] %vm993, %v2498
      %2543 = vst.msk [vmem:[#allocation3 + $0x20] sm:$0xff] %vm993, %v2500
      %2544 = vst.msk [vmem:[#allocation3 + $0x28] sm:$0xff] %vm993, %v2502
      %2545 = vst.msk [vmem:[#allocation3 + $0x30] sm:$0xff] %vm993, %v2504
      %2546 = vst.msk [vmem:[#allocation3 + $0x38] sm:$0xff] %vm993, %v2506
      %2547 = vst.msk [vmem:[#allocation3 + $0x40] sm:$0xff] %vm993, %v2508
      %2548 = vst.msk [vmem:[#allocation3 + $0x48] sm:$0xff] %vm993, %v2510
      %2549 = vst.msk [vmem:[#allocation3 + $0x50] sm:$0xff] %vm993, %v2512
      %2550 = vst.msk [vmem:[#allocation3 + $0x58] sm:$0xff] %vm993, %v2514
      %2551 = vst.msk [vmem:[#allocation3 + $0x60] sm:$0xff] %vm993, %v2516
      %2552 = vst.msk [vmem:[#allocation3 + $0x68] sm:$0xff] %vm993, %v2518
      %2553 = vst.msk [vmem:[#allocation3 + $0x70] sm:$0xff] %vm993, %v2520
      %2554 = vst.msk [vmem:[#allocation3 + $0x78] sm:$0xff] %vm993, %v2522
      %v2555 = vld [vmem:[%s2362 + $0x2] sm:$0xff]
      %v2556 = vld [vmem:[%s2362 + $0xa] sm:$0xff]
      %v2557 = vld [vmem:[%s2362 + $0x1a] sm:$0xff]
      %v2558 = vld [vmem:[%s2362 + $0x22] sm:$0xff]
      %v2559 = vld [vmem:[%s2362 + $0x32] sm:$0xff]
      %v2560 = vld [vmem:[%s2362 + $0x3a] sm:$0xff]
      %v2561 = vld [vmem:[%s2362 + $0x4a] sm:$0xff]
      %v2562 = vld [vmem:[%s2362 + $0x52] sm:$0xff]
      %v2563 = vld [vmem:[%s2362 + $0x62] sm:$0xff]
      %v2564 = vld [vmem:[%s2362 + $0x6a] sm:$0xff]
      %v2565 = vld [vmem:[%s2362 + $0x7a] sm:$0xff]
      %v2566 = vld [vmem:[%s2362 + $0x82] sm:$0xff]
      %v2567 = vld [vmem:[%s2362 + $0x92] sm:$0xff]
      %v2568 = vld [vmem:[%s2362 + $0x9a] sm:$0xff]
      %v2569 = vld [vmem:[%s2362 + $0xaa] sm:$0xff]
      %v2570 = vld [vmem:[%s2362 + $0xb2] sm:$0xff]
      %2587 = vrot.lane.b32.xlu0 %v2555, 40
      %v2588 = vpop.permute.xlu0 %2587
      %2589 = vrot.lane.b32.xlu0 %v2556, 40
      %v2590 = vpop.permute.xlu0 %2589
      %2591 = vrot.lane.b32.xlu0 %v2557, 40
      %v2592 = vpop.permute.xlu0 %2591
      %2593 = vrot.lane.b32.xlu0 %v2558, 40
      %v2594 = vpop.permute.xlu0 %2593
      %2595 = vrot.lane.b32.xlu0 %v2559, 40
      %v2596 = vpop.permute.xlu0 %2595
      %2597 = vrot.lane.b32.xlu0 %v2560, 40
      %v2598 = vpop.permute.xlu0 %2597
      %2599 = vrot.lane.b32.xlu0 %v2561, 40
      %v2600 = vpop.permute.xlu0 %2599
      %2601 = vrot.lane.b32.xlu0 %v2562, 40
      %v2602 = vpop.permute.xlu0 %2601
      %2603 = vrot.lane.b32.xlu0 %v2563, 40
      %v2604 = vpop.permute.xlu0 %2603
      %2605 = vrot.lane.b32.xlu0 %v2564, 40
      %v2606 = vpop.permute.xlu0 %2605
      %2607 = vrot.lane.b32.xlu0 %v2565, 40
      %v2608 = vpop.permute.xlu0 %2607
      %2609 = vrot.lane.b32.xlu0 %v2566, 40
      %v2610 = vpop.permute.xlu0 %2609
      %2611 = vrot.lane.b32.xlu0 %v2567, 40
      %v2612 = vpop.permute.xlu0 %2611
      %2613 = vrot.lane.b32.xlu0 %v2568, 40
      %v2614 = vpop.permute.xlu0 %2613
      %2615 = vrot.lane.b32.xlu0 %v2569, 40
      %v2616 = vpop.permute.xlu0 %2615
      %2617 = vrot.lane.b32.xlu0 %v2570, 40
      %v2618 = vpop.permute.xlu0 %2617
      %2635 = vst.msk [vmem:[#allocation3] sm:$0xff] %vm1090, %v2588
      %2636 = vst.msk [vmem:[#allocation3 + $0x8] sm:$0xff] %vm1090, %v2590
      %2637 = vst.msk [vmem:[#allocation3 + $0x10] sm:$0xff] %vm1090, %v2592
      %2638 = vst.msk [vmem:[#allocation3 + $0x18] sm:$0xff] %vm1090, %v2594
      %2639 = vst.msk [vmem:[#allocation3 + $0x20] sm:$0xff] %vm1090, %v2596
      %2640 = vst.msk [vmem:[#allocation3 + $0x28] sm:$0xff] %vm1090, %v2598
      %2641 = vst.msk [vmem:[#allocation3 + $0x30] sm:$0xff] %vm1090, %v2600
      %2642 = vst.msk [vmem:[#allocation3 + $0x38] sm:$0xff] %vm1090, %v2602
      %2643 = vst.msk [vmem:[#allocation3 + $0x40] sm:$0xff] %vm1090, %v2604
      %2644 = vst.msk [vmem:[#allocation3 + $0x48] sm:$0xff] %vm1090, %v2606
      %2645 = vst.msk [vmem:[#allocation3 + $0x50] sm:$0xff] %vm1090, %v2608
      %2646 = vst.msk [vmem:[#allocation3 + $0x58] sm:$0xff] %vm1090, %v2610
      %2647 = vst.msk [vmem:[#allocation3 + $0x60] sm:$0xff] %vm1090, %v2612
      %2648 = vst.msk [vmem:[#allocation3 + $0x68] sm:$0xff] %vm1090, %v2614
      %2649 = vst.msk [vmem:[#allocation3 + $0x70] sm:$0xff] %vm1090, %v2616
      %2650 = vst.msk [vmem:[#allocation3 + $0x78] sm:$0xff] %vm1090, %v2618
      %s2651 = scalar_lea.vmem [#allocation2], 240
      %v2652 = vld [vmem:[%s2651] sm:$0xff]
      %v2653 = vld [vmem:[%s2651 + $0x8] sm:$0xff]
      %v2654 = vld [vmem:[%s2651 + $0x18] sm:$0xff]
      %v2655 = vld [vmem:[%s2651 + $0x20] sm:$0xff]
      %v2656 = vld [vmem:[%s2651 + $0x30] sm:$0xff]
      %v2657 = vld [vmem:[%s2651 + $0x38] sm:$0xff]
      %v2658 = vld [vmem:[%s2651 + $0x48] sm:$0xff]
      %v2659 = vld [vmem:[%s2651 + $0x50] sm:$0xff]
      %v2660 = vld [vmem:[%s2651 + $0x60] sm:$0xff]
      %v2661 = vld [vmem:[%s2651 + $0x68] sm:$0xff]
      %v2662 = vld [vmem:[%s2651 + $0x78] sm:$0xff]
      %v2663 = vld [vmem:[%s2651 + $0x80] sm:$0xff]
      %v2664 = vld [vmem:[%s2651 + $0x90] sm:$0xff]
      %v2665 = vld [vmem:[%s2651 + $0x98] sm:$0xff]
      %v2666 = vld [vmem:[%s2651 + $0xa8] sm:$0xff]
      %v2667 = vld [vmem:[%s2651 + $0xb0] sm:$0xff]
      %2684 = vrot.lane.b32.xlu0 %v2652, 48
      %v2685 = vpop.permute.xlu0 %2684
      %2686 = vrot.lane.b32.xlu0 %v2653, 48
      %v2687 = vpop.permute.xlu0 %2686
      %2688 = vrot.lane.b32.xlu0 %v2654, 48
      %v2689 = vpop.permute.xlu0 %2688
      %2690 = vrot.lane.b32.xlu0 %v2655, 48
      %v2691 = vpop.permute.xlu0 %2690
      %2692 = vrot.lane.b32.xlu0 %v2656, 48
      %v2693 = vpop.permute.xlu0 %2692
      %2694 = vrot.lane.b32.xlu0 %v2657, 48
      %v2695 = vpop.permute.xlu0 %2694
      %2696 = vrot.lane.b32.xlu0 %v2658, 48
      %v2697 = vpop.permute.xlu0 %2696
      %2698 = vrot.lane.b32.xlu0 %v2659, 48
      %v2699 = vpop.permute.xlu0 %2698
      %2700 = vrot.lane.b32.xlu0 %v2660, 48
      %v2701 = vpop.permute.xlu0 %2700
      %2702 = vrot.lane.b32.xlu0 %v2661, 48
      %v2703 = vpop.permute.xlu0 %2702
      %2704 = vrot.lane.b32.xlu0 %v2662, 48
      %v2705 = vpop.permute.xlu0 %2704
      %2706 = vrot.lane.b32.xlu0 %v2663, 48
      %v2707 = vpop.permute.xlu0 %2706
      %2708 = vrot.lane.b32.xlu0 %v2664, 48
      %v2709 = vpop.permute.xlu0 %2708
      %2710 = vrot.lane.b32.xlu0 %v2665, 48
      %v2711 = vpop.permute.xlu0 %2710
      %2712 = vrot.lane.b32.xlu0 %v2666, 48
      %v2713 = vpop.permute.xlu0 %2712
      %2714 = vrot.lane.b32.xlu0 %v2667, 48
      %v2715 = vpop.permute.xlu0 %2714
      %2732 = vst.msk [vmem:[#allocation3] sm:$0xff] %vm1188, %v2685
      %2733 = vst.msk [vmem:[#allocation3 + $0x8] sm:$0xff] %vm1188, %v2687
      %2734 = vst.msk [vmem:[#allocation3 + $0x10] sm:$0xff] %vm1188, %v2689
      %2735 = vst.msk [vmem:[#allocation3 + $0x18] sm:$0xff] %vm1188, %v2691
      %2736 = vst.msk [vmem:[#allocation3 + $0x20] sm:$0xff] %vm1188, %v2693
      %2737 = vst.msk [vmem:[#allocation3 + $0x28] sm:$0xff] %vm1188, %v2695
      %2738 = vst.msk [vmem:[#allocation3 + $0x30] sm:$0xff] %vm1188, %v2697
      %2739 = vst.msk [vmem:[#allocation3 + $0x38] sm:$0xff] %vm1188, %v2699
      %2740 = vst.msk [vmem:[#allocation3 + $0x40] sm:$0xff] %vm1188, %v2701
      %2741 = vst.msk [vmem:[#allocation3 + $0x48] sm:$0xff] %vm1188, %v2703
      %2742 = vst.msk [vmem:[#allocation3 + $0x50] sm:$0xff] %vm1188, %v2705
      %2743 = vst.msk [vmem:[#allocation3 + $0x58] sm:$0xff] %vm1188, %v2707
      %2744 = vst.msk [vmem:[#allocation3 + $0x60] sm:$0xff] %vm1188, %v2709
      %2745 = vst.msk [vmem:[#allocation3 + $0x68] sm:$0xff] %vm1188, %v2711
      %2746 = vst.msk [vmem:[#allocation3 + $0x70] sm:$0xff] %vm1188, %v2713
      %2747 = vst.msk [vmem:[#allocation3 + $0x78] sm:$0xff] %vm1188, %v2715
      %v2748 = vld [vmem:[%s2651 + $0x1] sm:$0xff]
      %v2749 = vld [vmem:[%s2651 + $0x9] sm:$0xff]
      %v2750 = vld [vmem:[%s2651 + $0x19] sm:$0xff]
      %v2751 = vld [vmem:[%s2651 + $0x21] sm:$0xff]
      %v2752 = vld [vmem:[%s2651 + $0x31] sm:$0xff]
      %v2753 = vld [vmem:[%s2651 + $0x39] sm:$0xff]
      %v2754 = vld [vmem:[%s2651 + $0x49] sm:$0xff]
      %v2755 = vld [vmem:[%s2651 + $0x51] sm:$0xff]
      %v2756 = vld [vmem:[%s2651 + $0x61] sm:$0xff]
      %v2757 = vld [vmem:[%s2651 + $0x69] sm:$0xff]
      %v2758 = vld [vmem:[%s2651 + $0x79] sm:$0xff]
      %v2759 = vld [vmem:[%s2651 + $0x81] sm:$0xff]
      %v2760 = vld [vmem:[%s2651 + $0x91] sm:$0xff]
      %v2761 = vld [vmem:[%s2651 + $0x99] sm:$0xff]
      %v2762 = vld [vmem:[%s2651 + $0xa9] sm:$0xff]
      %v2763 = vld [vmem:[%s2651 + $0xb1] sm:$0xff]
      %2780 = vrot.lane.b32.xlu0 %v2748, 56
      %v2781 = vpop.permute.xlu0 %2780
      %2782 = vrot.lane.b32.xlu0 %v2749, 56
      %v2783 = vpop.permute.xlu0 %2782
      %2784 = vrot.lane.b32.xlu0 %v2750, 56
      %v2785 = vpop.permute.xlu0 %2784
      %2786 = vrot.lane.b32.xlu0 %v2751, 56
      %v2787 = vpop.permute.xlu0 %2786
      %2788 = vrot.lane.b32.xlu0 %v2752, 56
      %v2789 = vpop.permute.xlu0 %2788
      %2790 = vrot.lane.b32.xlu0 %v2753, 56
      %v2791 = vpop.permute.xlu0 %2790
      %2792 = vrot.lane.b32.xlu0 %v2754, 56
      %v2793 = vpop.permute.xlu0 %2792
      %2794 = vrot.lane.b32.xlu0 %v2755, 56
      %v2795 = vpop.permute.xlu0 %2794
      %2796 = vrot.lane.b32.xlu0 %v2756, 56
      %v2797 = vpop.permute.xlu0 %2796
      %2798 = vrot.lane.b32.xlu0 %v2757, 56
      %v2799 = vpop.permute.xlu0 %2798
      %2800 = vrot.lane.b32.xlu0 %v2758, 56
      %v2801 = vpop.permute.xlu0 %2800
      %2802 = vrot.lane.b32.xlu0 %v2759, 56
      %v2803 = vpop.permute.xlu0 %2802
      %2804 = vrot.lane.b32.xlu0 %v2760, 56
      %v2805 = vpop.permute.xlu0 %2804
      %2806 = vrot.lane.b32.xlu0 %v2761, 56
      %v2807 = vpop.permute.xlu0 %2806
      %2808 = vrot.lane.b32.xlu0 %v2762, 56
      %v2809 = vpop.permute.xlu0 %2808
      %2810 = vrot.lane.b32.xlu0 %v2763, 56
      %v2811 = vpop.permute.xlu0 %2810
      %2828 = vst.msk [vmem:[#allocation3] sm:$0xff] %vm1285, %v2781
      %2829 = vst.msk [vmem:[#allocation3 + $0x8] sm:$0xff] %vm1285, %v2783
      %2830 = vst.msk [vmem:[#allocation3 + $0x10] sm:$0xff] %vm1285, %v2785
      %2831 = vst.msk [vmem:[#allocation3 + $0x18] sm:$0xff] %vm1285, %v2787
      %2832 = vst.msk [vmem:[#allocation3 + $0x20] sm:$0xff] %vm1285, %v2789
      %2833 = vst.msk [vmem:[#allocation3 + $0x28] sm:$0xff] %vm1285, %v2791
      %2834 = vst.msk [vmem:[#allocation3 + $0x30] sm:$0xff] %vm1285, %v2793
      %2835 = vst.msk [vmem:[#allocation3 + $0x38] sm:$0xff] %vm1285, %v2795
      %2836 = vst.msk [vmem:[#allocation3 + $0x40] sm:$0xff] %vm1285, %v2797
      %2837 = vst.msk [vmem:[#allocation3 + $0x48] sm:$0xff] %vm1285, %v2799
      %2838 = vst.msk [vmem:[#allocation3 + $0x50] sm:$0xff] %vm1285, %v2801
      %2839 = vst.msk [vmem:[#allocation3 + $0x58] sm:$0xff] %vm1285, %v2803
      %2840 = vst.msk [vmem:[#allocation3 + $0x60] sm:$0xff] %vm1285, %v2805
      %2841 = vst.msk [vmem:[#allocation3 + $0x68] sm:$0xff] %vm1285, %v2807
      %2842 = vst.msk [vmem:[#allocation3 + $0x70] sm:$0xff] %vm1285, %v2809
      %2843 = vst.msk [vmem:[#allocation3 + $0x78] sm:$0xff] %vm1285, %v2811
      %v2844 = vld [vmem:[%s2651 + $0x2] sm:$0xff]
      %v2845 = vld [vmem:[%s2651 + $0xa] sm:$0xff]
      %v2846 = vld [vmem:[%s2651 + $0x1a] sm:$0xff]
      %v2847 = vld [vmem:[%s2651 + $0x22] sm:$0xff]
      %v2848 = vld [vmem:[%s2651 + $0x32] sm:$0xff]
      %v2849 = vld [vmem:[%s2651 + $0x3a] sm:$0xff]
      %v2850 = vld [vmem:[%s2651 + $0x4a] sm:$0xff]
      %v2851 = vld [vmem:[%s2651 + $0x52] sm:$0xff]
      %v2852 = vld [vmem:[%s2651 + $0x62] sm:$0xff]
      %v2853 = vld [vmem:[%s2651 + $0x6a] sm:$0xff]
      %v2854 = vld [vmem:[%s2651 + $0x7a] sm:$0xff]
      %v2855 = vld [vmem:[%s2651 + $0x82] sm:$0xff]
      %v2856 = vld [vmem:[%s2651 + $0x92] sm:$0xff]
      %v2857 = vld [vmem:[%s2651 + $0x9a] sm:$0xff]
      %v2858 = vld [vmem:[%s2651 + $0xaa] sm:$0xff]
      %v2859 = vld [vmem:[%s2651 + $0xb2] sm:$0xff]
      %2876 = vrot.lane.b32.xlu0 %v2844, 64
      %v2877 = vpop.permute.xlu0 %2876
      %2878 = vrot.lane.b32.xlu0 %v2845, 64
      %v2879 = vpop.permute.xlu0 %2878
      %2880 = vrot.lane.b32.xlu0 %v2846, 64
      %v2881 = vpop.permute.xlu0 %2880
      %2882 = vrot.lane.b32.xlu0 %v2847, 64
      %v2883 = vpop.permute.xlu0 %2882
      %2884 = vrot.lane.b32.xlu0 %v2848, 64
      %v2885 = vpop.permute.xlu0 %2884
      %2886 = vrot.lane.b32.xlu0 %v2849, 64
      %v2887 = vpop.permute.xlu0 %2886
      %2888 = vrot.lane.b32.xlu0 %v2850, 64
      %v2889 = vpop.permute.xlu0 %2888
      %2890 = vrot.lane.b32.xlu0 %v2851, 64
      %v2891 = vpop.permute.xlu0 %2890
      %2892 = vrot.lane.b32.xlu0 %v2852, 64
      %v2893 = vpop.permute.xlu0 %2892
      %2894 = vrot.lane.b32.xlu0 %v2853, 64
      %v2895 = vpop.permute.xlu0 %2894
      %2896 = vrot.lane.b32.xlu0 %v2854, 64
      %v2897 = vpop.permute.xlu0 %2896
      %2898 = vrot.lane.b32.xlu0 %v2855, 64
      %v2899 = vpop.permute.xlu0 %2898
      %2900 = vrot.lane.b32.xlu0 %v2856, 64
      %v2901 = vpop.permute.xlu0 %2900
      %2902 = vrot.lane.b32.xlu0 %v2857, 64
      %v2903 = vpop.permute.xlu0 %2902
      %2904 = vrot.lane.b32.xlu0 %v2858, 64
      %v2905 = vpop.permute.xlu0 %2904
      %2906 = vrot.lane.b32.xlu0 %v2859, 64
      %v2907 = vpop.permute.xlu0 %2906
      %2924 = vst.msk [vmem:[#allocation3] sm:$0xff] %vm1382, %v2877
      %2925 = vst.msk [vmem:[#allocation3 + $0x8] sm:$0xff] %vm1382, %v2879
      %2926 = vst.msk [vmem:[#allocation3 + $0x10] sm:$0xff] %vm1382, %v2881
      %2927 = vst.msk [vmem:[#allocation3 + $0x18] sm:$0xff] %vm1382, %v2883
      %2928 = vst.msk [vmem:[#allocation3 + $0x20] sm:$0xff] %vm1382, %v2885
      %2929 = vst.msk [vmem:[#allocation3 + $0x28] sm:$0xff] %vm1382, %v2887
      %2930 = vst.msk [vmem:[#allocation3 + $0x30] sm:$0xff] %vm1382, %v2889
      %2931 = vst.msk [vmem:[#allocation3 + $0x38] sm:$0xff] %vm1382, %v2891
      %2932 = vst.msk [vmem:[#allocation3 + $0x40] sm:$0xff] %vm1382, %v2893
      %2933 = vst.msk [vmem:[#allocation3 + $0x48] sm:$0xff] %vm1382, %v2895
      %2934 = vst.msk [vmem:[#allocation3 + $0x50] sm:$0xff] %vm1382, %v2897
      %2935 = vst.msk [vmem:[#allocation3 + $0x58] sm:$0xff] %vm1382, %v2899
      %2936 = vst.msk [vmem:[#allocation3 + $0x60] sm:$0xff] %vm1382, %v2901
      %2937 = vst.msk [vmem:[#allocation3 + $0x68] sm:$0xff] %vm1382, %v2903
      %2938 = vst.msk [vmem:[#allocation3 + $0x70] sm:$0xff] %vm1382, %v2905
      %2939 = vst.msk [vmem:[#allocation3 + $0x78] sm:$0xff] %vm1382, %v2907
      %v2940 = vld [vmem:[#allocation3] sm:$0xff]
      %v2941 = vld [vmem:[#allocation3 + $0x8] sm:$0xff]
      %v2942 = vld [vmem:[#allocation3 + $0x10] sm:$0xff]
      %v2943 = vld [vmem:[#allocation3 + $0x18] sm:$0xff]
      %v2944 = vld [vmem:[#allocation3 + $0x20] sm:$0xff]
      %v2945 = vld [vmem:[#allocation3 + $0x28] sm:$0xff]
      %v2946 = vld [vmem:[#allocation3 + $0x30] sm:$0xff]
      %v2947 = vld [vmem:[#allocation3 + $0x38] sm:$0xff]
      %v2948 = vld [vmem:[#allocation3 + $0x40] sm:$0xff]
      %v2949 = vld [vmem:[#allocation3 + $0x48] sm:$0xff]
      %v2950 = vld [vmem:[#allocation3 + $0x50] sm:$0xff]
      %v2951 = vld [vmem:[#allocation3 + $0x58] sm:$0xff]
      %v2952 = vld [vmem:[#allocation3 + $0x60] sm:$0xff]
      %v2953 = vld [vmem:[#allocation3 + $0x68] sm:$0xff]
      %v2954 = vld [vmem:[#allocation3 + $0x70] sm:$0xff]
      %v2955 = vld [vmem:[#allocation3 + $0x78] sm:$0xff]
      %v2956 = vpack.c.bf16 %v2941, %v2940
      %v2957 = vpack.c.bf16 %v2943, %v2942
      %v2958 = vpack.c.bf16 %v2945, %v2944
      %v2959 = vpack.c.bf16 %v2947, %v2946
      %v2960 = vpack.c.bf16 %v2949, %v2948
      %v2961 = vpack.c.bf16 %v2951, %v2950
      %v2962 = vpack.c.bf16 %v2953, %v2952
      %v2963 = vpack.c.bf16 %v2955, %v2954
      %v2965 = vsel %vm1456, %v2956, 0
      %v2968 = vsel %vm1456, %v2957, 0
      %v2971 = vsel %vm1456, %v2958, 0
      %v2974 = vsel %vm1456, %v2959, 0
      %v2977 = vsel %vm1456, %v2960, 0
      %v2980 = vsel %vm1456, %v2961, 0
      %v2983 = vsel %vm1456, %v2962, 0
      %v2986 = vsel %vm1456, %v2963, 0
      %2988 = vmatprep.subr.bf16.mxu0 0
      %2989 = vmatpush1.bf16.msra.mxu0 %v1447
      %2990 = vmatprep.subr.bf16.mxu0 0
      %2991 = vmatpush1.bf16.msra.mxu0 %v1448
      %2992 = vmatprep.subr.bf16.mxu0 0
      %2993 = vmatpush1.bf16.msra.mxu0 %v1449
      %2994 = vmatprep.subr.bf16.mxu0 0
      %2995 = vmatpush1.bf16.msra.mxu0 %v1450
      %2996 = vmatprep.subr.bf16.mxu0 0
      %2997 = vmatpush1.bf16.msra.mxu0 %v1483
      %2998 = vmatprep.subr.bf16.mxu0 0
      %2999 = vmatpush1.bf16.msra.mxu0 0
      %3000 = vmatprep.subr.bf16.mxu0 0
      %3001 = vmatpush1.bf16.msra.mxu0 0
      %3002 = vmatprep.subr.bf16.mxu0 0
      %3003 = vmatpush1.bf16.msra.mxu0 0
      %3004 = vmatprep.subr.bf16.mxu0 0
      %3005 = vmatpush1.bf16.msra.mxu0 0
      %3006 = vmatprep.subr.bf16.mxu0 0
      %3007 = vmatpush1.bf16.msra.mxu0 0
      %3008 = vmatprep.subr.bf16.mxu0 0
      %3009 = vmatpush1.bf16.msra.mxu0 0
      %3010 = vmatprep.subr.bf16.mxu0 0
      %3011 = vmatpush1.bf16.msra.mxu0 0
      %3012 = vmatprep.subr.bf16.mxu0 0
      %3013 = vmatpush1.bf16.msra.mxu0 0
      %3014 = vmatprep.subr.bf16.mxu0 0
      %3015 = vmatpush1.bf16.msra.mxu0 0
      %3016 = vmatprep.subr.bf16.mxu0 0
      %3017 = vmatpush1.bf16.msra.mxu0 0
      %3018 = vmatprep.subr.bf16.mxu0 0
      %3019 = vmatpush1.bf16.msra.mxu0 0
      %3020 = vmatprep.mubr.bf16.mxu0 0
      %3021 = vmatmul.mubr.bf16.gmra.mrb[0].mxu0 %v2965
      %v3022 = vpop.f32.mrb[0].mxu0
      %v3023 = vadd.f32 %v1427, %v3022
      %v3024 = vpop.f32.mrb[0].mxu0
      %v3025 = vpop.f32.mrb[0].mxu0
      %v3026 = vadd.f32 %v1427, %v3025
      %v3027 = vpop.f32.mrb[0].mxu0
      %3028 = vmatprep.mubr.bf16.mxu0 0
      %3029 = vmatmul.mubr.bf16.gmra.mrb[0].mxu0 %v2968
      %v3030 = vpop.f32.mrb[0].mxu0
      %v3031 = vadd.f32 %v1427, %v3030
      %v3032 = vpop.f32.mrb[0].mxu0
      %v3033 = vpop.f32.mrb[0].mxu0
      %v3034 = vadd.f32 %v1427, %v3033
      %v3035 = vpop.f32.mrb[0].mxu0
      %3036 = vmatprep.mubr.bf16.mxu0 0
      %3037 = vmatmul.mubr.bf16.gmra.mrb[0].mxu0 %v2971
      %v3038 = vpop.f32.mrb[0].mxu0
      %v3039 = vadd.f32 %v1427, %v3038
      %v3040 = vpop.f32.mrb[0].mxu0
      %v3041 = vpop.f32.mrb[0].mxu0
      %v3042 = vadd.f32 %v1427, %v3041
      %v3043 = vpop.f32.mrb[0].mxu0
      %3044 = vmatprep.mubr.bf16.mxu0 0
      %3045 = vmatmul.mubr.bf16.gmra.mrb[0].mxu0 %v2974
      %v3046 = vpop.f32.mrb[0].mxu0
      %v3047 = vadd.f32 %v1427, %v3046
      %v3048 = vpop.f32.mrb[0].mxu0
      %v3049 = vpop.f32.mrb[0].mxu0
      %v3050 = vadd.f32 %v1427, %v3049
      %v3051 = vpop.f32.mrb[0].mxu0
      %3052 = vmatprep.mubr.bf16.mxu0 0
      %3053 = vmatmul.mubr.bf16.gmra.mrb[0].mxu0 %v2977
      %v3054 = vpop.f32.mrb[0].mxu0
      %v3055 = vadd.f32 %v1427, %v3054
      %v3056 = vpop.f32.mrb[0].mxu0
      %v3057 = vpop.f32.mrb[0].mxu0
      %v3058 = vadd.f32 %v1427, %v3057
      %v3059 = vpop.f32.mrb[0].mxu0
      %3060 = vmatprep.mubr.bf16.mxu0 0
      %3061 = vmatmul.mubr.bf16.gmra.mrb[0].mxu0 %v2980
      %v3062 = vpop.f32.mrb[0].mxu0
      %v3063 = vadd.f32 %v1427, %v3062
      %v3064 = vpop.f32.mrb[0].mxu0
      %v3065 = vpop.f32.mrb[0].mxu0
      %v3066 = vadd.f32 %v1427, %v3065
      %v3067 = vpop.f32.mrb[0].mxu0
      %3068 = vmatprep.mubr.bf16.mxu0 0
      %3069 = vmatmul.mubr.bf16.gmra.mrb[0].mxu0 %v2983
      %v3070 = vpop.f32.mrb[0].mxu0
      %v3071 = vadd.f32 %v1427, %v3070
      %v3072 = vpop.f32.mrb[0].mxu0
      %v3073 = vpop.f32.mrb[0].mxu0
      %v3074 = vadd.f32 %v1427, %v3073
      %v3075 = vpop.f32.mrb[0].mxu0
      %3076 = vmatprep.mubr.bf16.mxu0 0
      %3077 = vmatmul.mubr.bf16.gmra.mrb[0].mxu0 %v2986
      %v3078 = vpop.f32.mrb[0].mxu0
      %v3079 = vadd.f32 %v1427, %v3078
      %v3080 = vpop.f32.mrb[0].mxu0
      %v3081 = vpop.f32.mrb[0].mxu0
      %v3082 = vadd.f32 %v1427, %v3081
      %v3083 = vpop.f32.mrb[0].mxu0
      %3084 = vdwg.mxu0
      %v3085 = vxor.u32 %v3023, 2147483648
      %v3086 = vxor.u32 %v3026, 2147483648
      %v3087 = vxor.u32 %v3031, 2147483648
      %v3088 = vxor.u32 %v3034, 2147483648
      %v3089 = vxor.u32 %v3039, 2147483648
      %v3090 = vxor.u32 %v3042, 2147483648
      %v3091 = vxor.u32 %v3047, 2147483648
      %v3092 = vxor.u32 %v3050, 2147483648
      %v3093 = vxor.u32 %v3055, 2147483648
      %v3094 = vxor.u32 %v3058, 2147483648
      %v3095 = vxor.u32 %v3063, 2147483648
      %v3096 = vxor.u32 %v3066, 2147483648
      %v3097 = vxor.u32 %v3071, 2147483648
      %v3098 = vxor.u32 %v3074, 2147483648
      %v3099 = vxor.u32 %v3079, 2147483648
      %v3100 = vxor.u32 %v3082, 2147483648
      %v3101 = vmul.f32 %v3085, 1.442695
      %v3102 = vpow.pop %v3101
      %v3103 = vmul.f32 %v3086, 1.442695
      %v3104 = vpow.pop %v3103
      %v3105 = vmul.f32 %v3087, 1.442695
      %v3106 = vpow.pop %v3105
      %v3107 = vmul.f32 %v3088, 1.442695
      %v3108 = vpow.pop %v3107
      %v3109 = vmul.f32 %v3089, 1.442695
      %v3110 = vpow.pop %v3109
      %v3111 = vmul.f32 %v3090, 1.442695
      %v3112 = vpow.pop %v3111
      %v3113 = vmul.f32 %v3091, 1.442695
      %v3114 = vpow.pop %v3113
      %v3115 = vmul.f32 %v3092, 1.442695
      %v3116 = vpow.pop %v3115
      %v3117 = vmul.f32 %v3093, 1.442695
      %v3118 = vpow.pop %v3117
      %v3119 = vmul.f32 %v3094, 1.442695
      %v3120 = vpow.pop %v3119
      %v3121 = vmul.f32 %v3095, 1.442695
      %v3122 = vpow.pop %v3121
      %v3123 = vmul.f32 %v3096, 1.442695
      %v3124 = vpow.pop %v3123
      %v3125 = vmul.f32 %v3097, 1.442695
      %v3126 = vpow.pop %v3125
      %v3127 = vmul.f32 %v3098, 1.442695
      %v3128 = vpow.pop %v3127
      %v3129 = vmul.f32 %v3099, 1.442695
      %v3130 = vpow.pop %v3129
      %v3131 = vmul.f32 %v3100, 1.442695
      %v3132 = vpow.pop %v3131
      %v3133 = vadd.f32 %v3102, 1.0
      %v3134 = vadd.f32 %v3104, 1.0
      %v3135 = vadd.f32 %v3106, 1.0
      %v3136 = vadd.f32 %v3108, 1.0
      %v3137 = vadd.f32 %v3110, 1.0
      %v3138 = vadd.f32 %v3112, 1.0
      %v3139 = vadd.f32 %v3114, 1.0
      %v3140 = vadd.f32 %v3116, 1.0
      %v3141 = vadd.f32 %v3118, 1.0
      %v3142 = vadd.f32 %v3120, 1.0
      %v3143 = vadd.f32 %v3122, 1.0
      %v3144 = vadd.f32 %v3124, 1.0
      %v3145 = vadd.f32 %v3126, 1.0
      %v3146 = vadd.f32 %v3128, 1.0
      %v3147 = vadd.f32 %v3130, 1.0
      %v3148 = vadd.f32 %v3132, 1.0
      %v3149 = vrcp.pop %v3133
      %v3150 = vmul.f32 1.0, %v3149
      %v3151 = vrcp.pop %v3134
      %v3152 = vmul.f32 1.0, %v3151
      %v3153 = vrcp.pop %v3135
      %v3154 = vmul.f32 1.0, %v3153
      %v3155 = vrcp.pop %v3136
      %v3156 = vmul.f32 1.0, %v3155
      %v3157 = vrcp.pop %v3137
      %v3158 = vmul.f32 1.0, %v3157
      %v3159 = vrcp.pop %v3138
      %v3160 = vmul.f32 1.0, %v3159
      %v3161 = vrcp.pop %v3139
      %v3162 = vmul.f32 1.0, %v3161
      %v3163 = vrcp.pop %v3140
      %v3164 = vmul.f32 1.0, %v3163
      %v3165 = vrcp.pop %v3141
      %v3166 = vmul.f32 1.0, %v3165
      %v3167 = vrcp.pop %v3142
      %v3168 = vmul.f32 1.0, %v3167
      %v3169 = vrcp.pop %v3143
      %v3170 = vmul.f32 1.0, %v3169
      %v3171 = vrcp.pop %v3144
      %v3172 = vmul.f32 1.0, %v3171
      %v3173 = vrcp.pop %v3145
      %v3174 = vmul.f32 1.0, %v3173
      %v3175 = vrcp.pop %v3146
      %v3176 = vmul.f32 1.0, %v3175
      %v3177 = vrcp.pop %v3147
      %v3178 = vmul.f32 1.0, %v3177
      %v3179 = vrcp.pop %v3148
      %v3180 = vmul.f32 1.0, %v3179
      %s3181 = scalar_lea.vmem %s261, 128
      %v3182 = vld [vmem:[%s3181] sm:$0xff]
      %v3183 = vld [vmem:[%s3181 + $0x8] sm:$0xff]
      %v3184 = vld [vmem:[%s3181 + $0x10] sm:$0xff]
      %v3185 = vld [vmem:[%s3181 + $0x18] sm:$0xff]
      %v3186 = vld [vmem:[%s3181 + $0x20] sm:$0xff]
      %v3187 = vld [vmem:[%s3181 + $0x28] sm:$0xff]
      %v3188 = vld [vmem:[%s3181 + $0x30] sm:$0xff]
      %v3189 = vld [vmem:[%s3181 + $0x38] sm:$0xff]
      %v3190 = vld [vmem:[%s3181 + $0x40] sm:$0xff]
      %v3191 = vld [vmem:[%s3181 + $0x48] sm:$0xff]
      %v3192 = vld [vmem:[%s3181 + $0x50] sm:$0xff]
      %v3193 = vld [vmem:[%s3181 + $0x58] sm:$0xff]
      %v3194 = vld [vmem:[%s3181 + $0x60] sm:$0xff]
      %v3195 = vld [vmem:[%s3181 + $0x68] sm:$0xff]
      %v3196 = vld [vmem:[%s3181 + $0x70] sm:$0xff]
      %v3197 = vld [vmem:[%s3181 + $0x78] sm:$0xff]
      %s3198 = scalar_lea.vmem %s266, 128
      %v3199 = vld [vmem:[%s3198] sm:$0xff]
      %v3200 = vld [vmem:[%s3198 + $0x8] sm:$0xff]
      %v3201 = vld [vmem:[%s3198 + $0x10] sm:$0xff]
      %v3202 = vld [vmem:[%s3198 + $0x18] sm:$0xff]
      %v3203 = vld [vmem:[%s3198 + $0x20] sm:$0xff]
      %v3204 = vld [vmem:[%s3198 + $0x28] sm:$0xff]
      %v3205 = vld [vmem:[%s3198 + $0x30] sm:$0xff]
      %v3206 = vld [vmem:[%s3198 + $0x38] sm:$0xff]
      %v3207 = vld [vmem:[%s3198 + $0x40] sm:$0xff]
      %v3208 = vld [vmem:[%s3198 + $0x48] sm:$0xff]
      %v3209 = vld [vmem:[%s3198 + $0x50] sm:$0xff]
      %v3210 = vld [vmem:[%s3198 + $0x58] sm:$0xff]
      %v3211 = vld [vmem:[%s3198 + $0x60] sm:$0xff]
      %v3212 = vld [vmem:[%s3198 + $0x68] sm:$0xff]
      %v3213 = vld [vmem:[%s3198 + $0x70] sm:$0xff]
      %v3214 = vld [vmem:[%s3198 + $0x78] sm:$0xff]
      %v3215 = vmul.f32 %v3150, %v3182
      %v3216 = vmul.f32 %v3152, %v3183
      %v3217 = vmul.f32 %v3154, %v3184
      %v3218 = vmul.f32 %v3156, %v3185
      %v3219 = vmul.f32 %v3158, %v3186
      %v3220 = vmul.f32 %v3160, %v3187
      %v3221 = vmul.f32 %v3162, %v3188
      %v3222 = vmul.f32 %v3164, %v3189
      %v3223 = vmul.f32 %v3166, %v3190
      %v3224 = vmul.f32 %v3168, %v3191
      %v3225 = vmul.f32 %v3170, %v3192
      %v3226 = vmul.f32 %v3172, %v3193
      %v3227 = vmul.f32 %v3174, %v3194
      %v3228 = vmul.f32 %v3176, %v3195
      %v3229 = vmul.f32 %v3178, %v3196
      %v3230 = vmul.f32 %v3180, %v3197
      %3247 = vrot.lane.b32.xlu0 %v3199, 4
      %v3248 = vpop.permute.xlu0 %3247
      %3249 = vrot.lane.b32.xlu0 %v3200, 4
      %v3250 = vpop.permute.xlu0 %3249
      %3251 = vrot.lane.b32.xlu0 %v3201, 4
      %v3252 = vpop.permute.xlu0 %3251
      %3253 = vrot.lane.b32.xlu0 %v3202, 4
      %v3254 = vpop.permute.xlu0 %3253
      %3255 = vrot.lane.b32.xlu0 %v3203, 4
      %v3256 = vpop.permute.xlu0 %3255
      %3257 = vrot.lane.b32.xlu0 %v3204, 4
      %v3258 = vpop.permute.xlu0 %3257
      %3259 = vrot.lane.b32.xlu0 %v3205, 4
      %v3260 = vpop.permute.xlu0 %3259
      %3261 = vrot.lane.b32.xlu0 %v3206, 4
      %v3262 = vpop.permute.xlu0 %3261
      %3263 = vrot.lane.b32.xlu0 %v3207, 4
      %v3264 = vpop.permute.xlu0 %3263
      %3265 = vrot.lane.b32.xlu0 %v3208, 4
      %v3266 = vpop.permute.xlu0 %3265
      %3267 = vrot.lane.b32.xlu0 %v3209, 4
      %v3268 = vpop.permute.xlu0 %3267
      %3269 = vrot.lane.b32.xlu0 %v3210, 4
      %v3270 = vpop.permute.xlu0 %3269
      %3271 = vrot.lane.b32.xlu0 %v3211, 4
      %v3272 = vpop.permute.xlu0 %3271
      %3273 = vrot.lane.b32.xlu0 %v3212, 4
      %v3274 = vpop.permute.xlu0 %3273
      %3275 = vrot.lane.b32.xlu0 %v3213, 4
      %v3276 = vpop.permute.xlu0 %3275
      %3277 = vrot.lane.b32.xlu0 %v3214, 4
      %v3278 = vpop.permute.xlu0 %3277
      %v3295 = vmul.f32 %v3150, %v3248
      %v3296 = vmul.f32 %v3152, %v3250
      %v3297 = vmul.f32 %v3154, %v3252
      %v3298 = vmul.f32 %v3156, %v3254
      %v3299 = vmul.f32 %v3158, %v3256
      %v3300 = vmul.f32 %v3160, %v3258
      %v3301 = vmul.f32 %v3162, %v3260
      %v3302 = vmul.f32 %v3164, %v3262
      %v3303 = vmul.f32 %v3166, %v3264
      %v3304 = vmul.f32 %v3168, %v3266
      %v3305 = vmul.f32 %v3170, %v3268
      %v3306 = vmul.f32 %v3172, %v3270
      %v3307 = vmul.f32 %v3174, %v3272
      %v3308 = vmul.f32 %v3176, %v3274
      %v3309 = vmul.f32 %v3178, %v3276
      %v3310 = vmul.f32 %v3180, %v3278
      %v3311 = vpack.c.bf16 %v3216, %v3215
      %v3312 = vpack.c.bf16 %v3218, %v3217
      %v3313 = vpack.c.bf16 %v3220, %v3219
      %v3314 = vpack.c.bf16 %v3222, %v3221
      %v3315 = vpack.c.bf16 %v3224, %v3223
      %v3316 = vpack.c.bf16 %v3226, %v3225
      %v3317 = vpack.c.bf16 %v3228, %v3227
      %v3318 = vpack.c.bf16 %v3230, %v3229
      %v3319 = vpack.c.bf16 %v3296, %v3295
      %v3320 = vpack.c.bf16 %v3298, %v3297
      %v3321 = vpack.c.bf16 %v3300, %v3299
      %v3322 = vpack.c.bf16 %v3302, %v3301
      %v3323 = vpack.c.bf16 %v3304, %v3303
      %v3324 = vpack.c.bf16 %v3306, %v3305
      %v3325 = vpack.c.bf16 %v3308, %v3307
      %v3326 = vpack.c.bf16 %v3310, %v3309
      %3335 = vrot.lane.b32.xlu0 %v3319, 124
      %v3336 = vpop.permute.xlu0 %3335
      %3337 = vrot.lane.b32.xlu0 %v3320, 124
      %v3338 = vpop.permute.xlu0 %3337
      %3339 = vrot.lane.b32.xlu0 %v3321, 124
      %v3340 = vpop.permute.xlu0 %3339
      %3341 = vrot.lane.b32.xlu0 %v3322, 124
      %v3342 = vpop.permute.xlu0 %3341
      %3343 = vrot.lane.b32.xlu0 %v3323, 124
      %v3344 = vpop.permute.xlu0 %3343
      %3345 = vrot.lane.b32.xlu0 %v3324, 124
      %v3346 = vpop.permute.xlu0 %3345
      %3347 = vrot.lane.b32.xlu0 %v3325, 124
      %v3348 = vpop.permute.xlu0 %3347
      %3349 = vrot.lane.b32.xlu0 %v3326, 124
      %v3350 = vpop.permute.xlu0 %3349
      %v3352 = vsel %vm352, %v3336, 0
      %v3355 = vsel %vm352, %v3338, 0
      %v3358 = vsel %vm352, %v3340, 0
      %v3361 = vsel %vm352, %v3342, 0
      %v3364 = vsel %vm352, %v3344, 0
      %v3367 = vsel %vm352, %v3346, 0
      %v3370 = vsel %vm352, %v3348, 0
      %v3373 = vsel %vm352, %v3350, 0
      %3375 = vmatprep.subr.bf16.mxu0 0
      %3376 = vmatpush1.bf16.msra.mxu0 %v1876
      %3377 = vmatprep.subr.bf16.mxu0 0
      %3378 = vmatpush1.bf16.msra.mxu0 0
      %3379 = vmatprep.subr.bf16.mxu0 0
      %3380 = vmatpush1.bf16.msra.mxu0 0
      %3381 = vmatprep.subr.bf16.mxu0 0
      %3382 = vmatpush1.bf16.msra.mxu0 0
      %3383 = vmatprep.subr.bf16.mxu0 0
      %3384 = vmatpush1.bf16.msra.mxu0 0
      %3385 = vmatprep.subr.bf16.mxu0 0
      %3386 = vmatpush1.bf16.msra.mxu0 0
      %3387 = vmatprep.subr.bf16.mxu0 0
      %3388 = vmatpush1.bf16.msra.mxu0 0
      %3389 = vmatprep.subr.bf16.mxu0 0
      %3390 = vmatpush1.bf16.msra.mxu0 0
      %3391 = vmatprep.subr.bf16.mxu0 0
      %3392 = vmatpush1.bf16.msra.mxu0 0
      %3393 = vmatprep.subr.bf16.mxu0 0
      %3394 = vmatpush1.bf16.msra.mxu0 0
      %3395 = vmatprep.subr.bf16.mxu0 0
      %3396 = vmatpush1.bf16.msra.mxu0 0
      %3397 = vmatprep.subr.bf16.mxu0 0
      %3398 = vmatpush1.bf16.msra.mxu0 0
      %3399 = vmatprep.subr.bf16.mxu0 0
      %3400 = vmatpush1.bf16.msra.mxu0 0
      %3401 = vmatprep.subr.bf16.mxu0 0
      %3402 = vmatpush1.bf16.msra.mxu0 0
      %3403 = vmatprep.subr.bf16.mxu0 0
      %3404 = vmatpush1.bf16.msra.mxu0 0
      %3405 = vmatprep.subr.bf16.mxu0 0
      %3406 = vmatpush1.bf16.msra.mxu0 0
      %3407 = vmatprep.mubr.bf16.mxu0 0
      %3408 = vmatmul.mubr.bf16.gmra.mrb[0].mxu0 %v3352
      %v3409 = vpop.f32.mrb[0].mxu0
      %v3410 = vadd.f32 0.0, %v3409
      %v3411 = vpop.f32.mrb[0].mxu0
      %v3412 = vpop.f32.mrb[0].mxu0
      %v3413 = vadd.f32 0.0, %v3412
      %v3414 = vpop.f32.mrb[0].mxu0
      %3415 = vmatprep.mubr.bf16.mxu0 0
      %3416 = vmatmul.mubr.bf16.gmra.mrb[0].mxu0 %v3355
      %v3417 = vpop.f32.mrb[0].mxu0
      %v3418 = vadd.f32 0.0, %v3417
      %v3419 = vpop.f32.mrb[0].mxu0
      %v3420 = vpop.f32.mrb[0].mxu0
      %v3421 = vadd.f32 0.0, %v3420
      %v3422 = vpop.f32.mrb[0].mxu0
      %3423 = vmatprep.mubr.bf16.mxu0 0
      %3424 = vmatmul.mubr.bf16.gmra.mrb[0].mxu0 %v3358
      %v3425 = vpop.f32.mrb[0].mxu0
      %v3426 = vadd.f32 0.0, %v3425
      %v3427 = vpop.f32.mrb[0].mxu0
      %v3428 = vpop.f32.mrb[0].mxu0
      %v3429 = vadd.f32 0.0, %v3428
      %v3430 = vpop.f32.mrb[0].mxu0
      %3431 = vmatprep.mubr.bf16.mxu0 0
      %3432 = vmatmul.mubr.bf16.gmra.mrb[0].mxu0 %v3361
      %v3433 = vpop.f32.mrb[0].mxu0
      %v3434 = vadd.f32 0.0, %v3433
      %v3435 = vpop.f32.mrb[0].mxu0
      %v3436 = vpop.f32.mrb[0].mxu0
      %v3437 = vadd.f32 0.0, %v3436
      %v3438 = vpop.f32.mrb[0].mxu0
      %3439 = vmatprep.mubr.bf16.mxu0 0
      %3440 = vmatmul.mubr.bf16.gmra.mrb[0].mxu0 %v3364
      %v3441 = vpop.f32.mrb[0].mxu0
      %v3442 = vadd.f32 0.0, %v3441
      %v3443 = vpop.f32.mrb[0].mxu0
      %v3444 = vpop.f32.mrb[0].mxu0
      %v3445 = vadd.f32 0.0, %v3444
      %v3446 = vpop.f32.mrb[0].mxu0
      %3447 = vmatprep.mubr.bf16.mxu0 0
      %3448 = vmatmul.mubr.bf16.gmra.mrb[0].mxu0 %v3367
      %v3449 = vpop.f32.mrb[0].mxu0
      %v3450 = vadd.f32 0.0, %v3449
      %v3451 = vpop.f32.mrb[0].mxu0
      %v3452 = vpop.f32.mrb[0].mxu0
      %v3453 = vadd.f32 0.0, %v3452
      %v3454 = vpop.f32.mrb[0].mxu0
      %3455 = vmatprep.mubr.bf16.mxu0 0
      %3456 = vmatmul.mubr.bf16.gmra.mrb[0].mxu0 %v3370
      %v3457 = vpop.f32.mrb[0].mxu0
      %v3458 = vadd.f32 0.0, %v3457
      %v3459 = vpop.f32.mrb[0].mxu0
      %v3460 = vpop.f32.mrb[0].mxu0
      %v3461 = vadd.f32 0.0, %v3460
      %v3462 = vpop.f32.mrb[0].mxu0
      %3463 = vmatprep.mubr.bf16.mxu0 0
      %3464 = vmatmul.mubr.bf16.gmra.mrb[0].mxu0 %v3373
      %v3465 = vpop.f32.mrb[0].mxu0
      %v3466 = vadd.f32 0.0, %v3465
      %v3467 = vpop.f32.mrb[0].mxu0
      %v3468 = vpop.f32.mrb[0].mxu0
      %v3469 = vadd.f32 0.0, %v3468
      %v3470 = vpop.f32.mrb[0].mxu0
      %3471 = vdwg.mxu0
      %v3473 = vsel %vm352, %v3311, 0
      %v3476 = vsel %vm352, %v3312, 0
      %v3479 = vsel %vm352, %v3313, 0
      %v3482 = vsel %vm352, %v3314, 0
      %v3485 = vsel %vm352, %v3315, 0
      %v3488 = vsel %vm352, %v3316, 0
      %v3491 = vsel %vm352, %v3317, 0
      %v3494 = vsel %vm352, %v3318, 0
      %3496 = vmatprep.subr.bf16.mxu0 0
      %3497 = vmatpush1.bf16.msra.mxu0 %v2000
      %3498 = vmatprep.subr.bf16.mxu0 0
      %3499 = vmatpush1.bf16.msra.mxu0 0
      %3500 = vmatprep.subr.bf16.mxu0 0
      %3501 = vmatpush1.bf16.msra.mxu0 0
      %3502 = vmatprep.subr.bf16.mxu0 0
      %3503 = vmatpush1.bf16.msra.mxu0 0
      %3504 = vmatprep.subr.bf16.mxu0 0
      %3505 = vmatpush1.bf16.msra.mxu0 0
      %3506 = vmatprep.subr.bf16.mxu0 0
      %3507 = vmatpush1.bf16.msra.mxu0 0
      %3508 = vmatprep.subr.bf16.mxu0 0
      %3509 = vmatpush1.bf16.msra.mxu0 0
      %3510 = vmatprep.subr.bf16.mxu0 0
      %3511 = vmatpush1.bf16.msra.mxu0 0
      %3512 = vmatprep.subr.bf16.mxu0 0
      %3513 = vmatpush1.bf16.msra.mxu0 0
      %3514 = vmatprep.subr.bf16.mxu0 0
      %3515 = vmatpush1.bf16.msra.mxu0 0
      %3516 = vmatprep.subr.bf16.mxu0 0
      %3517 = vmatpush1.bf16.msra.mxu0 0
      %3518 = vmatprep.subr.bf16.mxu0 0
      %3519 = vmatpush1.bf16.msra.mxu0 0
      %3520 = vmatprep.subr.bf16.mxu0 0
      %3521 = vmatpush1.bf16.msra.mxu0 0
      %3522 = vmatprep.subr.bf16.mxu0 0
      %3523 = vmatpush1.bf16.msra.mxu0 0
      %3524 = vmatprep.subr.bf16.mxu0 0
      %3525 = vmatpush1.bf16.msra.mxu0 0
      %3526 = vmatprep.subr.bf16.mxu0 0
      %3527 = vmatpush1.bf16.msra.mxu0 0
      %3528 = vmatprep.mubr.bf16.mxu0 0
      %3529 = vmatmul.mubr.bf16.gmra.mrb[0].mxu0 %v3473
      %v3530 = vpop.f32.mrb[0].mxu0
      %v3531 = vadd.f32 %v3410, %v3530
      %v3532 = vpop.f32.mrb[0].mxu0
      %v3533 = vpop.f32.mrb[0].mxu0
      %v3534 = vadd.f32 %v3413, %v3533
      %v3535 = vpop.f32.mrb[0].mxu0
      %3536 = vmatprep.mubr.bf16.mxu0 0
      %3537 = vmatmul.mubr.bf16.gmra.mrb[0].mxu0 %v3476
      %v3538 = vpop.f32.mrb[0].mxu0
      %v3539 = vadd.f32 %v3418, %v3538
      %v3540 = vpop.f32.mrb[0].mxu0
      %v3541 = vpop.f32.mrb[0].mxu0
      %v3542 = vadd.f32 %v3421, %v3541
      %v3543 = vpop.f32.mrb[0].mxu0
      %3544 = vmatprep.mubr.bf16.mxu0 0
      %3545 = vmatmul.mubr.bf16.gmra.mrb[0].mxu0 %v3479
      %v3546 = vpop.f32.mrb[0].mxu0
      %v3547 = vadd.f32 %v3426, %v3546
      %v3548 = vpop.f32.mrb[0].mxu0
      %v3549 = vpop.f32.mrb[0].mxu0
      %v3550 = vadd.f32 %v3429, %v3549
      %v3551 = vpop.f32.mrb[0].mxu0
      %3552 = vmatprep.mubr.bf16.mxu0 0
      %3553 = vmatmul.mubr.bf16.gmra.mrb[0].mxu0 %v3482
      %v3554 = vpop.f32.mrb[0].mxu0
      %v3555 = vadd.f32 %v3434, %v3554
      %v3556 = vpop.f32.mrb[0].mxu0
      %v3557 = vpop.f32.mrb[0].mxu0
      %v3558 = vadd.f32 %v3437, %v3557
      %v3559 = vpop.f32.mrb[0].mxu0
      %3560 = vmatprep.mubr.bf16.mxu0 0
      %3561 = vmatmul.mubr.bf16.gmra.mrb[0].mxu0 %v3485
      %v3562 = vpop.f32.mrb[0].mxu0
      %v3563 = vadd.f32 %v3442, %v3562
      %v3564 = vpop.f32.mrb[0].mxu0
      %v3565 = vpop.f32.mrb[0].mxu0
      %v3566 = vadd.f32 %v3445, %v3565
      %v3567 = vpop.f32.mrb[0].mxu0
      %3568 = vmatprep.mubr.bf16.mxu0 0
      %3569 = vmatmul.mubr.bf16.gmra.mrb[0].mxu0 %v3488
      %v3570 = vpop.f32.mrb[0].mxu0
      %v3571 = vadd.f32 %v3450, %v3570
      %v3572 = vpop.f32.mrb[0].mxu0
      %v3573 = vpop.f32.mrb[0].mxu0
      %v3574 = vadd.f32 %v3453, %v3573
      %v3575 = vpop.f32.mrb[0].mxu0
      %3576 = vmatprep.mubr.bf16.mxu0 0
      %3577 = vmatmul.mubr.bf16.gmra.mrb[0].mxu0 %v3491
      %v3578 = vpop.f32.mrb[0].mxu0
      %v3579 = vadd.f32 %v3458, %v3578
      %v3580 = vpop.f32.mrb[0].mxu0
      %v3581 = vpop.f32.mrb[0].mxu0
      %v3582 = vadd.f32 %v3461, %v3581
      %v3583 = vpop.f32.mrb[0].mxu0
      %3584 = vmatprep.mubr.bf16.mxu0 0
      %3585 = vmatmul.mubr.bf16.gmra.mrb[0].mxu0 %v3494
      %v3586 = vpop.f32.mrb[0].mxu0
      %v3587 = vadd.f32 %v3466, %v3586
      %v3588 = vpop.f32.mrb[0].mxu0
      %v3589 = vpop.f32.mrb[0].mxu0
      %v3590 = vadd.f32 %v3469, %v3589
      %v3591 = vpop.f32.mrb[0].mxu0
      %3592 = vdwg.mxu0
      %v3593 = vadd.f32 %v3531, %v2103
      %v3594 = vadd.f32 %v3534, %v2103
      %v3595 = vadd.f32 %v3539, %v2103
      %v3596 = vadd.f32 %v3542, %v2103
      %v3597 = vadd.f32 %v3547, %v2103
      %v3598 = vadd.f32 %v3550, %v2103
      %v3599 = vadd.f32 %v3555, %v2103
      %v3600 = vadd.f32 %v3558, %v2103
      %v3601 = vadd.f32 %v3563, %v2103
      %v3602 = vadd.f32 %v3566, %v2103
      %v3603 = vadd.f32 %v3571, %v2103
      %v3604 = vadd.f32 %v3574, %v2103
      %v3605 = vadd.f32 %v3579, %v2103
      %v3606 = vadd.f32 %v3582, %v2103
      %v3607 = vadd.f32 %v3587, %v2103
      %v3608 = vadd.f32 %v3590, %v2103
      %s3609 = scalar_lea.vmem %s271, 128
      %3610 = vst.msk [vmem:[%s3609] sm:$0xff] %vm352, %v3593
      %3611 = vst.msk [vmem:[%s3609 + $0x8] sm:$0xff] %vm352, %v3594
      %3612 = vst.msk [vmem:[%s3609 + $0x10] sm:$0xff] %vm352, %v3595
      %3613 = vst.msk [vmem:[%s3609 + $0x18] sm:$0xff] %vm352, %v3596
      %3614 = vst.msk [vmem:[%s3609 + $0x20] sm:$0xff] %vm352, %v3597
      %3615 = vst.msk [vmem:[%s3609 + $0x28] sm:$0xff] %vm352, %v3598
      %3616 = vst.msk [vmem:[%s3609 + $0x30] sm:$0xff] %vm352, %v3599
      %3617 = vst.msk [vmem:[%s3609 + $0x38] sm:$0xff] %vm352, %v3600
      %3618 = vst.msk [vmem:[%s3609 + $0x40] sm:$0xff] %vm352, %v3601
      %3619 = vst.msk [vmem:[%s3609 + $0x48] sm:$0xff] %vm352, %v3602
      %3620 = vst.msk [vmem:[%s3609 + $0x50] sm:$0xff] %vm352, %v3603
      %3621 = vst.msk [vmem:[%s3609 + $0x58] sm:$0xff] %vm352, %v3604
      %3622 = vst.msk [vmem:[%s3609 + $0x60] sm:$0xff] %vm352, %v3605
      %3623 = vst.msk [vmem:[%s3609 + $0x68] sm:$0xff] %vm352, %v3606
      %3624 = vst.msk [vmem:[%s3609 + $0x70] sm:$0xff] %vm352, %v3607
      %3625 = vst.msk [vmem:[%s3609 + $0x78] sm:$0xff] %vm352, %v3608
      %p3626 = scmp.lt.s32.totalorder %s17, 1
      %s3627 = scalar_select %p3626, %s17, 1
      %s3628 = smul.addr %s3627, 32
      %s3629 = smul.addr %s3628, 8
      %s3630 = scalar_lea.vmem %s6, %s3629
      // Predicated region
      $region45: #{tpu_custom_call.1} parent=43 // pred_check
        %p3631 = pneg %p171
      $region46: #{tpu_custom_call.1} parent=43 // pred_check_branch
        %3633 = sbr.rel (%p3631) target = $region48
      $region47: #{tpu_custom_call.1} parent=43 // pred_region
        _
      $region48: #{tpu_custom_call.1} parent=43 // pred_fallthru
        _
    $region44: #{tpu_custom_call.1} parent=5 // pred_fallthru
      _
    %p3634 = scmp.le.s32.totalorder 2, %s12
    // Predicated region
    $region49: #{tpu_custom_call.1} parent=5 // pred_check
      %p3635 = pneg %p3634
    $region50: #{tpu_custom_call.1} parent=5 // pred_check_branch
      %3637 = sbr.rel (%p3635) target = $region52
    $region51: #{tpu_custom_call.1} parent=5 // pred_region
      %s3638 = ssub.s32 %s12, 2
      // Predicated region
      $region53: #{tpu_custom_call.1} parent=51 // pred_check
        %p3639 = pneg %p177
      $region54: #{tpu_custom_call.1} parent=51 // pred_check_branch
        %3641 = sbr.rel (%p3639) target = $region56
      $region55: #{tpu_custom_call.1} parent=51 // pred_region
        %p3642 = scmp.lt.s32.totalorder %s18, 1
        %s3643 = scalar_select %p3642, %s18, 1
        %s3644 = smul.addr %s3643, 32
        %s3645 = smul.addr %s3644, 8
        %s3646 = scalar_lea.vmem %s6, %s3645
      $region56: #{tpu_custom_call.1} parent=51 // pred_fallthru
        _
    $region52: #{tpu_custom_call.1} parent=5 // pred_fallthru
      _
  $region6: #{tpu_custom_call.1} parent=0 // loop_footer
    %s16 = sadd.s32 1, %s12
  $region7: #{tpu_custom_call.1} parent=0 // loop_footer_branch
    %11 = sbr.rel target = $region3
  $region8: #{tpu_custom_call.1} parent=0 // loop_exit
    _

</llo_original>
